<compile_context>
chip_gen: v7x
topology: tpu7x:2x2x1
jax: 0.10.0
libtpu: 0.0.40
codegen_flags: <defaults>
</compile_context>

<pallas_src>
import jax
import jax.numpy as jnp
from jax.experimental import pallas as pl
from jax.experimental.pallas import tpu as pltpu

EPS = 1e-5


def _round_up(n, m):
    return ((n + m - 1) // m) * m


def _srgan_block_kernel(x_ref, xp_ref, w1_ref, g1_ref, bt1_ref, alpha_ref,
                        w2_ref, g2_ref, bt2_ref, o_ref, patch_ref):
    N, H, W, CP = x_ref.shape
    C = xp_ref.shape[-1]                      # real channel count
    M = N * H * W
    KP = patch_ref.shape[-1]                  # round_up(9*C, 128)

    # Zero the patch scratch once: only lanes [9*C, KP) must stay zero; the live
    # lanes are fully overwritten by the slab stores for each conv.
    patch_ref[...] = jnp.zeros(patch_ref.shape, patch_ref.dtype)

    def pack_patches(tp):
        # tp: (N, H+2, W+2, C) reflect-padded activations.  Packs the 9 conv taps
        # into the lane dim of the bf16 patch scratch: lane k = tap*C + ci.
        # TODO(synk): the dx=1,2 slices are unaligned sublane shifts; a pltpu.roll
        # based variant (or W carried rounded up to 8) would keep them full-vreg moves.
        t = 0
        for dy in range(3):
            for dx in range(3):
                slab = tp[:, dy:dy + H, dx:dx + W, :].reshape(M, C)
                patch_ref[:, t * C:(t + 1) * C] = slab.astype(patch_ref.dtype)
                t += 1

    def conv_bn(w_ref, g_ref, bt_ref):
        # Single MXU matmul per conv: (M, KP) x (KP, CP), bf16 operands, f32 accum.
        # Conv bias omitted: exactly cancelled by the BN mean subtraction below.
        y = jnp.dot(patch_ref[...], w_ref[...], preferred_element_type=jnp.float32)
        # Training-mode BatchNorm, one-pass biased batch stats over N*H*W (f32).
        mean = jnp.mean(y, axis=0, keepdims=True)
        var = jnp.maximum(jnp.mean(y * y, axis=0, keepdims=True) - mean * mean, 0.0)
        scale = jax.lax.rsqrt(var + EPS) * g_ref[...]
        return (y - mean) * scale + bt_ref[...]

    # conv1 -> bn1 -> PReLU  (conv1's reflection pad was hoisted to the wrapper).
    pack_patches(xp_ref[...])
    h = conv_bn(w1_ref, g1_ref, bt1_ref)
    alpha = alpha_ref[0, 0]
    h = jnp.where(h > 0, h, alpha * h)

    # In-kernel ReflectionPad2d(1) on the C real channels only (padded lanes of h are
    # exactly zero and their conv2 weight rows are zero, so dropping them is exact).
    # The 1-wide reflection concats stay f32 (tiny at C channels, lowering-proven);
    # slabs are cast to bf16 at the pack step.
    hc = h[:, :C].reshape(N, H, W, C)
    hp = jnp.concatenate([hc[:, 1:2], hc, hc[:, H - 2:H - 1]], axis=1)
    hp = jnp.concatenate([hp[:, :, 1:2], hp, hp[:, :, W - 2:W - 1]], axis=2)

    # conv2 -> bn2 -> residual (lane-dense f32 store).
    pack_patches(hp)
    y2 = conv_bn(w2_ref, g2_ref, bt2_ref)
    o_ref[...] = x_ref[...] + y2.reshape(N, H, W, CP)


@jax.jit
def srgan_block(x_nchw, w1, b1, g1, bt1, alpha, w2, b2, g2, bt2):
    """x_nchw: (N, C, H, W) f32.  w*: (3, 3, C, C) HWIO.  b*/g*/bt*: (C,).  alpha: scalar."""
    x = jnp.transpose(x_nchw, (0, 2, 3, 1)).astype(jnp.float32)    # NCHW -> NHWC
    N, H, W, C = x.shape
    assert H >= 2 and W >= 2, "ReflectionPad2d(1) requires H, W >= 2"
    M = N * H * W
    CP = _round_up(C, 128)            # lane-dense output channels
    KP = _round_up(9 * C, 128)        # tap-packed contraction dim
    pc = CP - C

    # Conv biases dropped: training-mode BN subtracts the batch mean, which cancels a
    # per-channel constant exactly.  (Revisit if inference-mode BN is ever needed.)
    del b1, b2

    # Residual input, lane-dense f32 (aliased onto the output buffer).
    xP = jnp.pad(x, ((0, 0), (0, 0), (0, 0), (0, pc)))
    # conv1 input: ReflectionPad2d(1) hoisted here; bf16 (MXU LHS only), C real channels.
    xp_bf = jnp.pad(x, ((0, 0), (1, 1), (1, 1), (0, 0)),
                    mode="reflect").astype(jnp.bfloat16)

    def prep_w(w):
        # (3,3,C,C) HWIO -> (9*C, C), K ordered (tap, ci) -> zero-pad to (KP, CP), bf16.
        wk = w.astype(jnp.float32).reshape(9 * C, C)
        return jnp.pad(wk, ((0, KP - 9 * C), (0, pc))).astype(jnp.bfloat16)

    def prep_v(v):
        # (C,) -> (1, CP) f32; zero padding keeps padded BN channels at exactly 0.
        return jnp.pad(v.astype(jnp.float32), ((0, pc),)).reshape(1, CP)

    w1k, w2k = prep_w(w1), prep_w(w2)
    g1k, bt1k = prep_v(g1), prep_v(bt1)
    g2k, bt2k = prep_v(g2), prep_v(bt2)
    ak = jnp.asarray(alpha, jnp.float32).reshape(1, 1)

    vmem = pl.BlockSpec(memory_space=pltpu.MemorySpace.VMEM)
    smem = pl.BlockSpec(memory_space=pltpu.MemorySpace.SMEM)

    # VMEM budget from the actual buffers (inputs/outputs + f32 temps + patch scratch).
    buf_bytes = (2 * M * CP * 4                  # residual input + output block (f32)
                 + 3 * M * CP * 4                # y / h / normalize temps (f32)
                 + M * KP * 2                    # bf16 patch scratch
                 + xp_bf.size * 2
                 + (w1k.size + w2k.size) * 2)
    vmem_limit = int(min(max(2 * buf_bytes, 32 << 20), 100 << 20))

    cost = pl.CostEstimate(
        flops=2 * 2 * M * KP * CP,               # two tap-packed im2col matmuls
        transcendentals=2 * CP,                  # two rsqrt rows
        bytes_accessed=(2 * M * CP) * 4 + xp_bf.size * 2
                       + (w1k.size + w2k.size) * 2,
    )

    out = pl.pallas_call(
        _srgan_block_kernel,
        out_shape=jax.ShapeDtypeStruct((N, H, W, CP), jnp.float32),
        in_specs=[vmem, vmem, vmem, vmem, vmem, smem, vmem, vmem, vmem],
        out_specs=vmem,
        scratch_shapes=[pltpu.VMEM((M, KP), jnp.bfloat16)],
        input_output_aliases={0: 0},             # residual input -> output buffer
        compiler_params=pltpu.CompilerParams(vmem_limit_bytes=vmem_limit),
        cost_estimate=cost,
    )(xP, xp_bf, w1k, g1k, bt1k, ak, w2k, g2k, bt2k)

    return jnp.transpose(out[..., :C], (0, 3, 1, 2))               # NHWC -> NCHW


def _ref_forward(x_nchw, w1, b1, g1, bt1, alpha, w2, b2, g2, bt2):
    """Pure-JAX reference with the same operand precision as the kernel
    (bf16 conv operands, f32 accumulation / BN / PReLU / residual)."""
    x = jnp.transpose(x_nchw, (0, 2, 3, 1)).astype(jnp.float32)

    def conv_bn(t, w, b, g, bt):
        tp = jnp.pad(t, ((0, 0), (1, 1), (1, 1), (0, 0)), mode="reflect")
        y = jax.lax.conv_general_dilated(
            tp.astype(jnp.bfloat16), w.astype(jnp.bfloat16),
            window_strides=(1, 1), padding="VALID",
            dimension_numbers=("NHWC", "HWIO", "NHWC"),
            preferred_element_type=jnp.float32) + b
        mean = y.mean(axis=(0, 1, 2))
        var = jnp.mean((y - mean) ** 2, axis=(0, 1, 2))
        return (y - mean) * jax.lax.rsqrt(var + EPS) * g + bt

    h = conv_bn(x, w1, b1, g1, bt1)
    h = jnp.where(h > 0, h, alpha * h)
    h = conv_bn(h, w2, b2, g2, bt2)
    return jnp.transpose(x + h, (0, 3, 1, 2))


if __name__ == "__main__":
    N, C, H, W = 2, 4, 16, 16                       # SRGANBlock(dim=4)
    key = jax.random.PRNGKey(0)
    ks = jax.random.split(key, 9)

    x = jax.random.normal(ks[0], (N, C, H, W), jnp.float32)

    # Deterministic synthetic parameters (Conv2d / BatchNorm2d / PReLU shapes).
    w1 = 0.1 * jax.random.normal(ks[1], (3, 3, C, C), jnp.float32)   # HWIO
    b1 = 0.1 * jax.random.normal(ks[2], (C,), jnp.float32)
    g1 = 1.0 + 0.1 * jax.random.normal(ks[3], (C,), jnp.float32)
    bt1 = 0.1 * jax.random.normal(ks[4], (C,), jnp.float32)
    alpha = jnp.float32(0.25)                                        # PReLU init
    w2 = 0.1 * jax.random.normal(ks[5], (3, 3, C, C), jnp.float32)
    b2 = 0.1 * jax.random.normal(ks[6], (C,), jnp.float32)
    g2 = 1.0 + 0.1 * jax.random.normal(ks[7], (C,), jnp.float32)
    bt2 = 0.1 * jax.random.normal(ks[8], (C,), jnp.float32)

    out = srgan_block(x, w1, b1, g1, bt1, alpha, w2, b2, g2, bt2)
    out = jax.block_until_ready(out)

    ref = _ref_forward(x, w1, b1, g1, bt1, alpha, w2, b2, g2, bt2)
    assert out.shape == (N, C, H, W)
    err = float(jnp.max(jnp.abs(out - ref)))
    assert jnp.allclose(out, ref, atol=5e-3, rtol=5e-3), err
    print("KERNEL_OK")
</pallas_src>

<mosaic_0001>
module attributes {stable_mosaic.version = 11 : i64} {
  func.func @_srgan_block_kernel(%arg0: memref<2x16x16x128xf32, #tpu.memory_space<vmem>>, %arg1: memref<2x18x18x4xbf16, #tpu.memory_space<vmem>>, %arg2: memref<128x128xbf16, #tpu.memory_space<vmem>>, %arg3: memref<1x128xf32, #tpu.memory_space<vmem>>, %arg4: memref<1x128xf32, #tpu.memory_space<vmem>>, %arg5: memref<1x1xf32, #tpu.memory_space<smem>>, %arg6: memref<128x128xbf16, #tpu.memory_space<vmem>>, %arg7: memref<1x128xf32, #tpu.memory_space<vmem>>, %arg8: memref<1x128xf32, #tpu.memory_space<vmem>>, %arg9: memref<2x16x16x128xf32, #tpu.memory_space<vmem>>, %arg10: memref<512x128xbf16, #tpu.memory_space<vmem>>) attributes {dimension_semantics = [], scalar_prefetch = 0 : i64, scratch_operands = 1 : i64, tpu.core_type = #tpu.core_type<tc>} {
    %cst = arith.constant 0.000000e+00 : bf16
    %0 = vector.broadcast %cst : bf16 to vector<512x128xbf16>
    %c0 = arith.constant 0 : index
    %c0_0 = arith.constant 0 : index
    %1 = vector.load %arg10[%c0, %c0_0] : memref<512x128xbf16, #tpu.memory_space<vmem>>, vector<512x128xbf16>
    tpu.vector_store %arg10[%c0, %c0_0], %0 {strides = array<i32>} : memref<512x128xbf16, #tpu.memory_space<vmem>>, vector<512x128xbf16>,
    %c0_1 = arith.constant 0 : index
    %c0_2 = arith.constant 0 : index
    %c0_3 = arith.constant 0 : index
    %c0_4 = arith.constant 0 : index
    %2 = vector.load %arg1[%c0_1, %c0_2, %c0_3, %c0_4] : memref<2x18x18x4xbf16, #tpu.memory_space<vmem>>, vector<2x18x18x4xbf16>
    %3 = vector.extract_strided_slice %2 {offsets = [0, 0, 0, 0], sizes = [2, 16, 16, 4], strides = [1, 1, 1, 1]} : vector<2x18x18x4xbf16> to vector<2x16x16x4xbf16>
    %4 = vector.shape_cast %3 : vector<2x16x16x4xbf16> to vector<512x4xbf16>
    %c0_5 = arith.constant 0 : index
    %c0_6 = arith.constant 0 : index
    %5 = vector.load %arg10[%c0_5, %c0_6] : memref<512x128xbf16, #tpu.memory_space<vmem>>, vector<512x4xbf16>
    tpu.vector_store %arg10[%c0_5, %c0_6], %4 {strides = array<i32>} : memref<512x128xbf16, #tpu.memory_space<vmem>>, vector<512x4xbf16>,
    %6 = vector.extract_strided_slice %2 {offsets = [0, 0, 1, 0], sizes = [2, 16, 16, 4], strides = [1, 1, 1, 1]} : vector<2x18x18x4xbf16> to vector<2x16x16x4xbf16>
    %7 = vector.shape_cast %6 : vector<2x16x16x4xbf16> to vector<512x4xbf16>
    %c0_7 = arith.constant 0 : index
    %c4 = arith.constant 4 : index
    %8 = vector.load %arg10[%c0_7, %c4] : memref<512x128xbf16, #tpu.memory_space<vmem>>, vector<512x4xbf16>
    tpu.vector_store %arg10[%c0_7, %c4], %7 {strides = array<i32>} : memref<512x128xbf16, #tpu.memory_space<vmem>>, vector<512x4xbf16>,
    %9 = vector.extract_strided_slice %2 {offsets = [0, 0, 2, 0], sizes = [2, 16, 16, 4], strides = [1, 1, 1, 1]} : vector<2x18x18x4xbf16> to vector<2x16x16x4xbf16>
    %10 = vector.shape_cast %9 : vector<2x16x16x4xbf16> to vector<512x4xbf16>
    %c0_8 = arith.constant 0 : index
    %c8 = arith.constant 8 : index
    %11 = vector.load %arg10[%c0_8, %c8] : memref<512x128xbf16, #tpu.memory_space<vmem>>, vector<512x4xbf16>
    tpu.vector_store %arg10[%c0_8, %c8], %10 {strides = array<i32>} : memref<512x128xbf16, #tpu.memory_space<vmem>>, vector<512x4xbf16>,
    %12 = vector.extract_strided_slice %2 {offsets = [0, 1, 0, 0], sizes = [2, 16, 16, 4], strides = [1, 1, 1, 1]} : vector<2x18x18x4xbf16> to vector<2x16x16x4xbf16>
    %13 = vector.shape_cast %12 : vector<2x16x16x4xbf16> to vector<512x4xbf16>
    %c0_9 = arith.constant 0 : index
    %c12 = arith.constant 12 : index
    %14 = vector.load %arg10[%c0_9, %c12] : memref<512x128xbf16, #tpu.memory_space<vmem>>, vector<512x4xbf16>
    tpu.vector_store %arg10[%c0_9, %c12], %13 {strides = array<i32>} : memref<512x128xbf16, #tpu.memory_space<vmem>>, vector<512x4xbf16>,
    %15 = vector.extract_strided_slice %2 {offsets = [0, 1, 1, 0], sizes = [2, 16, 16, 4], strides = [1, 1, 1, 1]} : vector<2x18x18x4xbf16> to vector<2x16x16x4xbf16>
    %16 = vector.shape_cast %15 : vector<2x16x16x4xbf16> to vector<512x4xbf16>
    %c0_10 = arith.constant 0 : index
    %c16 = arith.constant 16 : index
    %17 = vector.load %arg10[%c0_10, %c16] : memref<512x128xbf16, #tpu.memory_space<vmem>>, vector<512x4xbf16>
    tpu.vector_store %arg10[%c0_10, %c16], %16 {strides = array<i32>} : memref<512x128xbf16, #tpu.memory_space<vmem>>, vector<512x4xbf16>,
    %18 = vector.extract_strided_slice %2 {offsets = [0, 1, 2, 0], sizes = [2, 16, 16, 4], strides = [1, 1, 1, 1]} : vector<2x18x18x4xbf16> to vector<2x16x16x4xbf16>
    %19 = vector.shape_cast %18 : vector<2x16x16x4xbf16> to vector<512x4xbf16>
    %c0_11 = arith.constant 0 : index
    %c20 = arith.constant 20 : index
    %20 = vector.load %arg10[%c0_11, %c20] : memref<512x128xbf16, #tpu.memory_space<vmem>>, vector<512x4xbf16>
    tpu.vector_store %arg10[%c0_11, %c20], %19 {strides = array<i32>} : memref<512x128xbf16, #tpu.memory_space<vmem>>, vector<512x4xbf16>,
    %21 = vector.extract_strided_slice %2 {offsets = [0, 2, 0, 0], sizes = [2, 16, 16, 4], strides = [1, 1, 1, 1]} : vector<2x18x18x4xbf16> to vector<2x16x16x4xbf16>
    %22 = vector.shape_cast %21 : vector<2x16x16x4xbf16> to vector<512x4xbf16>
    %c0_12 = arith.constant 0 : index
    %c24 = arith.constant 24 : index
    %23 = vector.load %arg10[%c0_12, %c24] : memref<512x128xbf16, #tpu.memory_space<vmem>>, vector<512x4xbf16>
    tpu.vector_store %arg10[%c0_12, %c24], %22 {strides = array<i32>} : memref<512x128xbf16, #tpu.memory_space<vmem>>, vector<512x4xbf16>,
    %24 = vector.extract_strided_slice %2 {offsets = [0, 2, 1, 0], sizes = [2, 16, 16, 4], strides = [1, 1, 1, 1]} : vector<2x18x18x4xbf16> to vector<2x16x16x4xbf16>
    %25 = vector.shape_cast %24 : vector<2x16x16x4xbf16> to vector<512x4xbf16>
    %c0_13 = arith.constant 0 : index
    %c28 = arith.constant 28 : index
    %26 = vector.load %arg10[%c0_13, %c28] : memref<512x128xbf16, #tpu.memory_space<vmem>>, vector<512x4xbf16>
    tpu.vector_store %arg10[%c0_13, %c28], %25 {strides = array<i32>} : memref<512x128xbf16, #tpu.memory_space<vmem>>, vector<512x4xbf16>,
    %27 = vector.extract_strided_slice %2 {offsets = [0, 2, 2, 0], sizes = [2, 16, 16, 4], strides = [1, 1, 1, 1]} : vector<2x18x18x4xbf16> to vector<2x16x16x4xbf16>
    %28 = vector.shape_cast %27 : vector<2x16x16x4xbf16> to vector<512x4xbf16>
    %c0_14 = arith.constant 0 : index
    %c32 = arith.constant 32 : index
    %29 = vector.load %arg10[%c0_14, %c32] : memref<512x128xbf16, #tpu.memory_space<vmem>>, vector<512x4xbf16>
    tpu.vector_store %arg10[%c0_14, %c32], %28 {strides = array<i32>} : memref<512x128xbf16, #tpu.memory_space<vmem>>, vector<512x4xbf16>,
    %c0_15 = arith.constant 0 : index
    %c0_16 = arith.constant 0 : index
    %30 = vector.load %arg10[%c0_15, %c0_16] : memref<512x128xbf16, #tpu.memory_space<vmem>>, vector<512x128xbf16>
    %c0_17 = arith.constant 0 : index
    %c0_18 = arith.constant 0 : index
    %31 = vector.load %arg2[%c0_17, %c0_18] : memref<128x128xbf16, #tpu.memory_space<vmem>>, vector<128x128xbf16>
    %cst_19 = arith.constant dense<0.000000e+00> : vector<512x128xf32>
    %32 = tpu.matmul %30, %31, %cst_19 {dimension_numbers = #tpu.dot_dimension_numbers<[1], [0], [0], [1], [0, 0, 1, 1], [], []>} : vector<512x128xbf16>, vector<128x128xbf16>, vector<512x128xf32> -> vector<512x128xf32>
    %cst_20 = arith.constant dense<0.000000e+00> : vector<128xf32>
    %33 = vector.multi_reduction <add>, %32, %cst_20 [0] : vector<512x128xf32> to vector<128xf32>
    %34 = vector.shape_cast %33 : vector<128xf32> to vector<1x128xf32>
    %cst_21 = arith.constant 5.120000e+02 : f32
    %35 = vector.broadcast %cst_21 : f32 to vector<1x128xf32>
    %36 = arith.divf %34, %35 : vector<1x128xf32>
    %37 = arith.mulf %32, %32 : vector<512x128xf32>
    %cst_22 = arith.constant dense<0.000000e+00> : vector<128xf32>
    %38 = vector.multi_reduction <add>, %37, %cst_22 [0] : vector<512x128xf32> to vector<128xf32>
    %39 = vector.shape_cast %38 : vector<128xf32> to vector<1x128xf32>
    %cst_23 = arith.constant 5.120000e+02 : f32
    %40 = vector.broadcast %cst_23 : f32 to vector<1x128xf32>
    %41 = arith.divf %39, %40 : vector<1x128xf32>
    %42 = arith.mulf %36, %36 : vector<1x128xf32>
    %43 = arith.subf %41, %42 : vector<1x128xf32>
    %cst_24 = arith.constant 0.000000e+00 : f32
    %44 = vector.broadcast %cst_24 : f32 to vector<1x128xf32>
    %45 = arith.maximumf %43, %44 : vector<1x128xf32>
    %cst_25 = arith.constant 9.99999974E-6 : f32
    %46 = vector.broadcast %cst_25 : f32 to vector<1x128xf32>
    %47 = arith.addf %45, %46 : vector<1x128xf32>
    %48 = math.rsqrt %47 : vector<1x128xf32>
    %c0_26 = arith.constant 0 : index
    %c0_27 = arith.constant 0 : index
    %49 = vector.load %arg3[%c0_26, %c0_27] : memref<1x128xf32, #tpu.memory_space<vmem>>, vector<1x128xf32>
    %50 = arith.mulf %48, %49 : vector<1x128xf32>
    %51 = vector.broadcast %36 : vector<1x128xf32> to vector<512x128xf32>
    %52 = arith.subf %32, %51 : vector<512x128xf32>
    %53 = vector.broadcast %50 : vector<1x128xf32> to vector<512x128xf32>
    %54 = arith.mulf %52, %53 : vector<512x128xf32>
    %c0_28 = arith.constant 0 : index
    %c0_29 = arith.constant 0 : index
    %55 = vector.load %arg4[%c0_28, %c0_29] : memref<1x128xf32, #tpu.memory_space<vmem>>, vector<1x128xf32>
    %56 = vector.broadcast %55 : vector<1x128xf32> to vector<512x128xf32>
    %57 = arith.addf %54, %56 : vector<512x128xf32>
    %c0_30 = arith.constant 0 : index
    %c0_31 = arith.constant 0 : index
    %58 = memref.load %arg5[%c0_30, %c0_31] : memref<1x1xf32, #tpu.memory_space<smem>>
    %cst_32 = arith.constant 0.000000e+00 : f32
    %59 = vector.broadcast %cst_32 : f32 to vector<512x128xf32>
    %60 = arith.cmpf ogt, %57, %59 : vector<512x128xf32>
    %61 = vector.broadcast %58 : f32 to vector<512x128xf32>
    %62 = arith.mulf %61, %57 : vector<512x128xf32>
    %63 = arith.select %60, %57, %62 : vector<512x128xi1>, vector<512x128xf32>
    %64 = vector.extract_strided_slice %63 {offsets = [0, 0], sizes = [512, 4], strides = [1, 1]} : vector<512x128xf32> to vector<512x4xf32>
    %65 = vector.shape_cast %64 : vector<512x4xf32> to vector<2x16x16x4xf32>
    %66 = vector.extract_strided_slice %65 {offsets = [0, 1, 0, 0], sizes = [2, 1, 16, 4], strides = [1, 1, 1, 1]} : vector<2x16x16x4xf32> to vector<2x1x16x4xf32>
    %67 = vector.extract_strided_slice %65 {offsets = [0, 14, 0, 0], sizes = [2, 1, 16, 4], strides = [1, 1, 1, 1]} : vector<2x16x16x4xf32> to vector<2x1x16x4xf32>
    %68 = tpu.concatenate %66, %65, %67 in 1 : vector<2x1x16x4xf32>, vector<2x16x16x4xf32>, vector<2x1x16x4xf32> -> vector<2x18x16x4xf32>
    %69 = vector.extract_strided_slice %68 {offsets = [0, 0, 1, 0], sizes = [2, 18, 1, 4], strides = [1, 1, 1, 1]} : vector<2x18x16x4xf32> to vector<2x18x1x4xf32>
    %70 = vector.extract_strided_slice %68 {offsets = [0, 0, 14, 0], sizes = [2, 18, 1, 4], strides = [1, 1, 1, 1]} : vector<2x18x16x4xf32> to vector<2x18x1x4xf32>
    %71 = tpu.concatenate %69, %68, %70 in 2 : vector<2x18x1x4xf32>, vector<2x18x16x4xf32>, vector<2x18x1x4xf32> -> vector<2x18x18x4xf32>
    %72 = vector.extract_strided_slice %71 {offsets = [0, 0, 0, 0], sizes = [2, 16, 16, 4], strides = [1, 1, 1, 1]} : vector<2x18x18x4xf32> to vector<2x16x16x4xf32>
    %73 = vector.shape_cast %72 : vector<2x16x16x4xf32> to vector<512x4xf32>
    %74 = arith.truncf %73 : vector<512x4xf32> to vector<512x4xbf16>
    %c0_33 = arith.constant 0 : index
    %c0_34 = arith.constant 0 : index
    %75 = vector.load %arg10[%c0_33, %c0_34] : memref<512x128xbf16, #tpu.memory_space<vmem>>, vector<512x4xbf16>
    tpu.vector_store %arg10[%c0_33, %c0_34], %74 {strides = array<i32>} : memref<512x128xbf16, #tpu.memory_space<vmem>>, vector<512x4xbf16>,
    %76 = vector.extract_strided_slice %71 {offsets = [0, 0, 1, 0], sizes = [2, 16, 16, 4], strides = [1, 1, 1, 1]} : vector<2x18x18x4xf32> to vector<2x16x16x4xf32>
    %77 = vector.shape_cast %76 : vector<2x16x16x4xf32> to vector<512x4xf32>
    %78 = arith.truncf %77 : vector<512x4xf32> to vector<512x4xbf16>
    %c0_35 = arith.constant 0 : index
    %c4_36 = arith.constant 4 : index
    %79 = vector.load %arg10[%c0_35, %c4_36] : memref<512x128xbf16, #tpu.memory_space<vmem>>, vector<512x4xbf16>
    tpu.vector_store %arg10[%c0_35, %c4_36], %78 {strides = array<i32>} : memref<512x128xbf16, #tpu.memory_space<vmem>>, vector<512x4xbf16>,
    %80 = vector.extract_strided_slice %71 {offsets = [0, 0, 2, 0], sizes = [2, 16, 16, 4], strides = [1, 1, 1, 1]} : vector<2x18x18x4xf32> to vector<2x16x16x4xf32>
    %81 = vector.shape_cast %80 : vector<2x16x16x4xf32> to vector<512x4xf32>
    %82 = arith.truncf %81 : vector<512x4xf32> to vector<512x4xbf16>
    %c0_37 = arith.constant 0 : index
    %c8_38 = arith.constant 8 : index
    %83 = vector.load %arg10[%c0_37, %c8_38] : memref<512x128xbf16, #tpu.memory_space<vmem>>, vector<512x4xbf16>
    tpu.vector_store %arg10[%c0_37, %c8_38], %82 {strides = array<i32>} : memref<512x128xbf16, #tpu.memory_space<vmem>>, vector<512x4xbf16>,
    %84 = vector.extract_strided_slice %71 {offsets = [0, 1, 0, 0], sizes = [2, 16, 16, 4], strides = [1, 1, 1, 1]} : vector<2x18x18x4xf32> to vector<2x16x16x4xf32>
    %85 = vector.shape_cast %84 : vector<2x16x16x4xf32> to vector<512x4xf32>
    %86 = arith.truncf %85 : vector<512x4xf32> to vector<512x4xbf16>
    %c0_39 = arith.constant 0 : index
    %c12_40 = arith.constant 12 : index
    %87 = vector.load %arg10[%c0_39, %c12_40] : memref<512x128xbf16, #tpu.memory_space<vmem>>, vector<512x4xbf16>
    tpu.vector_store %arg10[%c0_39, %c12_40], %86 {strides = array<i32>} : memref<512x128xbf16, #tpu.memory_space<vmem>>, vector<512x4xbf16>,
    %88 = vector.extract_strided_slice %71 {offsets = [0, 1, 1, 0], sizes = [2, 16, 16, 4], strides = [1, 1, 1, 1]} : vector<2x18x18x4xf32> to vector<2x16x16x4xf32>
    %89 = vector.shape_cast %88 : vector<2x16x16x4xf32> to vector<512x4xf32>
    %90 = arith.truncf %89 : vector<512x4xf32> to vector<512x4xbf16>
    %c0_41 = arith.constant 0 : index
    %c16_42 = arith.constant 16 : index
    %91 = vector.load %arg10[%c0_41, %c16_42] : memref<512x128xbf16, #tpu.memory_space<vmem>>, vector<512x4xbf16>
    tpu.vector_store %arg10[%c0_41, %c16_42], %90 {strides = array<i32>} : memref<512x128xbf16, #tpu.memory_space<vmem>>, vector<512x4xbf16>,
    %92 = vector.extract_strided_slice %71 {offsets = [0, 1, 2, 0], sizes = [2, 16, 16, 4], strides = [1, 1, 1, 1]} : vector<2x18x18x4xf32> to vector<2x16x16x4xf32>
    %93 = vector.shape_cast %92 : vector<2x16x16x4xf32> to vector<512x4xf32>
    %94 = arith.truncf %93 : vector<512x4xf32> to vector<512x4xbf16>
    %c0_43 = arith.constant 0 : index
    %c20_44 = arith.constant 20 : index
    %95 = vector.load %arg10[%c0_43, %c20_44] : memref<512x128xbf16, #tpu.memory_space<vmem>>, vector<512x4xbf16>
    tpu.vector_store %arg10[%c0_43, %c20_44], %94 {strides = array<i32>} : memref<512x128xbf16, #tpu.memory_space<vmem>>, vector<512x4xbf16>,
    %96 = vector.extract_strided_slice %71 {offsets = [0, 2, 0, 0], sizes = [2, 16, 16, 4], strides = [1, 1, 1, 1]} : vector<2x18x18x4xf32> to vector<2x16x16x4xf32>
    %97 = vector.shape_cast %96 : vector<2x16x16x4xf32> to vector<512x4xf32>
    %98 = arith.truncf %97 : vector<512x4xf32> to vector<512x4xbf16>
    %c0_45 = arith.constant 0 : index
    %c24_46 = arith.constant 24 : index
    %99 = vector.load %arg10[%c0_45, %c24_46] : memref<512x128xbf16, #tpu.memory_space<vmem>>, vector<512x4xbf16>
    tpu.vector_store %arg10[%c0_45, %c24_46], %98 {strides = array<i32>} : memref<512x128xbf16, #tpu.memory_space<vmem>>, vector<512x4xbf16>,
    %100 = vector.extract_strided_slice %71 {offsets = [0, 2, 1, 0], sizes = [2, 16, 16, 4], strides = [1, 1, 1, 1]} : vector<2x18x18x4xf32> to vector<2x16x16x4xf32>
    %101 = vector.shape_cast %100 : vector<2x16x16x4xf32> to vector<512x4xf32>
    %102 = arith.truncf %101 : vector<512x4xf32> to vector<512x4xbf16>
    %c0_47 = arith.constant 0 : index
    %c28_48 = arith.constant 28 : index
    %103 = vector.load %arg10[%c0_47, %c28_48] : memref<512x128xbf16, #tpu.memory_space<vmem>>, vector<512x4xbf16>
    tpu.vector_store %arg10[%c0_47, %c28_48], %102 {strides = array<i32>} : memref<512x128xbf16, #tpu.memory_space<vmem>>, vector<512x4xbf16>,
    %104 = vector.extract_strided_slice %71 {offsets = [0, 2, 2, 0], sizes = [2, 16, 16, 4], strides = [1, 1, 1, 1]} : vector<2x18x18x4xf32> to vector<2x16x16x4xf32>
    %105 = vector.shape_cast %104 : vector<2x16x16x4xf32> to vector<512x4xf32>
    %106 = arith.truncf %105 : vector<512x4xf32> to vector<512x4xbf16>
    %c0_49 = arith.constant 0 : index
    %c32_50 = arith.constant 32 : index
    %107 = vector.load %arg10[%c0_49, %c32_50] : memref<512x128xbf16, #tpu.memory_space<vmem>>, vector<512x4xbf16>
    tpu.vector_store %arg10[%c0_49, %c32_50], %106 {strides = array<i32>} : memref<512x128xbf16, #tpu.memory_space<vmem>>, vector<512x4xbf16>,
    %c0_51 = arith.constant 0 : index
    %c0_52 = arith.constant 0 : index
    %108 = vector.load %arg10[%c0_51, %c0_52] : memref<512x128xbf16, #tpu.memory_space<vmem>>, vector<512x128xbf16>
    %c0_53 = arith.constant 0 : index
    %c0_54 = arith.constant 0 : index
    %109 = vector.load %arg6[%c0_53, %c0_54] : memref<128x128xbf16, #tpu.memory_space<vmem>>, vector<128x128xbf16>
    %cst_55 = arith.constant dense<0.000000e+00> : vector<512x128xf32>
    %110 = tpu.matmul %108, %109, %cst_55 {dimension_numbers = #tpu.dot_dimension_numbers<[1], [0], [0], [1], [0, 0, 1, 1], [], []>} : vector<512x128xbf16>, vector<128x128xbf16>, vector<512x128xf32> -> vector<512x128xf32>
    %cst_56 = arith.constant dense<0.000000e+00> : vector<128xf32>
    %111 = vector.multi_reduction <add>, %110, %cst_56 [0] : vector<512x128xf32> to vector<128xf32>
    %112 = vector.shape_cast %111 : vector<128xf32> to vector<1x128xf32>
    %cst_57 = arith.constant 5.120000e+02 : f32
    %113 = vector.broadcast %cst_57 : f32 to vector<1x128xf32>
    %114 = arith.divf %112, %113 : vector<1x128xf32>
    %115 = arith.mulf %110, %110 : vector<512x128xf32>
    %cst_58 = arith.constant dense<0.000000e+00> : vector<128xf32>
    %116 = vector.multi_reduction <add>, %115, %cst_58 [0] : vector<512x128xf32> to vector<128xf32>
    %117 = vector.shape_cast %116 : vector<128xf32> to vector<1x128xf32>
    %cst_59 = arith.constant 5.120000e+02 : f32
    %118 = vector.broadcast %cst_59 : f32 to vector<1x128xf32>
    %119 = arith.divf %117, %118 : vector<1x128xf32>
    %120 = arith.mulf %114, %114 : vector<1x128xf32>
    %121 = arith.subf %119, %120 : vector<1x128xf32>
    %cst_60 = arith.constant 0.000000e+00 : f32
    %122 = vector.broadcast %cst_60 : f32 to vector<1x128xf32>
    %123 = arith.maximumf %121, %122 : vector<1x128xf32>
    %cst_61 = arith.constant 9.99999974E-6 : f32
    %124 = vector.broadcast %cst_61 : f32 to vector<1x128xf32>
    %125 = arith.addf %123, %124 : vector<1x128xf32>
    %126 = math.rsqrt %125 : vector<1x128xf32>
    %c0_62 = arith.constant 0 : index
    %c0_63 = arith.constant 0 : index
    %127 = vector.load %arg7[%c0_62, %c0_63] : memref<1x128xf32, #tpu.memory_space<vmem>>, vector<1x128xf32>
    %128 = arith.mulf %126, %127 : vector<1x128xf32>
    %129 = vector.broadcast %114 : vector<1x128xf32> to vector<512x128xf32>
    %130 = arith.subf %110, %129 : vector<512x128xf32>
    %131 = vector.broadcast %128 : vector<1x128xf32> to vector<512x128xf32>
    %132 = arith.mulf %130, %131 : vector<512x128xf32>
    %c0_64 = arith.constant 0 : index
    %c0_65 = arith.constant 0 : index
    %133 = vector.load %arg8[%c0_64, %c0_65] : memref<1x128xf32, #tpu.memory_space<vmem>>, vector<1x128xf32>
    %134 = vector.broadcast %133 : vector<1x128xf32> to vector<512x128xf32>
    %135 = arith.addf %132, %134 : vector<512x128xf32>
    %c0_66 = arith.constant 0 : index
    %c0_67 = arith.constant 0 : index
    %c0_68 = arith.constant 0 : index
    %c0_69 = arith.constant 0 : index
    %136 = vector.load %arg0[%c0_66, %c0_67, %c0_68, %c0_69] : memref<2x16x16x128xf32, #tpu.memory_space<vmem>>, vector<2x16x16x128xf32>
    %137 = vector.shape_cast %135 : vector<512x128xf32> to vector<2x16x16x128xf32>
    %138 = arith.addf %136, %137 : vector<2x16x16x128xf32>
    %c0_70 = arith.constant 0 : index
    %c0_71 = arith.constant 0 : index
    %c0_72 = arith.constant 0 : index
    %c0_73 = arith.constant 0 : index
    %139 = vector.load %arg9[%c0_70, %c0_71, %c0_72, %c0_73] : memref<2x16x16x128xf32, #tpu.memory_space<vmem>>, vector<2x16x16x128xf32>
    tpu.vector_store %arg9[%c0_70, %c0_71, %c0_72, %c0_73], %138 {strides = array<i32>} : memref<2x16x16x128xf32, #tpu.memory_space<vmem>>, vector<2x16x16x128xf32>,
    return
  }
}

</mosaic_0001>

<llo_original>
// kernel: srgan_block.1
$region0: #{srgan_block.1}
  #allocation0 [shape = 'u32[]', space=smem, size = 0x4, offset = 0x4, fixed_abs, tag = 'smem constant byte address 0x4 - core index']
  #allocation1 [shape = 'u32[144,128]{1,0:T(1,128)}', space=vmem, size = 0x12000, scoped, tag = 'internal scratch']
  #allocation2 [shape = 'bf16[512,128]{1,0:T(16,128)(2,1)}', space=vmem, size = 0x20000, scoped, tag = 'scratch operand']
  #allocation3 [shape = 'f32[1,1]{1,0:T(1,128)S(6)}', space=smem, size = 0x200, scoped, tag = 'scoped memory for srgan_block.1']
  %s0 = inlined_call_operand.vmem [shape: f32[2,16,16,128], index: 0, kind: input, shape index: {}, may-alias: {0,9}]
  %s1 = inlined_call_operand.vmem [shape: bf16[2,18,18,4], index: 1, kind: input, shape index: {}]
  %s2 = inlined_call_operand.vmem [shape: bf16[128,128], index: 2, kind: input, shape index: {}]
  %s3 = inlined_call_operand.vmem [shape: f32[1,128], index: 3, kind: input, shape index: {}]
  %s4 = inlined_call_operand.vmem [shape: f32[1,128], index: 4, kind: input, shape index: {}]
  %s5 = inlined_call_operand.<no memory space> [shape: f32[1,1], index: 5, kind: input, shape index: {}]
  %s6 = inlined_call_operand.vmem [shape: bf16[128,128], index: 6, kind: input, shape index: {}]
  %s7 = inlined_call_operand.vmem [shape: f32[1,128], index: 7, kind: input, shape index: {}]
  %s8 = inlined_call_operand.vmem [shape: f32[1,128], index: 8, kind: input, shape index: {}]
  %s9 = inlined_call_operand.vmem [shape: f32[2,16,16,128], index: 9, kind: output, shape index: {}, may-alias: {0,9}]
  %s10 = sld [smem:[#allocation0]]
  $region46: #{srgan_block.1} parent=0
    _
  %s12 = ssub.s32 1, %s10
  %s13 = scalar_select 0, %s12, %s10
  %14 = sst [smem:[#allocation3]] %s5
  // Predicated region
  $region2: #{srgan_block.1} parent=0 // pred_check
    _
  $region3: #{srgan_block.1} parent=0 // pred_check_branch
    %16 = sbr.rel (0) target = $region5
  $region4: #{srgan_block.1} parent=0 // pred_region
    _
  $region5: #{srgan_block.1} parent=0 // pred_fallthru
    _
  // Predicated region
  $region6: #{srgan_block.1} parent=0 // pred_check
    _
  $region7: #{srgan_block.1} parent=0 // pred_check_branch
    %18 = sbr.rel (0) target = $region9
  $region8: #{srgan_block.1} parent=0 // pred_region
    _
  $region9: #{srgan_block.1} parent=0 // pred_fallthru
    _
  // Predicated region
  $region10: #{srgan_block.1} parent=0 // pred_check
    _
  $region11: #{srgan_block.1} parent=0 // pred_check_branch
    %20 = sbr.rel (0) target = $region13
  $region12: #{srgan_block.1} parent=0 // pred_region
    _
  $region13: #{srgan_block.1} parent=0 // pred_fallthru
    _
  // Predicated region
  $region14: #{srgan_block.1} parent=0 // pred_check
    _
  $region15: #{srgan_block.1} parent=0 // pred_check_branch
    %22 = sbr.rel (0) target = $region17
  $region16: #{srgan_block.1} parent=0 // pred_region
    _
  $region17: #{srgan_block.1} parent=0 // pred_fallthru
    _
  // Predicated region
  $region18: #{srgan_block.1} parent=0 // pred_check
    _
  $region19: #{srgan_block.1} parent=0 // pred_check_branch
    %24 = sbr.rel (0) target = $region21
  $region20: #{srgan_block.1} parent=0 // pred_region
    _
  $region21: #{srgan_block.1} parent=0 // pred_fallthru
    _
  // Predicated region
  $region22: #{srgan_block.1} parent=0 // pred_check
    _
  $region23: #{srgan_block.1} parent=0 // pred_check_branch
    %26 = sbr.rel (0) target = $region25
  $region24: #{srgan_block.1} parent=0 // pred_region
    _
  $region25: #{srgan_block.1} parent=0 // pred_fallthru
    _
  // Predicated region
  $region26: #{srgan_block.1} parent=0 // pred_check
    _
  $region27: #{srgan_block.1} parent=0 // pred_check_branch
    %28 = sbr.rel (0) target = $region29
  $region28: #{srgan_block.1} parent=0 // pred_region
    _
  $region29: #{srgan_block.1} parent=0 // pred_fallthru
    _
  // Predicated region
  $region30: #{srgan_block.1} parent=0 // pred_check
    _
  $region31: #{srgan_block.1} parent=0 // pred_check_branch
    %30 = sbr.rel (0) target = $region33
  $region32: #{srgan_block.1} parent=0 // pred_region
    _
  $region33: #{srgan_block.1} parent=0 // pred_fallthru
    _
  // Predicated region
  $region34: #{srgan_block.1} parent=0 // pred_check
    _
  $region35: #{srgan_block.1} parent=0 // pred_check_branch
    %32 = sbr.rel (0) target = $region37
  $region36: #{srgan_block.1} parent=0 // pred_region
    _
  $region37: #{srgan_block.1} parent=0 // pred_fallthru
    _
  %34 = vst [vmem:[#allocation2] sm:$0xff] 0
  %35 = vst [vmem:[#allocation2 + $0x8] sm:$0xff] 0
  %36 = vst [vmem:[#allocation2 + $0x10] sm:$0xff] 0
  %37 = vst [vmem:[#allocation2 + $0x18] sm:$0xff] 0
  %38 = vst [vmem:[#allocation2 + $0x20] sm:$0xff] 0
  %39 = vst [vmem:[#allocation2 + $0x28] sm:$0xff] 0
  %40 = vst [vmem:[#allocation2 + $0x30] sm:$0xff] 0
  %41 = vst [vmem:[#allocation2 + $0x38] sm:$0xff] 0
  %42 = vst [vmem:[#allocation2 + $0x40] sm:$0xff] 0
  %43 = vst [vmem:[#allocation2 + $0x48] sm:$0xff] 0
  %44 = vst [vmem:[#allocation2 + $0x50] sm:$0xff] 0
  %45 = vst [vmem:[#allocation2 + $0x58] sm:$0xff] 0
  %46 = vst [vmem:[#allocation2 + $0x60] sm:$0xff] 0
  %47 = vst [vmem:[#allocation2 + $0x68] sm:$0xff] 0
  %48 = vst [vmem:[#allocation2 + $0x70] sm:$0xff] 0
  %49 = vst [vmem:[#allocation2 + $0x78] sm:$0xff] 0
  %50 = vst [vmem:[#allocation2 + $0x80] sm:$0xff] 0
  %51 = vst [vmem:[#allocation2 + $0x88] sm:$0xff] 0
  %52 = vst [vmem:[#allocation2 + $0x90] sm:$0xff] 0
  %53 = vst [vmem:[#allocation2 + $0x98] sm:$0xff] 0
  %54 = vst [vmem:[#allocation2 + $0xa0] sm:$0xff] 0
  %55 = vst [vmem:[#allocation2 + $0xa8] sm:$0xff] 0
  %56 = vst [vmem:[#allocation2 + $0xb0] sm:$0xff] 0
  %57 = vst [vmem:[#allocation2 + $0xb8] sm:$0xff] 0
  %58 = vst [vmem:[#allocation2 + $0xc0] sm:$0xff] 0
  %59 = vst [vmem:[#allocation2 + $0xc8] sm:$0xff] 0
  %60 = vst [vmem:[#allocation2 + $0xd0] sm:$0xff] 0
  %61 = vst [vmem:[#allocation2 + $0xd8] sm:$0xff] 0
  %62 = vst [vmem:[#allocation2 + $0xe0] sm:$0xff] 0
  %63 = vst [vmem:[#allocation2 + $0xe8] sm:$0xff] 0
  %64 = vst [vmem:[#allocation2 + $0xf0] sm:$0xff] 0
  %65 = vst [vmem:[#allocation2 + $0xf8] sm:$0xff] 0
  %v66 = vld [vmem:[%s1] sm:$0xf]
  %v67 = vld [vmem:[%s1 + $0x4] sm:$0xf]
  %v68 = vld [vmem:[%s1 + $0x8] sm:$0x1]
  %v69 = vld [vmem:[%s1 + $0xc] sm:$0xf]
  %v70 = vld [vmem:[%s1 + $0x10] sm:$0xf]
  %v71 = vld [vmem:[%s1 + $0x14] sm:$0x1]
  %v72 = vld [vmem:[%s1 + $0x18] sm:$0xf]
  %v73 = vld [vmem:[%s1 + $0x1c] sm:$0xf]
  %v74 = vld [vmem:[%s1 + $0x20] sm:$0x1]
  %v75 = vld [vmem:[%s1 + $0x24] sm:$0xf]
  %v76 = vld [vmem:[%s1 + $0x28] sm:$0xf]
  %v77 = vld [vmem:[%s1 + $0x2c] sm:$0x1]
  %v78 = vld [vmem:[%s1 + $0x30] sm:$0xf]
  %v79 = vld [vmem:[%s1 + $0x34] sm:$0xf]
  %v80 = vld [vmem:[%s1 + $0x38] sm:$0x1]
  %v81 = vld [vmem:[%s1 + $0x3c] sm:$0xf]
  %v82 = vld [vmem:[%s1 + $0x40] sm:$0xf]
  %v83 = vld [vmem:[%s1 + $0x44] sm:$0x1]
  %v84 = vld [vmem:[%s1 + $0x48] sm:$0xf]
  %v85 = vld [vmem:[%s1 + $0x4c] sm:$0xf]
  %v86 = vld [vmem:[%s1 + $0x50] sm:$0x1]
  %v87 = vld [vmem:[%s1 + $0x54] sm:$0xf]
  %v88 = vld [vmem:[%s1 + $0x58] sm:$0xf]
  %v89 = vld [vmem:[%s1 + $0x5c] sm:$0x1]
  %v90 = vld [vmem:[%s1 + $0x60] sm:$0xf]
  %v91 = vld [vmem:[%s1 + $0x64] sm:$0xf]
  %v92 = vld [vmem:[%s1 + $0x68] sm:$0x1]
  %v93 = vld [vmem:[%s1 + $0x6c] sm:$0xf]
  %v94 = vld [vmem:[%s1 + $0x70] sm:$0xf]
  %v95 = vld [vmem:[%s1 + $0x74] sm:$0x1]
  %v96 = vld [vmem:[%s1 + $0x78] sm:$0xf]
  %v97 = vld [vmem:[%s1 + $0x7c] sm:$0xf]
  %v98 = vld [vmem:[%s1 + $0x80] sm:$0x1]
  %v99 = vld [vmem:[%s1 + $0x84] sm:$0xf]
  %v100 = vld [vmem:[%s1 + $0x88] sm:$0xf]
  %v101 = vld [vmem:[%s1 + $0x8c] sm:$0x1]
  %v102 = vld [vmem:[%s1 + $0x90] sm:$0xf]
  %v103 = vld [vmem:[%s1 + $0x94] sm:$0xf]
  %v104 = vld [vmem:[%s1 + $0x98] sm:$0x1]
  %v105 = vld [vmem:[%s1 + $0x9c] sm:$0xf]
  %v106 = vld [vmem:[%s1 + $0xa0] sm:$0xf]
  %v107 = vld [vmem:[%s1 + $0xa4] sm:$0x1]
  %v108 = vld [vmem:[%s1 + $0xa8] sm:$0xf]
  %v109 = vld [vmem:[%s1 + $0xac] sm:$0xf]
  %v110 = vld [vmem:[%s1 + $0xb0] sm:$0x1]
  %v111 = vld [vmem:[%s1 + $0xb4] sm:$0xf]
  %v112 = vld [vmem:[%s1 + $0xb8] sm:$0xf]
  %v113 = vld [vmem:[%s1 + $0xbc] sm:$0x1]
  %v114 = vld [vmem:[%s1 + $0xc0] sm:$0xf]
  %v115 = vld [vmem:[%s1 + $0xc4] sm:$0xf]
  %v116 = vld [vmem:[%s1 + $0xc8] sm:$0x1]
  %v117 = vld [vmem:[%s1 + $0xcc] sm:$0xf]
  %v118 = vld [vmem:[%s1 + $0xd0] sm:$0xf]
  %v119 = vld [vmem:[%s1 + $0xd4] sm:$0x1]
  %v120 = vld [vmem:[%s1 + $0xd8] sm:$0xf]
  %v121 = vld [vmem:[%s1 + $0xdc] sm:$0xf]
  %v122 = vld [vmem:[%s1 + $0xe0] sm:$0x1]
  %v123 = vld [vmem:[%s1 + $0xe4] sm:$0xf]
  %v124 = vld [vmem:[%s1 + $0xe8] sm:$0xf]
  %v125 = vld [vmem:[%s1 + $0xec] sm:$0x1]
  %v126 = vld [vmem:[%s1 + $0xf0] sm:$0xf]
  %v127 = vld [vmem:[%s1 + $0xf4] sm:$0xf]
  %v128 = vld [vmem:[%s1 + $0xf8] sm:$0x1]
  %v129 = vld [vmem:[%s1 + $0xfc] sm:$0xf]
  %v130 = vld [vmem:[%s1 + $0x100] sm:$0xf]
  %v131 = vld [vmem:[%s1 + $0x104] sm:$0x1]
  %v132 = vld [vmem:[%s1 + $0x108] sm:$0xf]
  %v133 = vld [vmem:[%s1 + $0x10c] sm:$0xf]
  %v134 = vld [vmem:[%s1 + $0x110] sm:$0x1]
  %v135 = vld [vmem:[%s1 + $0x114] sm:$0xf]
  %v136 = vld [vmem:[%s1 + $0x118] sm:$0xf]
  %v137 = vld [vmem:[%s1 + $0x11c] sm:$0x1]
  %v138 = vld [vmem:[%s1 + $0x120] sm:$0xf]
  %v139 = vld [vmem:[%s1 + $0x124] sm:$0xf]
  %v140 = vld [vmem:[%s1 + $0x128] sm:$0x1]
  %v141 = vld [vmem:[%s1 + $0x12c] sm:$0xf]
  %v142 = vld [vmem:[%s1 + $0x130] sm:$0xf]
  %v143 = vld [vmem:[%s1 + $0x134] sm:$0x1]
  %v144 = vld [vmem:[%s1 + $0x138] sm:$0xf]
  %v145 = vld [vmem:[%s1 + $0x13c] sm:$0xf]
  %v146 = vld [vmem:[%s1 + $0x140] sm:$0x1]
  %v147 = vld [vmem:[%s1 + $0x144] sm:$0xf]
  %v148 = vld [vmem:[%s1 + $0x148] sm:$0xf]
  %v149 = vld [vmem:[%s1 + $0x14c] sm:$0x1]
  %v150 = vld [vmem:[%s1 + $0x150] sm:$0xf]
  %v151 = vld [vmem:[%s1 + $0x154] sm:$0xf]
  %v152 = vld [vmem:[%s1 + $0x158] sm:$0x1]
  %v153 = vld [vmem:[%s1 + $0x15c] sm:$0xf]
  %v154 = vld [vmem:[%s1 + $0x160] sm:$0xf]
  %v155 = vld [vmem:[%s1 + $0x164] sm:$0x1]
  %v156 = vld [vmem:[%s1 + $0x168] sm:$0xf]
  %v157 = vld [vmem:[%s1 + $0x16c] sm:$0xf]
  %v158 = vld [vmem:[%s1 + $0x170] sm:$0x1]
  %v159 = vld [vmem:[%s1 + $0x174] sm:$0xf]
  %v160 = vld [vmem:[%s1 + $0x178] sm:$0xf]
  %v161 = vld [vmem:[%s1 + $0x17c] sm:$0x1]
  %v162 = vld [vmem:[%s1 + $0x180] sm:$0xf]
  %v163 = vld [vmem:[%s1 + $0x184] sm:$0xf]
  %v164 = vld [vmem:[%s1 + $0x188] sm:$0x1]
  %v165 = vld [vmem:[%s1 + $0x18c] sm:$0xf]
  %v166 = vld [vmem:[%s1 + $0x190] sm:$0xf]
  %v167 = vld [vmem:[%s1 + $0x194] sm:$0x1]
  %v168 = vld [vmem:[%s1 + $0x198] sm:$0xf]
  %v169 = vld [vmem:[%s1 + $0x19c] sm:$0xf]
  %v170 = vld [vmem:[%s1 + $0x1a0] sm:$0x1]
  %v171 = vld [vmem:[%s1 + $0x1a4] sm:$0xf]
  %v172 = vld [vmem:[%s1 + $0x1a8] sm:$0xf]
  %v173 = vld [vmem:[%s1 + $0x1ac] sm:$0x1]
  %v238 = vunpack.c.l.b16 %v66
  %v239 = vunpack.c.l.b16 %v67
  %v240 = vunpack.c.l.b16 %v69
  %v241 = vunpack.c.l.b16 %v70
  %v242 = vunpack.c.l.b16 %v72
  %v243 = vunpack.c.l.b16 %v73
  %v244 = vunpack.c.l.b16 %v75
  %v245 = vunpack.c.l.b16 %v76
  %v246 = vunpack.c.l.b16 %v78
  %v247 = vunpack.c.l.b16 %v79
  %v248 = vunpack.c.l.b16 %v81
  %v249 = vunpack.c.l.b16 %v82
  %v250 = vunpack.c.l.b16 %v84
  %v251 = vunpack.c.l.b16 %v85
  %v252 = vunpack.c.l.b16 %v87
  %v253 = vunpack.c.l.b16 %v88
  %v254 = vunpack.c.l.b16 %v90
  %v255 = vunpack.c.l.b16 %v91
  %v256 = vunpack.c.l.b16 %v93
  %v257 = vunpack.c.l.b16 %v94
  %v258 = vunpack.c.l.b16 %v96
  %v259 = vunpack.c.l.b16 %v97
  %v260 = vunpack.c.l.b16 %v99
  %v261 = vunpack.c.l.b16 %v100
  %v262 = vunpack.c.l.b16 %v102
  %v263 = vunpack.c.l.b16 %v103
  %v264 = vunpack.c.l.b16 %v105
  %v265 = vunpack.c.l.b16 %v106
  %v266 = vunpack.c.l.b16 %v108
  %v267 = vunpack.c.l.b16 %v109
  %v268 = vunpack.c.l.b16 %v111
  %v269 = vunpack.c.l.b16 %v112
  %v270 = vunpack.c.l.b16 %v120
  %v271 = vunpack.c.l.b16 %v121
  %v272 = vunpack.c.l.b16 %v123
  %v273 = vunpack.c.l.b16 %v124
  %v274 = vunpack.c.l.b16 %v126
  %v275 = vunpack.c.l.b16 %v127
  %v276 = vunpack.c.l.b16 %v129
  %v277 = vunpack.c.l.b16 %v130
  %v278 = vunpack.c.l.b16 %v132
  %v279 = vunpack.c.l.b16 %v133
  %v280 = vunpack.c.l.b16 %v135
  %v281 = vunpack.c.l.b16 %v136
  %v282 = vunpack.c.l.b16 %v138
  %v283 = vunpack.c.l.b16 %v139
  %v284 = vunpack.c.l.b16 %v141
  %v285 = vunpack.c.l.b16 %v142
  %v286 = vunpack.c.l.b16 %v144
  %v287 = vunpack.c.l.b16 %v145
  %v288 = vunpack.c.l.b16 %v147
  %v289 = vunpack.c.l.b16 %v148
  %v290 = vunpack.c.l.b16 %v150
  %v291 = vunpack.c.l.b16 %v151
  %v292 = vunpack.c.l.b16 %v153
  %v293 = vunpack.c.l.b16 %v154
  %v294 = vunpack.c.l.b16 %v156
  %v295 = vunpack.c.l.b16 %v157
  %v296 = vunpack.c.l.b16 %v159
  %v297 = vunpack.c.l.b16 %v160
  %v298 = vunpack.c.l.b16 %v162
  %v299 = vunpack.c.l.b16 %v163
  %v300 = vunpack.c.l.b16 %v165
  %v301 = vunpack.c.l.b16 %v166
  %v302 = vpack.c.b16 %v239, %v238
  %v303 = vpack.c.b16 %v241, %v240
  %v304 = vpack.c.b16 %v243, %v242
  %v305 = vpack.c.b16 %v245, %v244
  %v306 = vpack.c.b16 %v247, %v246
  %v307 = vpack.c.b16 %v249, %v248
  %v308 = vpack.c.b16 %v251, %v250
  %v309 = vpack.c.b16 %v253, %v252
  %v310 = vpack.c.b16 %v255, %v254
  %v311 = vpack.c.b16 %v257, %v256
  %v312 = vpack.c.b16 %v259, %v258
  %v313 = vpack.c.b16 %v261, %v260
  %v314 = vpack.c.b16 %v263, %v262
  %v315 = vpack.c.b16 %v265, %v264
  %v316 = vpack.c.b16 %v267, %v266
  %v317 = vpack.c.b16 %v269, %v268
  %v318 = vpack.c.b16 %v271, %v270
  %v319 = vpack.c.b16 %v273, %v272
  %v320 = vpack.c.b16 %v275, %v274
  %v321 = vpack.c.b16 %v277, %v276
  %v322 = vpack.c.b16 %v279, %v278
  %v323 = vpack.c.b16 %v281, %v280
  %v324 = vpack.c.b16 %v283, %v282
  %v325 = vpack.c.b16 %v285, %v284
  %v326 = vpack.c.b16 %v287, %v286
  %v327 = vpack.c.b16 %v289, %v288
  %v328 = vpack.c.b16 %v291, %v290
  %v329 = vpack.c.b16 %v293, %v292
  %v330 = vpack.c.b16 %v295, %v294
  %v331 = vpack.c.b16 %v297, %v296
  %v332 = vpack.c.b16 %v299, %v298
  %v333 = vpack.c.b16 %v301, %v300
  %vm366 = vcmask 31744
  %367 = vst.msk [vmem:[#allocation2] sm:$0xff] %vm366, %v302
  %368 = vst.msk [vmem:[#allocation2 + $0x8] sm:$0xff] %vm366, %v303
  %369 = vst.msk [vmem:[#allocation2 + $0x10] sm:$0xff] %vm366, %v304
  %370 = vst.msk [vmem:[#allocation2 + $0x18] sm:$0xff] %vm366, %v305
  %371 = vst.msk [vmem:[#allocation2 + $0x20] sm:$0xff] %vm366, %v306
  %372 = vst.msk [vmem:[#allocation2 + $0x28] sm:$0xff] %vm366, %v307
  %373 = vst.msk [vmem:[#allocation2 + $0x30] sm:$0xff] %vm366, %v308
  %374 = vst.msk [vmem:[#allocation2 + $0x38] sm:$0xff] %vm366, %v309
  %375 = vst.msk [vmem:[#allocation2 + $0x40] sm:$0xff] %vm366, %v310
  %376 = vst.msk [vmem:[#allocation2 + $0x48] sm:$0xff] %vm366, %v311
  %377 = vst.msk [vmem:[#allocation2 + $0x50] sm:$0xff] %vm366, %v312
  %378 = vst.msk [vmem:[#allocation2 + $0x58] sm:$0xff] %vm366, %v313
  %379 = vst.msk [vmem:[#allocation2 + $0x60] sm:$0xff] %vm366, %v314
  %380 = vst.msk [vmem:[#allocation2 + $0x68] sm:$0xff] %vm366, %v315
  %381 = vst.msk [vmem:[#allocation2 + $0x70] sm:$0xff] %vm366, %v316
  %382 = vst.msk [vmem:[#allocation2 + $0x78] sm:$0xff] %vm366, %v317
  %383 = vst.msk [vmem:[#allocation2 + $0x80] sm:$0xff] %vm366, %v318
  %384 = vst.msk [vmem:[#allocation2 + $0x88] sm:$0xff] %vm366, %v319
  %385 = vst.msk [vmem:[#allocation2 + $0x90] sm:$0xff] %vm366, %v320
  %386 = vst.msk [vmem:[#allocation2 + $0x98] sm:$0xff] %vm366, %v321
  %387 = vst.msk [vmem:[#allocation2 + $0xa0] sm:$0xff] %vm366, %v322
  %388 = vst.msk [vmem:[#allocation2 + $0xa8] sm:$0xff] %vm366, %v323
  %389 = vst.msk [vmem:[#allocation2 + $0xb0] sm:$0xff] %vm366, %v324
  %390 = vst.msk [vmem:[#allocation2 + $0xb8] sm:$0xff] %vm366, %v325
  %391 = vst.msk [vmem:[#allocation2 + $0xc0] sm:$0xff] %vm366, %v326
  %392 = vst.msk [vmem:[#allocation2 + $0xc8] sm:$0xff] %vm366, %v327
  %393 = vst.msk [vmem:[#allocation2 + $0xd0] sm:$0xff] %vm366, %v328
  %394 = vst.msk [vmem:[#allocation2 + $0xd8] sm:$0xff] %vm366, %v329
  %395 = vst.msk [vmem:[#allocation2 + $0xe0] sm:$0xff] %vm366, %v330
  %396 = vst.msk [vmem:[#allocation2 + $0xe8] sm:$0xff] %vm366, %v331
  %397 = vst.msk [vmem:[#allocation2 + $0xf0] sm:$0xff] %vm366, %v332
  %398 = vst.msk [vmem:[#allocation2 + $0xf8] sm:$0xff] %vm366, %v333
  %vm399 = vsmask.f32 3328
  %vm400 = vsmask.f32 7440
  %vm401 = vmor %vm399, %vm400
  %v403 = vshrl.u32 %v66, 16
  %v405 = vrot.slane %v403, 4
  %v406 = vshll.u32 %v66, 16
  %v408 = vrot.slane %v406, 5
  %v409 = vor.u32 %v405, %v408
  %v410 = vrot.slane %v409, 4
  %v412 = vshll.u32 %v67, 16
  %v414 = vrot.slane %v412, 5
  %v415 = vsel %vm401, %v410, %v414
  %v416 = vshrl.u32 %v67, 16
  %v418 = vrot.slane %v416, 4
  %v419 = vor.u32 %v418, %v414
  %v420 = vrot.slane %v419, 4
  %v422 = vshll.u32 %v68, 16
  %v424 = vrot.slane %v422, 5
  %v425 = vsel %vm401, %v420, %v424
  %v427 = vshrl.u32 %v69, 16
  %v429 = vrot.slane %v427, 4
  %v430 = vshll.u32 %v69, 16
  %v432 = vrot.slane %v430, 5
  %v433 = vor.u32 %v429, %v432
  %v434 = vrot.slane %v433, 4
  %v436 = vshll.u32 %v70, 16
  %v438 = vrot.slane %v436, 5
  %v439 = vsel %vm401, %v434, %v438
  %v440 = vshrl.u32 %v70, 16
  %v442 = vrot.slane %v440, 4
  %v443 = vor.u32 %v442, %v438
  %v444 = vrot.slane %v443, 4
  %v446 = vshll.u32 %v71, 16
  %v448 = vrot.slane %v446, 5
  %v449 = vsel %vm401, %v444, %v448
  %v451 = vshrl.u32 %v72, 16
  %v453 = vrot.slane %v451, 4
  %v454 = vshll.u32 %v72, 16
  %v456 = vrot.slane %v454, 5
  %v457 = vor.u32 %v453, %v456
  %v458 = vrot.slane %v457, 4
  %v460 = vshll.u32 %v73, 16
  %v462 = vrot.slane %v460, 5
  %v463 = vsel %vm401, %v458, %v462
  %v464 = vshrl.u32 %v73, 16
  %v466 = vrot.slane %v464, 4
  %v467 = vor.u32 %v466, %v462
  %v468 = vrot.slane %v467, 4
  %v470 = vshll.u32 %v74, 16
  %v472 = vrot.slane %v470, 5
  %v473 = vsel %vm401, %v468, %v472
  %v475 = vshrl.u32 %v75, 16
  %v477 = vrot.slane %v475, 4
  %v478 = vshll.u32 %v75, 16
  %v480 = vrot.slane %v478, 5
  %v481 = vor.u32 %v477, %v480
  %v482 = vrot.slane %v481, 4
  %v484 = vshll.u32 %v76, 16
  %v486 = vrot.slane %v484, 5
  %v487 = vsel %vm401, %v482, %v486
  %v488 = vshrl.u32 %v76, 16
  %v490 = vrot.slane %v488, 4
  %v491 = vor.u32 %v490, %v486
  %v492 = vrot.slane %v491, 4
  %v494 = vshll.u32 %v77, 16
  %v496 = vrot.slane %v494, 5
  %v497 = vsel %vm401, %v492, %v496
  %v499 = vshrl.u32 %v78, 16
  %v501 = vrot.slane %v499, 4
  %v502 = vshll.u32 %v78, 16
  %v504 = vrot.slane %v502, 5
  %v505 = vor.u32 %v501, %v504
  %v506 = vrot.slane %v505, 4
  %v508 = vshll.u32 %v79, 16
  %v510 = vrot.slane %v508, 5
  %v511 = vsel %vm401, %v506, %v510
  %v512 = vshrl.u32 %v79, 16
  %v514 = vrot.slane %v512, 4
  %v515 = vor.u32 %v514, %v510
  %v516 = vrot.slane %v515, 4
  %v518 = vshll.u32 %v80, 16
  %v520 = vrot.slane %v518, 5
  %v521 = vsel %vm401, %v516, %v520
  %v523 = vshrl.u32 %v81, 16
  %v525 = vrot.slane %v523, 4
  %v526 = vshll.u32 %v81, 16
  %v528 = vrot.slane %v526, 5
  %v529 = vor.u32 %v525, %v528
  %v530 = vrot.slane %v529, 4
  %v532 = vshll.u32 %v82, 16
  %v534 = vrot.slane %v532, 5
  %v535 = vsel %vm401, %v530, %v534
  %v536 = vshrl.u32 %v82, 16
  %v538 = vrot.slane %v536, 4
  %v539 = vor.u32 %v538, %v534
  %v540 = vrot.slane %v539, 4
  %v542 = vshll.u32 %v83, 16
  %v544 = vrot.slane %v542, 5
  %v545 = vsel %vm401, %v540, %v544
  %v547 = vshrl.u32 %v84, 16
  %v549 = vrot.slane %v547, 4
  %v550 = vshll.u32 %v84, 16
  %v552 = vrot.slane %v550, 5
  %v553 = vor.u32 %v549, %v552
  %v554 = vrot.slane %v553, 4
  %v556 = vshll.u32 %v85, 16
  %v558 = vrot.slane %v556, 5
  %v559 = vsel %vm401, %v554, %v558
  %v560 = vshrl.u32 %v85, 16
  %v562 = vrot.slane %v560, 4
  %v563 = vor.u32 %v562, %v558
  %v564 = vrot.slane %v563, 4
  %v566 = vshll.u32 %v86, 16
  %v568 = vrot.slane %v566, 5
  %v569 = vsel %vm401, %v564, %v568
  %v571 = vshrl.u32 %v87, 16
  %v573 = vrot.slane %v571, 4
  %v574 = vshll.u32 %v87, 16
  %v576 = vrot.slane %v574, 5
  %v577 = vor.u32 %v573, %v576
  %v578 = vrot.slane %v577, 4
  %v580 = vshll.u32 %v88, 16
  %v582 = vrot.slane %v580, 5
  %v583 = vsel %vm401, %v578, %v582
  %v584 = vshrl.u32 %v88, 16
  %v586 = vrot.slane %v584, 4
  %v587 = vor.u32 %v586, %v582
  %v588 = vrot.slane %v587, 4
  %v590 = vshll.u32 %v89, 16
  %v592 = vrot.slane %v590, 5
  %v593 = vsel %vm401, %v588, %v592
  %v595 = vshrl.u32 %v90, 16
  %v597 = vrot.slane %v595, 4
  %v598 = vshll.u32 %v90, 16
  %v600 = vrot.slane %v598, 5
  %v601 = vor.u32 %v597, %v600
  %v602 = vrot.slane %v601, 4
  %v604 = vshll.u32 %v91, 16
  %v606 = vrot.slane %v604, 5
  %v607 = vsel %vm401, %v602, %v606
  %v608 = vshrl.u32 %v91, 16
  %v610 = vrot.slane %v608, 4
  %v611 = vor.u32 %v610, %v606
  %v612 = vrot.slane %v611, 4
  %v614 = vshll.u32 %v92, 16
  %v616 = vrot.slane %v614, 5
  %v617 = vsel %vm401, %v612, %v616
  %v619 = vshrl.u32 %v93, 16
  %v621 = vrot.slane %v619, 4
  %v622 = vshll.u32 %v93, 16
  %v624 = vrot.slane %v622, 5
  %v625 = vor.u32 %v621, %v624
  %v626 = vrot.slane %v625, 4
  %v628 = vshll.u32 %v94, 16
  %v630 = vrot.slane %v628, 5
  %v631 = vsel %vm401, %v626, %v630
  %v632 = vshrl.u32 %v94, 16
  %v634 = vrot.slane %v632, 4
  %v635 = vor.u32 %v634, %v630
  %v636 = vrot.slane %v635, 4
  %v638 = vshll.u32 %v95, 16
  %v640 = vrot.slane %v638, 5
  %v641 = vsel %vm401, %v636, %v640
  %v643 = vshrl.u32 %v96, 16
  %v645 = vrot.slane %v643, 4
  %v646 = vshll.u32 %v96, 16
  %v648 = vrot.slane %v646, 5
  %v649 = vor.u32 %v645, %v648
  %v650 = vrot.slane %v649, 4
  %v652 = vshll.u32 %v97, 16
  %v654 = vrot.slane %v652, 5
  %v655 = vsel %vm401, %v650, %v654
  %v656 = vshrl.u32 %v97, 16
  %v658 = vrot.slane %v656, 4
  %v659 = vor.u32 %v658, %v654
  %v660 = vrot.slane %v659, 4
  %v662 = vshll.u32 %v98, 16
  %v664 = vrot.slane %v662, 5
  %v665 = vsel %vm401, %v660, %v664
  %v667 = vshrl.u32 %v99, 16
  %v669 = vrot.slane %v667, 4
  %v670 = vshll.u32 %v99, 16
  %v672 = vrot.slane %v670, 5
  %v673 = vor.u32 %v669, %v672
  %v674 = vrot.slane %v673, 4
  %v676 = vshll.u32 %v100, 16
  %v678 = vrot.slane %v676, 5
  %v679 = vsel %vm401, %v674, %v678
  %v680 = vshrl.u32 %v100, 16
  %v682 = vrot.slane %v680, 4
  %v683 = vor.u32 %v682, %v678
  %v684 = vrot.slane %v683, 4
  %v686 = vshll.u32 %v101, 16
  %v688 = vrot.slane %v686, 5
  %v689 = vsel %vm401, %v684, %v688
  %v691 = vshrl.u32 %v102, 16
  %v693 = vrot.slane %v691, 4
  %v694 = vshll.u32 %v102, 16
  %v696 = vrot.slane %v694, 5
  %v697 = vor.u32 %v693, %v696
  %v698 = vrot.slane %v697, 4
  %v700 = vshll.u32 %v103, 16
  %v702 = vrot.slane %v700, 5
  %v703 = vsel %vm401, %v698, %v702
  %v704 = vshrl.u32 %v103, 16
  %v706 = vrot.slane %v704, 4
  %v707 = vor.u32 %v706, %v702
  %v708 = vrot.slane %v707, 4
  %v710 = vshll.u32 %v104, 16
  %v712 = vrot.slane %v710, 5
  %v713 = vsel %vm401, %v708, %v712
  %v715 = vshrl.u32 %v105, 16
  %v717 = vrot.slane %v715, 4
  %v718 = vshll.u32 %v105, 16
  %v720 = vrot.slane %v718, 5
  %v721 = vor.u32 %v717, %v720
  %v722 = vrot.slane %v721, 4
  %v724 = vshll.u32 %v106, 16
  %v726 = vrot.slane %v724, 5
  %v727 = vsel %vm401, %v722, %v726
  %v728 = vshrl.u32 %v106, 16
  %v730 = vrot.slane %v728, 4
  %v731 = vor.u32 %v730, %v726
  %v732 = vrot.slane %v731, 4
  %v734 = vshll.u32 %v107, 16
  %v736 = vrot.slane %v734, 5
  %v737 = vsel %vm401, %v732, %v736
  %v739 = vshrl.u32 %v108, 16
  %v741 = vrot.slane %v739, 4
  %v742 = vshll.u32 %v108, 16
  %v744 = vrot.slane %v742, 5
  %v745 = vor.u32 %v741, %v744
  %v746 = vrot.slane %v745, 4
  %v748 = vshll.u32 %v109, 16
  %v750 = vrot.slane %v748, 5
  %v751 = vsel %vm401, %v746, %v750
  %v752 = vshrl.u32 %v109, 16
  %v754 = vrot.slane %v752, 4
  %v755 = vor.u32 %v754, %v750
  %v756 = vrot.slane %v755, 4
  %v758 = vshll.u32 %v110, 16
  %v760 = vrot.slane %v758, 5
  %v761 = vsel %vm401, %v756, %v760
  %v763 = vshrl.u32 %v111, 16
  %v765 = vrot.slane %v763, 4
  %v766 = vshll.u32 %v111, 16
  %v768 = vrot.slane %v766, 5
  %v769 = vor.u32 %v765, %v768
  %v770 = vrot.slane %v769, 4
  %v772 = vshll.u32 %v112, 16
  %v774 = vrot.slane %v772, 5
  %v775 = vsel %vm401, %v770, %v774
  %v776 = vshrl.u32 %v112, 16
  %v778 = vrot.slane %v776, 4
  %v779 = vor.u32 %v778, %v774
  %v780 = vrot.slane %v779, 4
  %v782 = vshll.u32 %v113, 16
  %v784 = vrot.slane %v782, 5
  %v785 = vsel %vm401, %v780, %v784
  %v787 = vshrl.u32 %v120, 16
  %v789 = vrot.slane %v787, 4
  %v790 = vshll.u32 %v120, 16
  %v792 = vrot.slane %v790, 5
  %v793 = vor.u32 %v789, %v792
  %v794 = vrot.slane %v793, 4
  %v796 = vshll.u32 %v121, 16
  %v798 = vrot.slane %v796, 5
  %v799 = vsel %vm401, %v794, %v798
  %v800 = vshrl.u32 %v121, 16
  %v802 = vrot.slane %v800, 4
  %v803 = vor.u32 %v802, %v798
  %v804 = vrot.slane %v803, 4
  %v806 = vshll.u32 %v122, 16
  %v808 = vrot.slane %v806, 5
  %v809 = vsel %vm401, %v804, %v808
  %v811 = vshrl.u32 %v123, 16
  %v813 = vrot.slane %v811, 4
  %v814 = vshll.u32 %v123, 16
  %v816 = vrot.slane %v814, 5
  %v817 = vor.u32 %v813, %v816
  %v818 = vrot.slane %v817, 4
  %v820 = vshll.u32 %v124, 16
  %v822 = vrot.slane %v820, 5
  %v823 = vsel %vm401, %v818, %v822
  %v824 = vshrl.u32 %v124, 16
  %v826 = vrot.slane %v824, 4
  %v827 = vor.u32 %v826, %v822
  %v828 = vrot.slane %v827, 4
  %v830 = vshll.u32 %v125, 16
  %v832 = vrot.slane %v830, 5
  %v833 = vsel %vm401, %v828, %v832
  %v835 = vshrl.u32 %v126, 16
  %v837 = vrot.slane %v835, 4
  %v838 = vshll.u32 %v126, 16
  %v840 = vrot.slane %v838, 5
  %v841 = vor.u32 %v837, %v840
  %v842 = vrot.slane %v841, 4
  %v844 = vshll.u32 %v127, 16
  %v846 = vrot.slane %v844, 5
  %v847 = vsel %vm401, %v842, %v846
  %v848 = vshrl.u32 %v127, 16
  %v850 = vrot.slane %v848, 4
  %v851 = vor.u32 %v850, %v846
  %v852 = vrot.slane %v851, 4
  %v854 = vshll.u32 %v128, 16
  %v856 = vrot.slane %v854, 5
  %v857 = vsel %vm401, %v852, %v856
  %v859 = vshrl.u32 %v129, 16
  %v861 = vrot.slane %v859, 4
  %v862 = vshll.u32 %v129, 16
  %v864 = vrot.slane %v862, 5
  %v865 = vor.u32 %v861, %v864
  %v866 = vrot.slane %v865, 4
  %v868 = vshll.u32 %v130, 16
  %v870 = vrot.slane %v868, 5
  %v871 = vsel %vm401, %v866, %v870
  %v872 = vshrl.u32 %v130, 16
  %v874 = vrot.slane %v872, 4
  %v875 = vor.u32 %v874, %v870
  %v876 = vrot.slane %v875, 4
  %v878 = vshll.u32 %v131, 16
  %v880 = vrot.slane %v878, 5
  %v881 = vsel %vm401, %v876, %v880
  %v883 = vshrl.u32 %v132, 16
  %v885 = vrot.slane %v883, 4
  %v886 = vshll.u32 %v132, 16
  %v888 = vrot.slane %v886, 5
  %v889 = vor.u32 %v885, %v888
  %v890 = vrot.slane %v889, 4
  %v892 = vshll.u32 %v133, 16
  %v894 = vrot.slane %v892, 5
  %v895 = vsel %vm401, %v890, %v894
  %v896 = vshrl.u32 %v133, 16
  %v898 = vrot.slane %v896, 4
  %v899 = vor.u32 %v898, %v894
  %v900 = vrot.slane %v899, 4
  %v902 = vshll.u32 %v134, 16
  %v904 = vrot.slane %v902, 5
  %v905 = vsel %vm401, %v900, %v904
  %v907 = vshrl.u32 %v135, 16
  %v909 = vrot.slane %v907, 4
  %v910 = vshll.u32 %v135, 16
  %v912 = vrot.slane %v910, 5
  %v913 = vor.u32 %v909, %v912
  %v914 = vrot.slane %v913, 4
  %v916 = vshll.u32 %v136, 16
  %v918 = vrot.slane %v916, 5
  %v919 = vsel %vm401, %v914, %v918
  %v920 = vshrl.u32 %v136, 16
  %v922 = vrot.slane %v920, 4
  %v923 = vor.u32 %v922, %v918
  %v924 = vrot.slane %v923, 4
  %v926 = vshll.u32 %v137, 16
  %v928 = vrot.slane %v926, 5
  %v929 = vsel %vm401, %v924, %v928
  %v931 = vshrl.u32 %v138, 16
  %v933 = vrot.slane %v931, 4
  %v934 = vshll.u32 %v138, 16
  %v936 = vrot.slane %v934, 5
  %v937 = vor.u32 %v933, %v936
  %v938 = vrot.slane %v937, 4
  %v940 = vshll.u32 %v139, 16
  %v942 = vrot.slane %v940, 5
  %v943 = vsel %vm401, %v938, %v942
  %v944 = vshrl.u32 %v139, 16
  %v946 = vrot.slane %v944, 4
  %v947 = vor.u32 %v946, %v942
  %v948 = vrot.slane %v947, 4
  %v950 = vshll.u32 %v140, 16
  %v952 = vrot.slane %v950, 5
  %v953 = vsel %vm401, %v948, %v952
  %v955 = vshrl.u32 %v141, 16
  %v957 = vrot.slane %v955, 4
  %v958 = vshll.u32 %v141, 16
  %v960 = vrot.slane %v958, 5
  %v961 = vor.u32 %v957, %v960
  %v962 = vrot.slane %v961, 4
  %v964 = vshll.u32 %v142, 16
  %v966 = vrot.slane %v964, 5
  %v967 = vsel %vm401, %v962, %v966
  %v968 = vshrl.u32 %v142, 16
  %v970 = vrot.slane %v968, 4
  %v971 = vor.u32 %v970, %v966
  %v972 = vrot.slane %v971, 4
  %v974 = vshll.u32 %v143, 16
  %v976 = vrot.slane %v974, 5
  %v977 = vsel %vm401, %v972, %v976
  %v979 = vshrl.u32 %v144, 16
  %v981 = vrot.slane %v979, 4
  %v982 = vshll.u32 %v144, 16
  %v984 = vrot.slane %v982, 5
  %v985 = vor.u32 %v981, %v984
  %v986 = vrot.slane %v985, 4
  %v988 = vshll.u32 %v145, 16
  %v990 = vrot.slane %v988, 5
  %v991 = vsel %vm401, %v986, %v990
  %v992 = vshrl.u32 %v145, 16
  %v994 = vrot.slane %v992, 4
  %v995 = vor.u32 %v994, %v990
  %v996 = vrot.slane %v995, 4
  %v998 = vshll.u32 %v146, 16
  %v1000 = vrot.slane %v998, 5
  %v1001 = vsel %vm401, %v996, %v1000
  %v1003 = vshrl.u32 %v147, 16
  %v1005 = vrot.slane %v1003, 4
  %v1006 = vshll.u32 %v147, 16
  %v1008 = vrot.slane %v1006, 5
  %v1009 = vor.u32 %v1005, %v1008
  %v1010 = vrot.slane %v1009, 4
  %v1012 = vshll.u32 %v148, 16
  %v1014 = vrot.slane %v1012, 5
  %v1015 = vsel %vm401, %v1010, %v1014
  %v1016 = vshrl.u32 %v148, 16
  %v1018 = vrot.slane %v1016, 4
  %v1019 = vor.u32 %v1018, %v1014
  %v1020 = vrot.slane %v1019, 4
  %v1022 = vshll.u32 %v149, 16
  %v1024 = vrot.slane %v1022, 5
  %v1025 = vsel %vm401, %v1020, %v1024
  %v1027 = vshrl.u32 %v150, 16
  %v1029 = vrot.slane %v1027, 4
  %v1030 = vshll.u32 %v150, 16
  %v1032 = vrot.slane %v1030, 5
  %v1033 = vor.u32 %v1029, %v1032
  %v1034 = vrot.slane %v1033, 4
  %v1036 = vshll.u32 %v151, 16
  %v1038 = vrot.slane %v1036, 5
  %v1039 = vsel %vm401, %v1034, %v1038
  %v1040 = vshrl.u32 %v151, 16
  %v1042 = vrot.slane %v1040, 4
  %v1043 = vor.u32 %v1042, %v1038
  %v1044 = vrot.slane %v1043, 4
  %v1046 = vshll.u32 %v152, 16
  %v1048 = vrot.slane %v1046, 5
  %v1049 = vsel %vm401, %v1044, %v1048
  %v1051 = vshrl.u32 %v153, 16
  %v1053 = vrot.slane %v1051, 4
  %v1054 = vshll.u32 %v153, 16
  %v1056 = vrot.slane %v1054, 5
  %v1057 = vor.u32 %v1053, %v1056
  %v1058 = vrot.slane %v1057, 4
  %v1060 = vshll.u32 %v154, 16
  %v1062 = vrot.slane %v1060, 5
  %v1063 = vsel %vm401, %v1058, %v1062
  %v1064 = vshrl.u32 %v154, 16
  %v1066 = vrot.slane %v1064, 4
  %v1067 = vor.u32 %v1066, %v1062
  %v1068 = vrot.slane %v1067, 4
  %v1070 = vshll.u32 %v155, 16
  %v1072 = vrot.slane %v1070, 5
  %v1073 = vsel %vm401, %v1068, %v1072
  %v1075 = vshrl.u32 %v156, 16
  %v1077 = vrot.slane %v1075, 4
  %v1078 = vshll.u32 %v156, 16
  %v1080 = vrot.slane %v1078, 5
  %v1081 = vor.u32 %v1077, %v1080
  %v1082 = vrot.slane %v1081, 4
  %v1084 = vshll.u32 %v157, 16
  %v1086 = vrot.slane %v1084, 5
  %v1087 = vsel %vm401, %v1082, %v1086
  %v1088 = vshrl.u32 %v157, 16
  %v1090 = vrot.slane %v1088, 4
  %v1091 = vor.u32 %v1090, %v1086
  %v1092 = vrot.slane %v1091, 4
  %v1094 = vshll.u32 %v158, 16
  %v1096 = vrot.slane %v1094, 5
  %v1097 = vsel %vm401, %v1092, %v1096
  %v1099 = vshrl.u32 %v159, 16
  %v1101 = vrot.slane %v1099, 4
  %v1102 = vshll.u32 %v159, 16
  %v1104 = vrot.slane %v1102, 5
  %v1105 = vor.u32 %v1101, %v1104
  %v1106 = vrot.slane %v1105, 4
  %v1108 = vshll.u32 %v160, 16
  %v1110 = vrot.slane %v1108, 5
  %v1111 = vsel %vm401, %v1106, %v1110
  %v1112 = vshrl.u32 %v160, 16
  %v1114 = vrot.slane %v1112, 4
  %v1115 = vor.u32 %v1114, %v1110
  %v1116 = vrot.slane %v1115, 4
  %v1118 = vshll.u32 %v161, 16
  %v1120 = vrot.slane %v1118, 5
  %v1121 = vsel %vm401, %v1116, %v1120
  %v1123 = vshrl.u32 %v162, 16
  %v1125 = vrot.slane %v1123, 4
  %v1126 = vshll.u32 %v162, 16
  %v1128 = vrot.slane %v1126, 5
  %v1129 = vor.u32 %v1125, %v1128
  %v1130 = vrot.slane %v1129, 4
  %v1132 = vshll.u32 %v163, 16
  %v1134 = vrot.slane %v1132, 5
  %v1135 = vsel %vm401, %v1130, %v1134
  %v1136 = vshrl.u32 %v163, 16
  %v1138 = vrot.slane %v1136, 4
  %v1139 = vor.u32 %v1138, %v1134
  %v1140 = vrot.slane %v1139, 4
  %v1142 = vshll.u32 %v164, 16
  %v1144 = vrot.slane %v1142, 5
  %v1145 = vsel %vm401, %v1140, %v1144
  %v1147 = vshrl.u32 %v165, 16
  %v1149 = vrot.slane %v1147, 4
  %v1150 = vshll.u32 %v165, 16
  %v1152 = vrot.slane %v1150, 5
  %v1153 = vor.u32 %v1149, %v1152
  %v1154 = vrot.slane %v1153, 4
  %v1156 = vshll.u32 %v166, 16
  %v1158 = vrot.slane %v1156, 5
  %v1159 = vsel %vm401, %v1154, %v1158
  %v1160 = vshrl.u32 %v166, 16
  %v1162 = vrot.slane %v1160, 4
  %v1163 = vor.u32 %v1162, %v1158
  %v1164 = vrot.slane %v1163, 4
  %v1166 = vshll.u32 %v167, 16
  %v1168 = vrot.slane %v1166, 5
  %v1169 = vsel %vm401, %v1164, %v1168
  %v1170 = vunpack.c.l.b16 %v415
  %v1171 = vunpack.c.l.b16 %v425
  %v1172 = vunpack.c.l.b16 %v439
  %v1173 = vunpack.c.l.b16 %v449
  %v1174 = vunpack.c.l.b16 %v463
  %v1175 = vunpack.c.l.b16 %v473
  %v1176 = vunpack.c.l.b16 %v487
  %v1177 = vunpack.c.l.b16 %v497
  %v1178 = vunpack.c.l.b16 %v511
  %v1179 = vunpack.c.l.b16 %v521
  %v1180 = vunpack.c.l.b16 %v535
  %v1181 = vunpack.c.l.b16 %v545
  %v1182 = vunpack.c.l.b16 %v559
  %v1183 = vunpack.c.l.b16 %v569
  %v1184 = vunpack.c.l.b16 %v583
  %v1185 = vunpack.c.l.b16 %v593
  %v1186 = vunpack.c.l.b16 %v607
  %v1187 = vunpack.c.l.b16 %v617
  %v1188 = vunpack.c.l.b16 %v631
  %v1189 = vunpack.c.l.b16 %v641
  %v1190 = vunpack.c.l.b16 %v655
  %v1191 = vunpack.c.l.b16 %v665
  %v1192 = vunpack.c.l.b16 %v679
  %v1193 = vunpack.c.l.b16 %v689
  %v1194 = vunpack.c.l.b16 %v703
  %v1195 = vunpack.c.l.b16 %v713
  %v1196 = vunpack.c.l.b16 %v727
  %v1197 = vunpack.c.l.b16 %v737
  %v1198 = vunpack.c.l.b16 %v751
  %v1199 = vunpack.c.l.b16 %v761
  %v1200 = vunpack.c.l.b16 %v775
  %v1201 = vunpack.c.l.b16 %v785
  %v1202 = vunpack.c.l.b16 %v799
  %v1203 = vunpack.c.l.b16 %v809
  %v1204 = vunpack.c.l.b16 %v823
  %v1205 = vunpack.c.l.b16 %v833
  %v1206 = vunpack.c.l.b16 %v847
  %v1207 = vunpack.c.l.b16 %v857
  %v1208 = vunpack.c.l.b16 %v871
  %v1209 = vunpack.c.l.b16 %v881
  %v1210 = vunpack.c.l.b16 %v895
  %v1211 = vunpack.c.l.b16 %v905
  %v1212 = vunpack.c.l.b16 %v919
  %v1213 = vunpack.c.l.b16 %v929
  %v1214 = vunpack.c.l.b16 %v943
  %v1215 = vunpack.c.l.b16 %v953
  %v1216 = vunpack.c.l.b16 %v967
  %v1217 = vunpack.c.l.b16 %v977
  %v1218 = vunpack.c.l.b16 %v991
  %v1219 = vunpack.c.l.b16 %v1001
  %v1220 = vunpack.c.l.b16 %v1015
  %v1221 = vunpack.c.l.b16 %v1025
  %v1222 = vunpack.c.l.b16 %v1039
  %v1223 = vunpack.c.l.b16 %v1049
  %v1224 = vunpack.c.l.b16 %v1063
  %v1225 = vunpack.c.l.b16 %v1073
  %v1226 = vunpack.c.l.b16 %v1087
  %v1227 = vunpack.c.l.b16 %v1097
  %v1228 = vunpack.c.l.b16 %v1111
  %v1229 = vunpack.c.l.b16 %v1121
  %v1230 = vunpack.c.l.b16 %v1135
  %v1231 = vunpack.c.l.b16 %v1145
  %v1232 = vunpack.c.l.b16 %v1159
  %v1233 = vunpack.c.l.b16 %v1169
  %v1234 = vpack.c.b16 %v1171, %v1170
  %v1235 = vpack.c.b16 %v1173, %v1172
  %v1236 = vpack.c.b16 %v1175, %v1174
  %v1237 = vpack.c.b16 %v1177, %v1176
  %v1238 = vpack.c.b16 %v1179, %v1178
  %v1239 = vpack.c.b16 %v1181, %v1180
  %v1240 = vpack.c.b16 %v1183, %v1182
  %v1241 = vpack.c.b16 %v1185, %v1184
  %v1242 = vpack.c.b16 %v1187, %v1186
  %v1243 = vpack.c.b16 %v1189, %v1188
  %v1244 = vpack.c.b16 %v1191, %v1190
  %v1245 = vpack.c.b16 %v1193, %v1192
  %v1246 = vpack.c.b16 %v1195, %v1194
  %v1247 = vpack.c.b16 %v1197, %v1196
  %v1248 = vpack.c.b16 %v1199, %v1198
  %v1249 = vpack.c.b16 %v1201, %v1200
  %v1250 = vpack.c.b16 %v1203, %v1202
  %v1251 = vpack.c.b16 %v1205, %v1204
  %v1252 = vpack.c.b16 %v1207, %v1206
  %v1253 = vpack.c.b16 %v1209, %v1208
  %v1254 = vpack.c.b16 %v1211, %v1210
  %v1255 = vpack.c.b16 %v1213, %v1212
  %v1256 = vpack.c.b16 %v1215, %v1214
  %v1257 = vpack.c.b16 %v1217, %v1216
  %v1258 = vpack.c.b16 %v1219, %v1218
  %v1259 = vpack.c.b16 %v1221, %v1220
  %v1260 = vpack.c.b16 %v1223, %v1222
  %v1261 = vpack.c.b16 %v1225, %v1224
  %v1262 = vpack.c.b16 %v1227, %v1226
  %v1263 = vpack.c.b16 %v1229, %v1228
  %v1264 = vpack.c.b16 %v1231, %v1230
  %v1265 = vpack.c.b16 %v1233, %v1232
  %1266 = vrot.lane.b32.xlu0 %v1234, 4
  %v1267 = vpop.permute.xlu0 %1266
  %1268 = vrot.lane.b32.xlu0 %v1235, 4
  %v1269 = vpop.permute.xlu0 %1268
  %1270 = vrot.lane.b32.xlu0 %v1236, 4
  %v1271 = vpop.permute.xlu0 %1270
  %1272 = vrot.lane.b32.xlu0 %v1237, 4
  %v1273 = vpop.permute.xlu0 %1272
  %1274 = vrot.lane.b32.xlu0 %v1238, 4
  %v1275 = vpop.permute.xlu0 %1274
  %1276 = vrot.lane.b32.xlu0 %v1239, 4
  %v1277 = vpop.permute.xlu0 %1276
  %1278 = vrot.lane.b32.xlu0 %v1240, 4
  %v1279 = vpop.permute.xlu0 %1278
  %1280 = vrot.lane.b32.xlu0 %v1241, 4
  %v1281 = vpop.permute.xlu0 %1280
  %1282 = vrot.lane.b32.xlu0 %v1242, 4
  %v1283 = vpop.permute.xlu0 %1282
  %1284 = vrot.lane.b32.xlu0 %v1243, 4
  %v1285 = vpop.permute.xlu0 %1284
  %1286 = vrot.lane.b32.xlu0 %v1244, 4
  %v1287 = vpop.permute.xlu0 %1286
  %1288 = vrot.lane.b32.xlu0 %v1245, 4
  %v1289 = vpop.permute.xlu0 %1288
  %1290 = vrot.lane.b32.xlu0 %v1246, 4
  %v1291 = vpop.permute.xlu0 %1290
  %1292 = vrot.lane.b32.xlu0 %v1247, 4
  %v1293 = vpop.permute.xlu0 %1292
  %1294 = vrot.lane.b32.xlu0 %v1248, 4
  %v1295 = vpop.permute.xlu0 %1294
  %1296 = vrot.lane.b32.xlu0 %v1249, 4
  %v1297 = vpop.permute.xlu0 %1296
  %1298 = vrot.lane.b32.xlu0 %v1250, 4
  %v1299 = vpop.permute.xlu0 %1298
  %1300 = vrot.lane.b32.xlu0 %v1251, 4
  %v1301 = vpop.permute.xlu0 %1300
  %1302 = vrot.lane.b32.xlu0 %v1252, 4
  %v1303 = vpop.permute.xlu0 %1302
  %1304 = vrot.lane.b32.xlu0 %v1253, 4
  %v1305 = vpop.permute.xlu0 %1304
  %1306 = vrot.lane.b32.xlu0 %v1254, 4
  %v1307 = vpop.permute.xlu0 %1306
  %1308 = vrot.lane.b32.xlu0 %v1255, 4
  %v1309 = vpop.permute.xlu0 %1308
  %1310 = vrot.lane.b32.xlu0 %v1256, 4
  %v1311 = vpop.permute.xlu0 %1310
  %1312 = vrot.lane.b32.xlu0 %v1257, 4
  %v1313 = vpop.permute.xlu0 %1312
  %1314 = vrot.lane.b32.xlu0 %v1258, 4
  %v1315 = vpop.permute.xlu0 %1314
  %1316 = vrot.lane.b32.xlu0 %v1259, 4
  %v1317 = vpop.permute.xlu0 %1316
  %1318 = vrot.lane.b32.xlu0 %v1260, 4
  %v1319 = vpop.permute.xlu0 %1318
  %1320 = vrot.lane.b32.xlu0 %v1261, 4
  %v1321 = vpop.permute.xlu0 %1320
  %1322 = vrot.lane.b32.xlu0 %v1262, 4
  %v1323 = vpop.permute.xlu0 %1322
  %1324 = vrot.lane.b32.xlu0 %v1263, 4
  %v1325 = vpop.permute.xlu0 %1324
  %1326 = vrot.lane.b32.xlu0 %v1264, 4
  %v1327 = vpop.permute.xlu0 %1326
  %1328 = vrot.lane.b32.xlu0 %v1265, 4
  %v1329 = vpop.permute.xlu0 %1328
  %vm1362 = vcmask 64544
  %1363 = vst.msk [vmem:[#allocation2] sm:$0xff] %vm1362, %v1267
  %1364 = vst.msk [vmem:[#allocation2 + $0x8] sm:$0xff] %vm1362, %v1269
  %1365 = vst.msk [vmem:[#allocation2 + $0x10] sm:$0xff] %vm1362, %v1271
  %1366 = vst.msk [vmem:[#allocation2 + $0x18] sm:$0xff] %vm1362, %v1273
  %1367 = vst.msk [vmem:[#allocation2 + $0x20] sm:$0xff] %vm1362, %v1275
  %1368 = vst.msk [vmem:[#allocation2 + $0x28] sm:$0xff] %vm1362, %v1277
  %1369 = vst.msk [vmem:[#allocation2 + $0x30] sm:$0xff] %vm1362, %v1279
  %1370 = vst.msk [vmem:[#allocation2 + $0x38] sm:$0xff] %vm1362, %v1281
  %1371 = vst.msk [vmem:[#allocation2 + $0x40] sm:$0xff] %vm1362, %v1283
  %1372 = vst.msk [vmem:[#allocation2 + $0x48] sm:$0xff] %vm1362, %v1285
  %1373 = vst.msk [vmem:[#allocation2 + $0x50] sm:$0xff] %vm1362, %v1287
  %1374 = vst.msk [vmem:[#allocation2 + $0x58] sm:$0xff] %vm1362, %v1289
  %1375 = vst.msk [vmem:[#allocation2 + $0x60] sm:$0xff] %vm1362, %v1291
  %1376 = vst.msk [vmem:[#allocation2 + $0x68] sm:$0xff] %vm1362, %v1293
  %1377 = vst.msk [vmem:[#allocation2 + $0x70] sm:$0xff] %vm1362, %v1295
  %1378 = vst.msk [vmem:[#allocation2 + $0x78] sm:$0xff] %vm1362, %v1297
  %1379 = vst.msk [vmem:[#allocation2 + $0x80] sm:$0xff] %vm1362, %v1299
  %1380 = vst.msk [vmem:[#allocation2 + $0x88] sm:$0xff] %vm1362, %v1301
  %1381 = vst.msk [vmem:[#allocation2 + $0x90] sm:$0xff] %vm1362, %v1303
  %1382 = vst.msk [vmem:[#allocation2 + $0x98] sm:$0xff] %vm1362, %v1305
  %1383 = vst.msk [vmem:[#allocation2 + $0xa0] sm:$0xff] %vm1362, %v1307
  %1384 = vst.msk [vmem:[#allocation2 + $0xa8] sm:$0xff] %vm1362, %v1309
  %1385 = vst.msk [vmem:[#allocation2 + $0xb0] sm:$0xff] %vm1362, %v1311
  %1386 = vst.msk [vmem:[#allocation2 + $0xb8] sm:$0xff] %vm1362, %v1313
  %1387 = vst.msk [vmem:[#allocation2 + $0xc0] sm:$0xff] %vm1362, %v1315
  %1388 = vst.msk [vmem:[#allocation2 + $0xc8] sm:$0xff] %vm1362, %v1317
  %1389 = vst.msk [vmem:[#allocation2 + $0xd0] sm:$0xff] %vm1362, %v1319
  %1390 = vst.msk [vmem:[#allocation2 + $0xd8] sm:$0xff] %vm1362, %v1321
  %1391 = vst.msk [vmem:[#allocation2 + $0xe0] sm:$0xff] %vm1362, %v1323
  %1392 = vst.msk [vmem:[#allocation2 + $0xe8] sm:$0xff] %vm1362, %v1325
  %1393 = vst.msk [vmem:[#allocation2 + $0xf0] sm:$0xff] %vm1362, %v1327
  %1394 = vst.msk [vmem:[#allocation2 + $0xf8] sm:$0xff] %vm1362, %v1329
  %vm1427 = vcmask 1042432
  %vm1428 = vcmask 1046532
  %vm1429 = vmor %vm1427, %vm1428
  %v1430 = vrot.slane %v66, 5
  %v1431 = vrot.slane %v1430, 4
  %v1432 = vrot.slane %v67, 5
  %v1433 = vsel %vm1429, %v1431, %v1432
  %v1434 = vrot.slane %v1432, 4
  %v1435 = vrot.slane %v68, 5
  %v1436 = vsel %vm1429, %v1434, %v1435
  %v1437 = vrot.slane %v69, 5
  %v1438 = vrot.slane %v1437, 4
  %v1439 = vrot.slane %v70, 5
  %v1440 = vsel %vm1429, %v1438, %v1439
  %v1441 = vrot.slane %v1439, 4
  %v1442 = vrot.slane %v71, 5
  %v1443 = vsel %vm1429, %v1441, %v1442
  %v1444 = vrot.slane %v72, 5
  %v1445 = vrot.slane %v1444, 4
  %v1446 = vrot.slane %v73, 5
  %v1447 = vsel %vm1429, %v1445, %v1446
  %v1448 = vrot.slane %v1446, 4
  %v1449 = vrot.slane %v74, 5
  %v1450 = vsel %vm1429, %v1448, %v1449
  %v1451 = vrot.slane %v75, 5
  %v1452 = vrot.slane %v1451, 4
  %v1453 = vrot.slane %v76, 5
  %v1454 = vsel %vm1429, %v1452, %v1453
  %v1455 = vrot.slane %v1453, 4
  %v1456 = vrot.slane %v77, 5
  %v1457 = vsel %vm1429, %v1455, %v1456
  %v1458 = vrot.slane %v78, 5
  %v1459 = vrot.slane %v1458, 4
  %v1460 = vrot.slane %v79, 5
  %v1461 = vsel %vm1429, %v1459, %v1460
  %v1462 = vrot.slane %v1460, 4
  %v1463 = vrot.slane %v80, 5
  %v1464 = vsel %vm1429, %v1462, %v1463
  %v1465 = vrot.slane %v81, 5
  %v1466 = vrot.slane %v1465, 4
  %v1467 = vrot.slane %v82, 5
  %v1468 = vsel %vm1429, %v1466, %v1467
  %v1469 = vrot.slane %v1467, 4
  %v1470 = vrot.slane %v83, 5
  %v1471 = vsel %vm1429, %v1469, %v1470
  %v1472 = vrot.slane %v84, 5
  %v1473 = vrot.slane %v1472, 4
  %v1474 = vrot.slane %v85, 5
  %v1475 = vsel %vm1429, %v1473, %v1474
  %v1476 = vrot.slane %v1474, 4
  %v1477 = vrot.slane %v86, 5
  %v1478 = vsel %vm1429, %v1476, %v1477
  %v1479 = vrot.slane %v87, 5
  %v1480 = vrot.slane %v1479, 4
  %v1481 = vrot.slane %v88, 5
  %v1482 = vsel %vm1429, %v1480, %v1481
  %v1483 = vrot.slane %v1481, 4
  %v1484 = vrot.slane %v89, 5
  %v1485 = vsel %vm1429, %v1483, %v1484
  %v1486 = vrot.slane %v90, 5
  %v1487 = vrot.slane %v1486, 4
  %v1488 = vrot.slane %v91, 5
  %v1489 = vsel %vm1429, %v1487, %v1488
  %v1490 = vrot.slane %v1488, 4
  %v1491 = vrot.slane %v92, 5
  %v1492 = vsel %vm1429, %v1490, %v1491
  %v1493 = vrot.slane %v93, 5
  %v1494 = vrot.slane %v1493, 4
  %v1495 = vrot.slane %v94, 5
  %v1496 = vsel %vm1429, %v1494, %v1495
  %v1497 = vrot.slane %v1495, 4
  %v1498 = vrot.slane %v95, 5
  %v1499 = vsel %vm1429, %v1497, %v1498
  %v1500 = vrot.slane %v96, 5
  %v1501 = vrot.slane %v1500, 4
  %v1502 = vrot.slane %v97, 5
  %v1503 = vsel %vm1429, %v1501, %v1502
  %v1504 = vrot.slane %v1502, 4
  %v1505 = vrot.slane %v98, 5
  %v1506 = vsel %vm1429, %v1504, %v1505
  %v1507 = vrot.slane %v99, 5
  %v1508 = vrot.slane %v1507, 4
  %v1509 = vrot.slane %v100, 5
  %v1510 = vsel %vm1429, %v1508, %v1509
  %v1511 = vrot.slane %v1509, 4
  %v1512 = vrot.slane %v101, 5
  %v1513 = vsel %vm1429, %v1511, %v1512
  %v1514 = vrot.slane %v102, 5
  %v1515 = vrot.slane %v1514, 4
  %v1516 = vrot.slane %v103, 5
  %v1517 = vsel %vm1429, %v1515, %v1516
  %v1518 = vrot.slane %v1516, 4
  %v1519 = vrot.slane %v104, 5
  %v1520 = vsel %vm1429, %v1518, %v1519
  %v1521 = vrot.slane %v105, 5
  %v1522 = vrot.slane %v1521, 4
  %v1523 = vrot.slane %v106, 5
  %v1524 = vsel %vm1429, %v1522, %v1523
  %v1525 = vrot.slane %v1523, 4
  %v1526 = vrot.slane %v107, 5
  %v1527 = vsel %vm1429, %v1525, %v1526
  %v1528 = vrot.slane %v108, 5
  %v1529 = vrot.slane %v1528, 4
  %v1530 = vrot.slane %v109, 5
  %v1531 = vsel %vm1429, %v1529, %v1530
  %v1532 = vrot.slane %v1530, 4
  %v1533 = vrot.slane %v110, 5
  %v1534 = vsel %vm1429, %v1532, %v1533
  %v1535 = vrot.slane %v111, 5
  %v1536 = vrot.slane %v1535, 4
  %v1537 = vrot.slane %v112, 5
  %v1538 = vsel %vm1429, %v1536, %v1537
  %v1539 = vrot.slane %v1537, 4
  %v1540 = vrot.slane %v113, 5
  %v1541 = vsel %vm1429, %v1539, %v1540
  %v1542 = vrot.slane %v120, 5
  %v1543 = vrot.slane %v1542, 4
  %v1544 = vrot.slane %v121, 5
  %v1545 = vsel %vm1429, %v1543, %v1544
  %v1546 = vrot.slane %v1544, 4
  %v1547 = vrot.slane %v122, 5
  %v1548 = vsel %vm1429, %v1546, %v1547
  %v1549 = vrot.slane %v123, 5
  %v1550 = vrot.slane %v1549, 4
  %v1551 = vrot.slane %v124, 5
  %v1552 = vsel %vm1429, %v1550, %v1551
  %v1553 = vrot.slane %v1551, 4
  %v1554 = vrot.slane %v125, 5
  %v1555 = vsel %vm1429, %v1553, %v1554
  %v1556 = vrot.slane %v126, 5
  %v1557 = vrot.slane %v1556, 4
  %v1558 = vrot.slane %v127, 5
  %v1559 = vsel %vm1429, %v1557, %v1558
  %v1560 = vrot.slane %v1558, 4
  %v1561 = vrot.slane %v128, 5
  %v1562 = vsel %vm1429, %v1560, %v1561
  %v1563 = vrot.slane %v129, 5
  %v1564 = vrot.slane %v1563, 4
  %v1565 = vrot.slane %v130, 5
  %v1566 = vsel %vm1429, %v1564, %v1565
  %v1567 = vrot.slane %v1565, 4
  %v1568 = vrot.slane %v131, 5
  %v1569 = vsel %vm1429, %v1567, %v1568
  %v1570 = vrot.slane %v132, 5
  %v1571 = vrot.slane %v1570, 4
  %v1572 = vrot.slane %v133, 5
  %v1573 = vsel %vm1429, %v1571, %v1572
  %v1574 = vrot.slane %v1572, 4
  %v1575 = vrot.slane %v134, 5
  %v1576 = vsel %vm1429, %v1574, %v1575
  %v1577 = vrot.slane %v135, 5
  %v1578 = vrot.slane %v1577, 4
  %v1579 = vrot.slane %v136, 5
  %v1580 = vsel %vm1429, %v1578, %v1579
  %v1581 = vrot.slane %v1579, 4
  %v1582 = vrot.slane %v137, 5
  %v1583 = vsel %vm1429, %v1581, %v1582
  %v1584 = vrot.slane %v138, 5
  %v1585 = vrot.slane %v1584, 4
  %v1586 = vrot.slane %v139, 5
  %v1587 = vsel %vm1429, %v1585, %v1586
  %v1588 = vrot.slane %v1586, 4
  %v1589 = vrot.slane %v140, 5
  %v1590 = vsel %vm1429, %v1588, %v1589
  %v1591 = vrot.slane %v141, 5
  %v1592 = vrot.slane %v1591, 4
  %v1593 = vrot.slane %v142, 5
  %v1594 = vsel %vm1429, %v1592, %v1593
  %v1595 = vrot.slane %v1593, 4
  %v1596 = vrot.slane %v143, 5
  %v1597 = vsel %vm1429, %v1595, %v1596
  %v1598 = vrot.slane %v144, 5
  %v1599 = vrot.slane %v1598, 4
  %v1600 = vrot.slane %v145, 5
  %v1601 = vsel %vm1429, %v1599, %v1600
  %v1602 = vrot.slane %v1600, 4
  %v1603 = vrot.slane %v146, 5
  %v1604 = vsel %vm1429, %v1602, %v1603
  %v1605 = vrot.slane %v147, 5
  %v1606 = vrot.slane %v1605, 4
  %v1607 = vrot.slane %v148, 5
  %v1608 = vsel %vm1429, %v1606, %v1607
  %v1609 = vrot.slane %v1607, 4
  %v1610 = vrot.slane %v149, 5
  %v1611 = vsel %vm1429, %v1609, %v1610
  %v1612 = vrot.slane %v150, 5
  %v1613 = vrot.slane %v1612, 4
  %v1614 = vrot.slane %v151, 5
  %v1615 = vsel %vm1429, %v1613, %v1614
  %v1616 = vrot.slane %v1614, 4
  %v1617 = vrot.slane %v152, 5
  %v1618 = vsel %vm1429, %v1616, %v1617
  %v1619 = vrot.slane %v153, 5
  %v1620 = vrot.slane %v1619, 4
  %v1621 = vrot.slane %v154, 5
  %v1622 = vsel %vm1429, %v1620, %v1621
  %v1623 = vrot.slane %v1621, 4
  %v1624 = vrot.slane %v155, 5
  %v1625 = vsel %vm1429, %v1623, %v1624
  %v1626 = vrot.slane %v156, 5
  %v1627 = vrot.slane %v1626, 4
  %v1628 = vrot.slane %v157, 5
  %v1629 = vsel %vm1429, %v1627, %v1628
  %v1630 = vrot.slane %v1628, 4
  %v1631 = vrot.slane %v158, 5
  %v1632 = vsel %vm1429, %v1630, %v1631
  %v1633 = vrot.slane %v159, 5
  %v1634 = vrot.slane %v1633, 4
  %v1635 = vrot.slane %v160, 5
  %v1636 = vsel %vm1429, %v1634, %v1635
  %v1637 = vrot.slane %v1635, 4
  %v1638 = vrot.slane %v161, 5
  %v1639 = vsel %vm1429, %v1637, %v1638
  %v1640 = vrot.slane %v162, 5
  %v1641 = vrot.slane %v1640, 4
  %v1642 = vrot.slane %v163, 5
  %v1643 = vsel %vm1429, %v1641, %v1642
  %v1644 = vrot.slane %v1642, 4
  %v1645 = vrot.slane %v164, 5
  %v1646 = vsel %vm1429, %v1644, %v1645
  %v1647 = vrot.slane %v165, 5
  %v1648 = vrot.slane %v1647, 4
  %v1649 = vrot.slane %v166, 5
  %v1650 = vsel %vm1429, %v1648, %v1649
  %v1651 = vrot.slane %v1649, 4
  %v1652 = vrot.slane %v167, 5
  %v1653 = vsel %vm1429, %v1651, %v1652
  %v1654 = vunpack.c.l.b16 %v1433
  %v1655 = vunpack.c.l.b16 %v1436
  %v1656 = vunpack.c.l.b16 %v1440
  %v1657 = vunpack.c.l.b16 %v1443
  %v1658 = vunpack.c.l.b16 %v1447
  %v1659 = vunpack.c.l.b16 %v1450
  %v1660 = vunpack.c.l.b16 %v1454
  %v1661 = vunpack.c.l.b16 %v1457
  %v1662 = vunpack.c.l.b16 %v1461
  %v1663 = vunpack.c.l.b16 %v1464
  %v1664 = vunpack.c.l.b16 %v1468
  %v1665 = vunpack.c.l.b16 %v1471
  %v1666 = vunpack.c.l.b16 %v1475
  %v1667 = vunpack.c.l.b16 %v1478
  %v1668 = vunpack.c.l.b16 %v1482
  %v1669 = vunpack.c.l.b16 %v1485
  %v1670 = vunpack.c.l.b16 %v1489
  %v1671 = vunpack.c.l.b16 %v1492
  %v1672 = vunpack.c.l.b16 %v1496
  %v1673 = vunpack.c.l.b16 %v1499
  %v1674 = vunpack.c.l.b16 %v1503
  %v1675 = vunpack.c.l.b16 %v1506
  %v1676 = vunpack.c.l.b16 %v1510
  %v1677 = vunpack.c.l.b16 %v1513
  %v1678 = vunpack.c.l.b16 %v1517
  %v1679 = vunpack.c.l.b16 %v1520
  %v1680 = vunpack.c.l.b16 %v1524
  %v1681 = vunpack.c.l.b16 %v1527
  %v1682 = vunpack.c.l.b16 %v1531
  %v1683 = vunpack.c.l.b16 %v1534
  %v1684 = vunpack.c.l.b16 %v1538
  %v1685 = vunpack.c.l.b16 %v1541
  %v1686 = vunpack.c.l.b16 %v1545
  %v1687 = vunpack.c.l.b16 %v1548
  %v1688 = vunpack.c.l.b16 %v1552
  %v1689 = vunpack.c.l.b16 %v1555
  %v1690 = vunpack.c.l.b16 %v1559
  %v1691 = vunpack.c.l.b16 %v1562
  %v1692 = vunpack.c.l.b16 %v1566
  %v1693 = vunpack.c.l.b16 %v1569
  %v1694 = vunpack.c.l.b16 %v1573
  %v1695 = vunpack.c.l.b16 %v1576
  %v1696 = vunpack.c.l.b16 %v1580
  %v1697 = vunpack.c.l.b16 %v1583
  %v1698 = vunpack.c.l.b16 %v1587
  %v1699 = vunpack.c.l.b16 %v1590
  %v1700 = vunpack.c.l.b16 %v1594
  %v1701 = vunpack.c.l.b16 %v1597
  %v1702 = vunpack.c.l.b16 %v1601
  %v1703 = vunpack.c.l.b16 %v1604
  %v1704 = vunpack.c.l.b16 %v1608
  %v1705 = vunpack.c.l.b16 %v1611
  %v1706 = vunpack.c.l.b16 %v1615
  %v1707 = vunpack.c.l.b16 %v1618
  %v1708 = vunpack.c.l.b16 %v1622
  %v1709 = vunpack.c.l.b16 %v1625
  %v1710 = vunpack.c.l.b16 %v1629
  %v1711 = vunpack.c.l.b16 %v1632
  %v1712 = vunpack.c.l.b16 %v1636
  %v1713 = vunpack.c.l.b16 %v1639
  %v1714 = vunpack.c.l.b16 %v1643
  %v1715 = vunpack.c.l.b16 %v1646
  %v1716 = vunpack.c.l.b16 %v1650
  %v1717 = vunpack.c.l.b16 %v1653
  %v1718 = vpack.c.b16 %v1655, %v1654
  %v1719 = vpack.c.b16 %v1657, %v1656
  %v1720 = vpack.c.b16 %v1659, %v1658
  %v1721 = vpack.c.b16 %v1661, %v1660
  %v1722 = vpack.c.b16 %v1663, %v1662
  %v1723 = vpack.c.b16 %v1665, %v1664
  %v1724 = vpack.c.b16 %v1667, %v1666
  %v1725 = vpack.c.b16 %v1669, %v1668
  %v1726 = vpack.c.b16 %v1671, %v1670
  %v1727 = vpack.c.b16 %v1673, %v1672
  %v1728 = vpack.c.b16 %v1675, %v1674
  %v1729 = vpack.c.b16 %v1677, %v1676
  %v1730 = vpack.c.b16 %v1679, %v1678
  %v1731 = vpack.c.b16 %v1681, %v1680
  %v1732 = vpack.c.b16 %v1683, %v1682
  %v1733 = vpack.c.b16 %v1685, %v1684
  %v1734 = vpack.c.b16 %v1687, %v1686
  %v1735 = vpack.c.b16 %v1689, %v1688
  %v1736 = vpack.c.b16 %v1691, %v1690
  %v1737 = vpack.c.b16 %v1693, %v1692
  %v1738 = vpack.c.b16 %v1695, %v1694
  %v1739 = vpack.c.b16 %v1697, %v1696
  %v1740 = vpack.c.b16 %v1699, %v1698
  %v1741 = vpack.c.b16 %v1701, %v1700
  %v1742 = vpack.c.b16 %v1703, %v1702
  %v1743 = vpack.c.b16 %v1705, %v1704
  %v1744 = vpack.c.b16 %v1707, %v1706
  %v1745 = vpack.c.b16 %v1709, %v1708
  %v1746 = vpack.c.b16 %v1711, %v1710
  %v1747 = vpack.c.b16 %v1713, %v1712
  %v1748 = vpack.c.b16 %v1715, %v1714
  %v1749 = vpack.c.b16 %v1717, %v1716
  %1750 = vrot.lane.b32.xlu0 %v1718, 8
  %v1751 = vpop.permute.xlu0 %1750
  %1752 = vrot.lane.b32.xlu0 %v1719, 8
  %v1753 = vpop.permute.xlu0 %1752
  %1754 = vrot.lane.b32.xlu0 %v1720, 8
  %v1755 = vpop.permute.xlu0 %1754
  %1756 = vrot.lane.b32.xlu0 %v1721, 8
  %v1757 = vpop.permute.xlu0 %1756
  %1758 = vrot.lane.b32.xlu0 %v1722, 8
  %v1759 = vpop.permute.xlu0 %1758
  %1760 = vrot.lane.b32.xlu0 %v1723, 8
  %v1761 = vpop.permute.xlu0 %1760
  %1762 = vrot.lane.b32.xlu0 %v1724, 8
  %v1763 = vpop.permute.xlu0 %1762
  %1764 = vrot.lane.b32.xlu0 %v1725, 8
  %v1765 = vpop.permute.xlu0 %1764
  %1766 = vrot.lane.b32.xlu0 %v1726, 8
  %v1767 = vpop.permute.xlu0 %1766
  %1768 = vrot.lane.b32.xlu0 %v1727, 8
  %v1769 = vpop.permute.xlu0 %1768
  %1770 = vrot.lane.b32.xlu0 %v1728, 8
  %v1771 = vpop.permute.xlu0 %1770
  %1772 = vrot.lane.b32.xlu0 %v1729, 8
  %v1773 = vpop.permute.xlu0 %1772
  %1774 = vrot.lane.b32.xlu0 %v1730, 8
  %v1775 = vpop.permute.xlu0 %1774
  %1776 = vrot.lane.b32.xlu0 %v1731, 8
  %v1777 = vpop.permute.xlu0 %1776
  %1778 = vrot.lane.b32.xlu0 %v1732, 8
  %v1779 = vpop.permute.xlu0 %1778
  %1780 = vrot.lane.b32.xlu0 %v1733, 8
  %v1781 = vpop.permute.xlu0 %1780
  %1782 = vrot.lane.b32.xlu0 %v1734, 8
  %v1783 = vpop.permute.xlu0 %1782
  %1784 = vrot.lane.b32.xlu0 %v1735, 8
  %v1785 = vpop.permute.xlu0 %1784
  %1786 = vrot.lane.b32.xlu0 %v1736, 8
  %v1787 = vpop.permute.xlu0 %1786
  %1788 = vrot.lane.b32.xlu0 %v1737, 8
  %v1789 = vpop.permute.xlu0 %1788
  %1790 = vrot.lane.b32.xlu0 %v1738, 8
  %v1791 = vpop.permute.xlu0 %1790
  %1792 = vrot.lane.b32.xlu0 %v1739, 8
  %v1793 = vpop.permute.xlu0 %1792
  %1794 = vrot.lane.b32.xlu0 %v1740, 8
  %v1795 = vpop.permute.xlu0 %1794
  %1796 = vrot.lane.b32.xlu0 %v1741, 8
  %v1797 = vpop.permute.xlu0 %1796
  %1798 = vrot.lane.b32.xlu0 %v1742, 8
  %v1799 = vpop.permute.xlu0 %1798
  %1800 = vrot.lane.b32.xlu0 %v1743, 8
  %v1801 = vpop.permute.xlu0 %1800
  %1802 = vrot.lane.b32.xlu0 %v1744, 8
  %v1803 = vpop.permute.xlu0 %1802
  %1804 = vrot.lane.b32.xlu0 %v1745, 8
  %v1805 = vpop.permute.xlu0 %1804
  %1806 = vrot.lane.b32.xlu0 %v1746, 8
  %v1807 = vpop.permute.xlu0 %1806
  %1808 = vrot.lane.b32.xlu0 %v1747, 8
  %v1809 = vpop.permute.xlu0 %1808
  %1810 = vrot.lane.b32.xlu0 %v1748, 8
  %v1811 = vpop.permute.xlu0 %1810
  %1812 = vrot.lane.b32.xlu0 %v1749, 8
  %v1813 = vpop.permute.xlu0 %1812
  %vm1846 = vcmask 97344
  %1847 = vst.msk [vmem:[#allocation2] sm:$0xff] %vm1846, %v1751
  %1848 = vst.msk [vmem:[#allocation2 + $0x8] sm:$0xff] %vm1846, %v1753
  %1849 = vst.msk [vmem:[#allocation2 + $0x10] sm:$0xff] %vm1846, %v1755
  %1850 = vst.msk [vmem:[#allocation2 + $0x18] sm:$0xff] %vm1846, %v1757
  %1851 = vst.msk [vmem:[#allocation2 + $0x20] sm:$0xff] %vm1846, %v1759
  %1852 = vst.msk [vmem:[#allocation2 + $0x28] sm:$0xff] %vm1846, %v1761
  %1853 = vst.msk [vmem:[#allocation2 + $0x30] sm:$0xff] %vm1846, %v1763
  %1854 = vst.msk [vmem:[#allocation2 + $0x38] sm:$0xff] %vm1846, %v1765
  %1855 = vst.msk [vmem:[#allocation2 + $0x40] sm:$0xff] %vm1846, %v1767
  %1856 = vst.msk [vmem:[#allocation2 + $0x48] sm:$0xff] %vm1846, %v1769
  %1857 = vst.msk [vmem:[#allocation2 + $0x50] sm:$0xff] %vm1846, %v1771
  %1858 = vst.msk [vmem:[#allocation2 + $0x58] sm:$0xff] %vm1846, %v1773
  %1859 = vst.msk [vmem:[#allocation2 + $0x60] sm:$0xff] %vm1846, %v1775
  %1860 = vst.msk [vmem:[#allocation2 + $0x68] sm:$0xff] %vm1846, %v1777
  %1861 = vst.msk [vmem:[#allocation2 + $0x70] sm:$0xff] %vm1846, %v1779
  %1862 = vst.msk [vmem:[#allocation2 + $0x78] sm:$0xff] %vm1846, %v1781
  %1863 = vst.msk [vmem:[#allocation2 + $0x80] sm:$0xff] %vm1846, %v1783
  %1864 = vst.msk [vmem:[#allocation2 + $0x88] sm:$0xff] %vm1846, %v1785
  %1865 = vst.msk [vmem:[#allocation2 + $0x90] sm:$0xff] %vm1846, %v1787
  %1866 = vst.msk [vmem:[#allocation2 + $0x98] sm:$0xff] %vm1846, %v1789
  %1867 = vst.msk [vmem:[#allocation2 + $0xa0] sm:$0xff] %vm1846, %v1791
  %1868 = vst.msk [vmem:[#allocation2 + $0xa8] sm:$0xff] %vm1846, %v1793
  %1869 = vst.msk [vmem:[#allocation2 + $0xb0] sm:$0xff] %vm1846, %v1795
  %1870 = vst.msk [vmem:[#allocation2 + $0xb8] sm:$0xff] %vm1846, %v1797
  %1871 = vst.msk [vmem:[#allocation2 + $0xc0] sm:$0xff] %vm1846, %v1799
  %1872 = vst.msk [vmem:[#allocation2 + $0xc8] sm:$0xff] %vm1846, %v1801
  %1873 = vst.msk [vmem:[#allocation2 + $0xd0] sm:$0xff] %vm1846, %v1803
  %1874 = vst.msk [vmem:[#allocation2 + $0xd8] sm:$0xff] %vm1846, %v1805
  %1875 = vst.msk [vmem:[#allocation2 + $0xe0] sm:$0xff] %vm1846, %v1807
  %1876 = vst.msk [vmem:[#allocation2 + $0xe8] sm:$0xff] %vm1846, %v1809
  %1877 = vst.msk [vmem:[#allocation2 + $0xf0] sm:$0xff] %vm1846, %v1811
  %1878 = vst.msk [vmem:[#allocation2 + $0xf8] sm:$0xff] %vm1846, %v1813
  %v1883 = vunpack.c.l.b16 %v114
  %v1884 = vunpack.c.l.b16 %v115
  %v1885 = vunpack.c.l.b16 %v168
  %v1886 = vunpack.c.l.b16 %v169
  %v1887 = vpack.c.b16 %v1884, %v1883
  %v1888 = vpack.c.b16 %v1886, %v1885
  %1889 = vrot.lane.b32.xlu0 %v303, 12
  %v1890 = vpop.permute.xlu0 %1889
  %1891 = vrot.lane.b32.xlu0 %v304, 12
  %v1892 = vpop.permute.xlu0 %1891
  %1893 = vrot.lane.b32.xlu0 %v305, 12
  %v1894 = vpop.permute.xlu0 %1893
  %1895 = vrot.lane.b32.xlu0 %v306, 12
  %v1896 = vpop.permute.xlu0 %1895
  %1897 = vrot.lane.b32.xlu0 %v307, 12
  %v1898 = vpop.permute.xlu0 %1897
  %1899 = vrot.lane.b32.xlu0 %v308, 12
  %v1900 = vpop.permute.xlu0 %1899
  %1901 = vrot.lane.b32.xlu0 %v309, 12
  %v1902 = vpop.permute.xlu0 %1901
  %1903 = vrot.lane.b32.xlu0 %v310, 12
  %v1904 = vpop.permute.xlu0 %1903
  %1905 = vrot.lane.b32.xlu0 %v311, 12
  %v1906 = vpop.permute.xlu0 %1905
  %1907 = vrot.lane.b32.xlu0 %v312, 12
  %v1908 = vpop.permute.xlu0 %1907
  %1909 = vrot.lane.b32.xlu0 %v313, 12
  %v1910 = vpop.permute.xlu0 %1909
  %1911 = vrot.lane.b32.xlu0 %v314, 12
  %v1912 = vpop.permute.xlu0 %1911
  %1913 = vrot.lane.b32.xlu0 %v315, 12
  %v1914 = vpop.permute.xlu0 %1913
  %1915 = vrot.lane.b32.xlu0 %v316, 12
  %v1916 = vpop.permute.xlu0 %1915
  %1917 = vrot.lane.b32.xlu0 %v317, 12
  %v1918 = vpop.permute.xlu0 %1917
  %1919 = vrot.lane.b32.xlu0 %v1887, 12
  %v1920 = vpop.permute.xlu0 %1919
  %1921 = vrot.lane.b32.xlu0 %v319, 12
  %v1922 = vpop.permute.xlu0 %1921
  %1923 = vrot.lane.b32.xlu0 %v320, 12
  %v1924 = vpop.permute.xlu0 %1923
  %1925 = vrot.lane.b32.xlu0 %v321, 12
  %v1926 = vpop.permute.xlu0 %1925
  %1927 = vrot.lane.b32.xlu0 %v322, 12
  %v1928 = vpop.permute.xlu0 %1927
  %1929 = vrot.lane.b32.xlu0 %v323, 12
  %v1930 = vpop.permute.xlu0 %1929
  %1931 = vrot.lane.b32.xlu0 %v324, 12
  %v1932 = vpop.permute.xlu0 %1931
  %1933 = vrot.lane.b32.xlu0 %v325, 12
  %v1934 = vpop.permute.xlu0 %1933
  %1935 = vrot.lane.b32.xlu0 %v326, 12
  %v1936 = vpop.permute.xlu0 %1935
  %1937 = vrot.lane.b32.xlu0 %v327, 12
  %v1938 = vpop.permute.xlu0 %1937
  %1939 = vrot.lane.b32.xlu0 %v328, 12
  %v1940 = vpop.permute.xlu0 %1939
  %1941 = vrot.lane.b32.xlu0 %v329, 12
  %v1942 = vpop.permute.xlu0 %1941
  %1943 = vrot.lane.b32.xlu0 %v330, 12
  %v1944 = vpop.permute.xlu0 %1943
  %1945 = vrot.lane.b32.xlu0 %v331, 12
  %v1946 = vpop.permute.xlu0 %1945
  %1947 = vrot.lane.b32.xlu0 %v332, 12
  %v1948 = vpop.permute.xlu0 %1947
  %1949 = vrot.lane.b32.xlu0 %v333, 12
  %v1950 = vpop.permute.xlu0 %1949
  %1951 = vrot.lane.b32.xlu0 %v1888, 12
  %v1952 = vpop.permute.xlu0 %1951
  %vm1985 = vcmask 130144
  %1986 = vst.msk [vmem:[#allocation2] sm:$0xff] %vm1985, %v1890
  %1987 = vst.msk [vmem:[#allocation2 + $0x8] sm:$0xff] %vm1985, %v1892
  %1988 = vst.msk [vmem:[#allocation2 + $0x10] sm:$0xff] %vm1985, %v1894
  %1989 = vst.msk [vmem:[#allocation2 + $0x18] sm:$0xff] %vm1985, %v1896
  %1990 = vst.msk [vmem:[#allocation2 + $0x20] sm:$0xff] %vm1985, %v1898
  %1991 = vst.msk [vmem:[#allocation2 + $0x28] sm:$0xff] %vm1985, %v1900
  %1992 = vst.msk [vmem:[#allocation2 + $0x30] sm:$0xff] %vm1985, %v1902
  %1993 = vst.msk [vmem:[#allocation2 + $0x38] sm:$0xff] %vm1985, %v1904
  %1994 = vst.msk [vmem:[#allocation2 + $0x40] sm:$0xff] %vm1985, %v1906
  %1995 = vst.msk [vmem:[#allocation2 + $0x48] sm:$0xff] %vm1985, %v1908
  %1996 = vst.msk [vmem:[#allocation2 + $0x50] sm:$0xff] %vm1985, %v1910
  %1997 = vst.msk [vmem:[#allocation2 + $0x58] sm:$0xff] %vm1985, %v1912
  %1998 = vst.msk [vmem:[#allocation2 + $0x60] sm:$0xff] %vm1985, %v1914
  %1999 = vst.msk [vmem:[#allocation2 + $0x68] sm:$0xff] %vm1985, %v1916
  %2000 = vst.msk [vmem:[#allocation2 + $0x70] sm:$0xff] %vm1985, %v1918
  %2001 = vst.msk [vmem:[#allocation2 + $0x78] sm:$0xff] %vm1985, %v1920
  %2002 = vst.msk [vmem:[#allocation2 + $0x80] sm:$0xff] %vm1985, %v1922
  %2003 = vst.msk [vmem:[#allocation2 + $0x88] sm:$0xff] %vm1985, %v1924
  %2004 = vst.msk [vmem:[#allocation2 + $0x90] sm:$0xff] %vm1985, %v1926
  %2005 = vst.msk [vmem:[#allocation2 + $0x98] sm:$0xff] %vm1985, %v1928
  %2006 = vst.msk [vmem:[#allocation2 + $0xa0] sm:$0xff] %vm1985, %v1930
  %2007 = vst.msk [vmem:[#allocation2 + $0xa8] sm:$0xff] %vm1985, %v1932
  %2008 = vst.msk [vmem:[#allocation2 + $0xb0] sm:$0xff] %vm1985, %v1934
  %2009 = vst.msk [vmem:[#allocation2 + $0xb8] sm:$0xff] %vm1985, %v1936
  %2010 = vst.msk [vmem:[#allocation2 + $0xc0] sm:$0xff] %vm1985, %v1938
  %2011 = vst.msk [vmem:[#allocation2 + $0xc8] sm:$0xff] %vm1985, %v1940
  %2012 = vst.msk [vmem:[#allocation2 + $0xd0] sm:$0xff] %vm1985, %v1942
  %2013 = vst.msk [vmem:[#allocation2 + $0xd8] sm:$0xff] %vm1985, %v1944
  %2014 = vst.msk [vmem:[#allocation2 + $0xe0] sm:$0xff] %vm1985, %v1946
  %2015 = vst.msk [vmem:[#allocation2 + $0xe8] sm:$0xff] %vm1985, %v1948
  %2016 = vst.msk [vmem:[#allocation2 + $0xf0] sm:$0xff] %vm1985, %v1950
  %2017 = vst.msk [vmem:[#allocation2 + $0xf8] sm:$0xff] %vm1985, %v1952
  %v2019 = vshrl.u32 %v114, 16
  %v2021 = vrot.slane %v2019, 4
  %v2022 = vshll.u32 %v114, 16
  %v2024 = vrot.slane %v2022, 5
  %v2025 = vor.u32 %v2021, %v2024
  %v2026 = vrot.slane %v2025, 4
  %v2028 = vshll.u32 %v115, 16
  %v2030 = vrot.slane %v2028, 5
  %v2031 = vsel %vm401, %v2026, %v2030
  %v2032 = vshrl.u32 %v115, 16
  %v2034 = vrot.slane %v2032, 4
  %v2035 = vor.u32 %v2034, %v2030
  %v2036 = vrot.slane %v2035, 4
  %v2038 = vshll.u32 %v116, 16
  %v2040 = vrot.slane %v2038, 5
  %v2041 = vsel %vm401, %v2036, %v2040
  %v2043 = vshrl.u32 %v168, 16
  %v2045 = vrot.slane %v2043, 4
  %v2046 = vshll.u32 %v168, 16
  %v2048 = vrot.slane %v2046, 5
  %v2049 = vor.u32 %v2045, %v2048
  %v2050 = vrot.slane %v2049, 4
  %v2052 = vshll.u32 %v169, 16
  %v2054 = vrot.slane %v2052, 5
  %v2055 = vsel %vm401, %v2050, %v2054
  %v2056 = vshrl.u32 %v169, 16
  %v2058 = vrot.slane %v2056, 4
  %v2059 = vor.u32 %v2058, %v2054
  %v2060 = vrot.slane %v2059, 4
  %v2062 = vshll.u32 %v170, 16
  %v2064 = vrot.slane %v2062, 5
  %v2065 = vsel %vm401, %v2060, %v2064
  %v2066 = vunpack.c.l.b16 %v2031
  %v2067 = vunpack.c.l.b16 %v2041
  %v2068 = vunpack.c.l.b16 %v2055
  %v2069 = vunpack.c.l.b16 %v2065
  %v2070 = vpack.c.b16 %v2067, %v2066
  %v2071 = vpack.c.b16 %v2069, %v2068
  %2072 = vrot.lane.b32.xlu0 %v1235, 16
  %v2073 = vpop.permute.xlu0 %2072
  %2074 = vrot.lane.b32.xlu0 %v1236, 16
  %v2075 = vpop.permute.xlu0 %2074
  %2076 = vrot.lane.b32.xlu0 %v1237, 16
  %v2077 = vpop.permute.xlu0 %2076
  %2078 = vrot.lane.b32.xlu0 %v1238, 16
  %v2079 = vpop.permute.xlu0 %2078
  %2080 = vrot.lane.b32.xlu0 %v1239, 16
  %v2081 = vpop.permute.xlu0 %2080
  %2082 = vrot.lane.b32.xlu0 %v1240, 16
  %v2083 = vpop.permute.xlu0 %2082
  %2084 = vrot.lane.b32.xlu0 %v1241, 16
  %v2085 = vpop.permute.xlu0 %2084
  %2086 = vrot.lane.b32.xlu0 %v1242, 16
  %v2087 = vpop.permute.xlu0 %2086
  %2088 = vrot.lane.b32.xlu0 %v1243, 16
  %v2089 = vpop.permute.xlu0 %2088
  %2090 = vrot.lane.b32.xlu0 %v1244, 16
  %v2091 = vpop.permute.xlu0 %2090
  %2092 = vrot.lane.b32.xlu0 %v1245, 16
  %v2093 = vpop.permute.xlu0 %2092
  %2094 = vrot.lane.b32.xlu0 %v1246, 16
  %v2095 = vpop.permute.xlu0 %2094
  %2096 = vrot.lane.b32.xlu0 %v1247, 16
  %v2097 = vpop.permute.xlu0 %2096
  %2098 = vrot.lane.b32.xlu0 %v1248, 16
  %v2099 = vpop.permute.xlu0 %2098
  %2100 = vrot.lane.b32.xlu0 %v1249, 16
  %v2101 = vpop.permute.xlu0 %2100
  %2102 = vrot.lane.b32.xlu0 %v2070, 16
  %v2103 = vpop.permute.xlu0 %2102
  %2104 = vrot.lane.b32.xlu0 %v1251, 16
  %v2105 = vpop.permute.xlu0 %2104
  %2106 = vrot.lane.b32.xlu0 %v1252, 16
  %v2107 = vpop.permute.xlu0 %2106
  %2108 = vrot.lane.b32.xlu0 %v1253, 16
  %v2109 = vpop.permute.xlu0 %2108
  %2110 = vrot.lane.b32.xlu0 %v1254, 16
  %v2111 = vpop.permute.xlu0 %2110
  %2112 = vrot.lane.b32.xlu0 %v1255, 16
  %v2113 = vpop.permute.xlu0 %2112
  %2114 = vrot.lane.b32.xlu0 %v1256, 16
  %v2115 = vpop.permute.xlu0 %2114
  %2116 = vrot.lane.b32.xlu0 %v1257, 16
  %v2117 = vpop.permute.xlu0 %2116
  %2118 = vrot.lane.b32.xlu0 %v1258, 16
  %v2119 = vpop.permute.xlu0 %2118
  %2120 = vrot.lane.b32.xlu0 %v1259, 16
  %v2121 = vpop.permute.xlu0 %2120
  %2122 = vrot.lane.b32.xlu0 %v1260, 16
  %v2123 = vpop.permute.xlu0 %2122
  %2124 = vrot.lane.b32.xlu0 %v1261, 16
  %v2125 = vpop.permute.xlu0 %2124
  %2126 = vrot.lane.b32.xlu0 %v1262, 16
  %v2127 = vpop.permute.xlu0 %2126
  %2128 = vrot.lane.b32.xlu0 %v1263, 16
  %v2129 = vpop.permute.xlu0 %2128
  %2130 = vrot.lane.b32.xlu0 %v1264, 16
  %v2131 = vpop.permute.xlu0 %2130
  %2132 = vrot.lane.b32.xlu0 %v1265, 16
  %v2133 = vpop.permute.xlu0 %2132
  %2134 = vrot.lane.b32.xlu0 %v2071, 16
  %v2135 = vpop.permute.xlu0 %2134
  %vm2168 = vcmask 162944
  %2169 = vst.msk [vmem:[#allocation2] sm:$0xff] %vm2168, %v2073
  %2170 = vst.msk [vmem:[#allocation2 + $0x8] sm:$0xff] %vm2168, %v2075
  %2171 = vst.msk [vmem:[#allocation2 + $0x10] sm:$0xff] %vm2168, %v2077
  %2172 = vst.msk [vmem:[#allocation2 + $0x18] sm:$0xff] %vm2168, %v2079
  %2173 = vst.msk [vmem:[#allocation2 + $0x20] sm:$0xff] %vm2168, %v2081
  %2174 = vst.msk [vmem:[#allocation2 + $0x28] sm:$0xff] %vm2168, %v2083
  %2175 = vst.msk [vmem:[#allocation2 + $0x30] sm:$0xff] %vm2168, %v2085
  %2176 = vst.msk [vmem:[#allocation2 + $0x38] sm:$0xff] %vm2168, %v2087
  %2177 = vst.msk [vmem:[#allocation2 + $0x40] sm:$0xff] %vm2168, %v2089
  %2178 = vst.msk [vmem:[#allocation2 + $0x48] sm:$0xff] %vm2168, %v2091
  %2179 = vst.msk [vmem:[#allocation2 + $0x50] sm:$0xff] %vm2168, %v2093
  %2180 = vst.msk [vmem:[#allocation2 + $0x58] sm:$0xff] %vm2168, %v2095
  %2181 = vst.msk [vmem:[#allocation2 + $0x60] sm:$0xff] %vm2168, %v2097
  %2182 = vst.msk [vmem:[#allocation2 + $0x68] sm:$0xff] %vm2168, %v2099
  %2183 = vst.msk [vmem:[#allocation2 + $0x70] sm:$0xff] %vm2168, %v2101
  %2184 = vst.msk [vmem:[#allocation2 + $0x78] sm:$0xff] %vm2168, %v2103
  %2185 = vst.msk [vmem:[#allocation2 + $0x80] sm:$0xff] %vm2168, %v2105
  %2186 = vst.msk [vmem:[#allocation2 + $0x88] sm:$0xff] %vm2168, %v2107
  %2187 = vst.msk [vmem:[#allocation2 + $0x90] sm:$0xff] %vm2168, %v2109
  %2188 = vst.msk [vmem:[#allocation2 + $0x98] sm:$0xff] %vm2168, %v2111
  %2189 = vst.msk [vmem:[#allocation2 + $0xa0] sm:$0xff] %vm2168, %v2113
  %2190 = vst.msk [vmem:[#allocation2 + $0xa8] sm:$0xff] %vm2168, %v2115
  %2191 = vst.msk [vmem:[#allocation2 + $0xb0] sm:$0xff] %vm2168, %v2117
  %2192 = vst.msk [vmem:[#allocation2 + $0xb8] sm:$0xff] %vm2168, %v2119
  %2193 = vst.msk [vmem:[#allocation2 + $0xc0] sm:$0xff] %vm2168, %v2121
  %2194 = vst.msk [vmem:[#allocation2 + $0xc8] sm:$0xff] %vm2168, %v2123
  %2195 = vst.msk [vmem:[#allocation2 + $0xd0] sm:$0xff] %vm2168, %v2125
  %2196 = vst.msk [vmem:[#allocation2 + $0xd8] sm:$0xff] %vm2168, %v2127
  %2197 = vst.msk [vmem:[#allocation2 + $0xe0] sm:$0xff] %vm2168, %v2129
  %2198 = vst.msk [vmem:[#allocation2 + $0xe8] sm:$0xff] %vm2168, %v2131
  %2199 = vst.msk [vmem:[#allocation2 + $0xf0] sm:$0xff] %vm2168, %v2133
  %2200 = vst.msk [vmem:[#allocation2 + $0xf8] sm:$0xff] %vm2168, %v2135
  %v2203 = vrot.slane %v114, 5
  %v2204 = vrot.slane %v2203, 4
  %v2205 = vrot.slane %v115, 5
  %v2206 = vsel %vm1429, %v2204, %v2205
  %v2207 = vrot.slane %v2205, 4
  %v2208 = vrot.slane %v116, 5
  %v2209 = vsel %vm1429, %v2207, %v2208
  %v2210 = vrot.slane %v168, 5
  %v2211 = vrot.slane %v2210, 4
  %v2212 = vrot.slane %v169, 5
  %v2213 = vsel %vm1429, %v2211, %v2212
  %v2214 = vrot.slane %v2212, 4
  %v2215 = vrot.slane %v170, 5
  %v2216 = vsel %vm1429, %v2214, %v2215
  %v2217 = vunpack.c.l.b16 %v2206
  %v2218 = vunpack.c.l.b16 %v2209
  %v2219 = vunpack.c.l.b16 %v2213
  %v2220 = vunpack.c.l.b16 %v2216
  %v2221 = vpack.c.b16 %v2218, %v2217
  %v2222 = vpack.c.b16 %v2220, %v2219
  %2223 = vrot.lane.b32.xlu0 %v1719, 20
  %v2224 = vpop.permute.xlu0 %2223
  %2225 = vrot.lane.b32.xlu0 %v1720, 20
  %v2226 = vpop.permute.xlu0 %2225
  %2227 = vrot.lane.b32.xlu0 %v1721, 20
  %v2228 = vpop.permute.xlu0 %2227
  %2229 = vrot.lane.b32.xlu0 %v1722, 20
  %v2230 = vpop.permute.xlu0 %2229
  %2231 = vrot.lane.b32.xlu0 %v1723, 20
  %v2232 = vpop.permute.xlu0 %2231
  %2233 = vrot.lane.b32.xlu0 %v1724, 20
  %v2234 = vpop.permute.xlu0 %2233
  %2235 = vrot.lane.b32.xlu0 %v1725, 20
  %v2236 = vpop.permute.xlu0 %2235
  %2237 = vrot.lane.b32.xlu0 %v1726, 20
  %v2238 = vpop.permute.xlu0 %2237
  %2239 = vrot.lane.b32.xlu0 %v1727, 20
  %v2240 = vpop.permute.xlu0 %2239
  %2241 = vrot.lane.b32.xlu0 %v1728, 20
  %v2242 = vpop.permute.xlu0 %2241
  %2243 = vrot.lane.b32.xlu0 %v1729, 20
  %v2244 = vpop.permute.xlu0 %2243
  %2245 = vrot.lane.b32.xlu0 %v1730, 20
  %v2246 = vpop.permute.xlu0 %2245
  %2247 = vrot.lane.b32.xlu0 %v1731, 20
  %v2248 = vpop.permute.xlu0 %2247
  %2249 = vrot.lane.b32.xlu0 %v1732, 20
  %v2250 = vpop.permute.xlu0 %2249
  %2251 = vrot.lane.b32.xlu0 %v1733, 20
  %v2252 = vpop.permute.xlu0 %2251
  %2253 = vrot.lane.b32.xlu0 %v2221, 20
  %v2254 = vpop.permute.xlu0 %2253
  %2255 = vrot.lane.b32.xlu0 %v1735, 20
  %v2256 = vpop.permute.xlu0 %2255
  %2257 = vrot.lane.b32.xlu0 %v1736, 20
  %v2258 = vpop.permute.xlu0 %2257
  %2259 = vrot.lane.b32.xlu0 %v1737, 20
  %v2260 = vpop.permute.xlu0 %2259
  %2261 = vrot.lane.b32.xlu0 %v1738, 20
  %v2262 = vpop.permute.xlu0 %2261
  %2263 = vrot.lane.b32.xlu0 %v1739, 20
  %v2264 = vpop.permute.xlu0 %2263
  %2265 = vrot.lane.b32.xlu0 %v1740, 20
  %v2266 = vpop.permute.xlu0 %2265
  %2267 = vrot.lane.b32.xlu0 %v1741, 20
  %v2268 = vpop.permute.xlu0 %2267
  %2269 = vrot.lane.b32.xlu0 %v1742, 20
  %v2270 = vpop.permute.xlu0 %2269
  %2271 = vrot.lane.b32.xlu0 %v1743, 20
  %v2272 = vpop.permute.xlu0 %2271
  %2273 = vrot.lane.b32.xlu0 %v1744, 20
  %v2274 = vpop.permute.xlu0 %2273
  %2275 = vrot.lane.b32.xlu0 %v1745, 20
  %v2276 = vpop.permute.xlu0 %2275
  %2277 = vrot.lane.b32.xlu0 %v1746, 20
  %v2278 = vpop.permute.xlu0 %2277
  %2279 = vrot.lane.b32.xlu0 %v1747, 20
  %v2280 = vpop.permute.xlu0 %2279
  %2281 = vrot.lane.b32.xlu0 %v1748, 20
  %v2282 = vpop.permute.xlu0 %2281
  %2283 = vrot.lane.b32.xlu0 %v1749, 20
  %v2284 = vpop.permute.xlu0 %2283
  %2285 = vrot.lane.b32.xlu0 %v2222, 20
  %v2286 = vpop.permute.xlu0 %2285
  %vm2319 = vcmask 195744
  %2320 = vst.msk [vmem:[#allocation2] sm:$0xff] %vm2319, %v2224
  %2321 = vst.msk [vmem:[#allocation2 + $0x8] sm:$0xff] %vm2319, %v2226
  %2322 = vst.msk [vmem:[#allocation2 + $0x10] sm:$0xff] %vm2319, %v2228
  %2323 = vst.msk [vmem:[#allocation2 + $0x18] sm:$0xff] %vm2319, %v2230
  %2324 = vst.msk [vmem:[#allocation2 + $0x20] sm:$0xff] %vm2319, %v2232
  %2325 = vst.msk [vmem:[#allocation2 + $0x28] sm:$0xff] %vm2319, %v2234
  %2326 = vst.msk [vmem:[#allocation2 + $0x30] sm:$0xff] %vm2319, %v2236
  %2327 = vst.msk [vmem:[#allocation2 + $0x38] sm:$0xff] %vm2319, %v2238
  %2328 = vst.msk [vmem:[#allocation2 + $0x40] sm:$0xff] %vm2319, %v2240
  %2329 = vst.msk [vmem:[#allocation2 + $0x48] sm:$0xff] %vm2319, %v2242
  %2330 = vst.msk [vmem:[#allocation2 + $0x50] sm:$0xff] %vm2319, %v2244
  %2331 = vst.msk [vmem:[#allocation2 + $0x58] sm:$0xff] %vm2319, %v2246
  %2332 = vst.msk [vmem:[#allocation2 + $0x60] sm:$0xff] %vm2319, %v2248
  %2333 = vst.msk [vmem:[#allocation2 + $0x68] sm:$0xff] %vm2319, %v2250
  %2334 = vst.msk [vmem:[#allocation2 + $0x70] sm:$0xff] %vm2319, %v2252
  %2335 = vst.msk [vmem:[#allocation2 + $0x78] sm:$0xff] %vm2319, %v2254
  %2336 = vst.msk [vmem:[#allocation2 + $0x80] sm:$0xff] %vm2319, %v2256
  %2337 = vst.msk [vmem:[#allocation2 + $0x88] sm:$0xff] %vm2319, %v2258
  %2338 = vst.msk [vmem:[#allocation2 + $0x90] sm:$0xff] %vm2319, %v2260
  %2339 = vst.msk [vmem:[#allocation2 + $0x98] sm:$0xff] %vm2319, %v2262
  %2340 = vst.msk [vmem:[#allocation2 + $0xa0] sm:$0xff] %vm2319, %v2264
  %2341 = vst.msk [vmem:[#allocation2 + $0xa8] sm:$0xff] %vm2319, %v2266
  %2342 = vst.msk [vmem:[#allocation2 + $0xb0] sm:$0xff] %vm2319, %v2268
  %2343 = vst.msk [vmem:[#allocation2 + $0xb8] sm:$0xff] %vm2319, %v2270
  %2344 = vst.msk [vmem:[#allocation2 + $0xc0] sm:$0xff] %vm2319, %v2272
  %2345 = vst.msk [vmem:[#allocation2 + $0xc8] sm:$0xff] %vm2319, %v2274
  %2346 = vst.msk [vmem:[#allocation2 + $0xd0] sm:$0xff] %vm2319, %v2276
  %2347 = vst.msk [vmem:[#allocation2 + $0xd8] sm:$0xff] %vm2319, %v2278
  %2348 = vst.msk [vmem:[#allocation2 + $0xe0] sm:$0xff] %vm2319, %v2280
  %2349 = vst.msk [vmem:[#allocation2 + $0xe8] sm:$0xff] %vm2319, %v2282
  %2350 = vst.msk [vmem:[#allocation2 + $0xf0] sm:$0xff] %vm2319, %v2284
  %2351 = vst.msk [vmem:[#allocation2 + $0xf8] sm:$0xff] %vm2319, %v2286
  %v2356 = vunpack.c.l.b16 %v117
  %v2357 = vunpack.c.l.b16 %v118
  %v2358 = vunpack.c.l.b16 %v171
  %v2359 = vunpack.c.l.b16 %v172
  %v2360 = vpack.c.b16 %v2357, %v2356
  %v2361 = vpack.c.b16 %v2359, %v2358
  %2362 = vrot.lane.b32.xlu0 %v304, 24
  %v2363 = vpop.permute.xlu0 %2362
  %2364 = vrot.lane.b32.xlu0 %v305, 24
  %v2365 = vpop.permute.xlu0 %2364
  %2366 = vrot.lane.b32.xlu0 %v306, 24
  %v2367 = vpop.permute.xlu0 %2366
  %2368 = vrot.lane.b32.xlu0 %v307, 24
  %v2369 = vpop.permute.xlu0 %2368
  %2370 = vrot.lane.b32.xlu0 %v308, 24
  %v2371 = vpop.permute.xlu0 %2370
  %2372 = vrot.lane.b32.xlu0 %v309, 24
  %v2373 = vpop.permute.xlu0 %2372
  %2374 = vrot.lane.b32.xlu0 %v310, 24
  %v2375 = vpop.permute.xlu0 %2374
  %2376 = vrot.lane.b32.xlu0 %v311, 24
  %v2377 = vpop.permute.xlu0 %2376
  %2378 = vrot.lane.b32.xlu0 %v312, 24
  %v2379 = vpop.permute.xlu0 %2378
  %2380 = vrot.lane.b32.xlu0 %v313, 24
  %v2381 = vpop.permute.xlu0 %2380
  %2382 = vrot.lane.b32.xlu0 %v314, 24
  %v2383 = vpop.permute.xlu0 %2382
  %2384 = vrot.lane.b32.xlu0 %v315, 24
  %v2385 = vpop.permute.xlu0 %2384
  %2386 = vrot.lane.b32.xlu0 %v316, 24
  %v2387 = vpop.permute.xlu0 %2386
  %2388 = vrot.lane.b32.xlu0 %v317, 24
  %v2389 = vpop.permute.xlu0 %2388
  %2390 = vrot.lane.b32.xlu0 %v1887, 24
  %v2391 = vpop.permute.xlu0 %2390
  %2392 = vrot.lane.b32.xlu0 %v2360, 24
  %v2393 = vpop.permute.xlu0 %2392
  %2394 = vrot.lane.b32.xlu0 %v320, 24
  %v2395 = vpop.permute.xlu0 %2394
  %2396 = vrot.lane.b32.xlu0 %v321, 24
  %v2397 = vpop.permute.xlu0 %2396
  %2398 = vrot.lane.b32.xlu0 %v322, 24
  %v2399 = vpop.permute.xlu0 %2398
  %2400 = vrot.lane.b32.xlu0 %v323, 24
  %v2401 = vpop.permute.xlu0 %2400
  %2402 = vrot.lane.b32.xlu0 %v324, 24
  %v2403 = vpop.permute.xlu0 %2402
  %2404 = vrot.lane.b32.xlu0 %v325, 24
  %v2405 = vpop.permute.xlu0 %2404
  %2406 = vrot.lane.b32.xlu0 %v326, 24
  %v2407 = vpop.permute.xlu0 %2406
  %2408 = vrot.lane.b32.xlu0 %v327, 24
  %v2409 = vpop.permute.xlu0 %2408
  %2410 = vrot.lane.b32.xlu0 %v328, 24
  %v2411 = vpop.permute.xlu0 %2410
  %2412 = vrot.lane.b32.xlu0 %v329, 24
  %v2413 = vpop.permute.xlu0 %2412
  %2414 = vrot.lane.b32.xlu0 %v330, 24
  %v2415 = vpop.permute.xlu0 %2414
  %2416 = vrot.lane.b32.xlu0 %v331, 24
  %v2417 = vpop.permute.xlu0 %2416
  %2418 = vrot.lane.b32.xlu0 %v332, 24
  %v2419 = vpop.permute.xlu0 %2418
  %2420 = vrot.lane.b32.xlu0 %v333, 24
  %v2421 = vpop.permute.xlu0 %2420
  %2422 = vrot.lane.b32.xlu0 %v1888, 24
  %v2423 = vpop.permute.xlu0 %2422
  %2424 = vrot.lane.b32.xlu0 %v2361, 24
  %v2425 = vpop.permute.xlu0 %2424
  %vm2458 = vcmask 228544
  %2459 = vst.msk [vmem:[#allocation2] sm:$0xff] %vm2458, %v2363
  %2460 = vst.msk [vmem:[#allocation2 + $0x8] sm:$0xff] %vm2458, %v2365
  %2461 = vst.msk [vmem:[#allocation2 + $0x10] sm:$0xff] %vm2458, %v2367
  %2462 = vst.msk [vmem:[#allocation2 + $0x18] sm:$0xff] %vm2458, %v2369
  %2463 = vst.msk [vmem:[#allocation2 + $0x20] sm:$0xff] %vm2458, %v2371
  %2464 = vst.msk [vmem:[#allocation2 + $0x28] sm:$0xff] %vm2458, %v2373
  %2465 = vst.msk [vmem:[#allocation2 + $0x30] sm:$0xff] %vm2458, %v2375
  %2466 = vst.msk [vmem:[#allocation2 + $0x38] sm:$0xff] %vm2458, %v2377
  %2467 = vst.msk [vmem:[#allocation2 + $0x40] sm:$0xff] %vm2458, %v2379
  %2468 = vst.msk [vmem:[#allocation2 + $0x48] sm:$0xff] %vm2458, %v2381
  %2469 = vst.msk [vmem:[#allocation2 + $0x50] sm:$0xff] %vm2458, %v2383
  %2470 = vst.msk [vmem:[#allocation2 + $0x58] sm:$0xff] %vm2458, %v2385
  %2471 = vst.msk [vmem:[#allocation2 + $0x60] sm:$0xff] %vm2458, %v2387
  %2472 = vst.msk [vmem:[#allocation2 + $0x68] sm:$0xff] %vm2458, %v2389
  %2473 = vst.msk [vmem:[#allocation2 + $0x70] sm:$0xff] %vm2458, %v2391
  %2474 = vst.msk [vmem:[#allocation2 + $0x78] sm:$0xff] %vm2458, %v2393
  %2475 = vst.msk [vmem:[#allocation2 + $0x80] sm:$0xff] %vm2458, %v2395
  %2476 = vst.msk [vmem:[#allocation2 + $0x88] sm:$0xff] %vm2458, %v2397
  %2477 = vst.msk [vmem:[#allocation2 + $0x90] sm:$0xff] %vm2458, %v2399
  %2478 = vst.msk [vmem:[#allocation2 + $0x98] sm:$0xff] %vm2458, %v2401
  %2479 = vst.msk [vmem:[#allocation2 + $0xa0] sm:$0xff] %vm2458, %v2403
  %2480 = vst.msk [vmem:[#allocation2 + $0xa8] sm:$0xff] %vm2458, %v2405
  %2481 = vst.msk [vmem:[#allocation2 + $0xb0] sm:$0xff] %vm2458, %v2407
  %2482 = vst.msk [vmem:[#allocation2 + $0xb8] sm:$0xff] %vm2458, %v2409
  %2483 = vst.msk [vmem:[#allocation2 + $0xc0] sm:$0xff] %vm2458, %v2411
  %2484 = vst.msk [vmem:[#allocation2 + $0xc8] sm:$0xff] %vm2458, %v2413
  %2485 = vst.msk [vmem:[#allocation2 + $0xd0] sm:$0xff] %vm2458, %v2415
  %2486 = vst.msk [vmem:[#allocation2 + $0xd8] sm:$0xff] %vm2458, %v2417
  %2487 = vst.msk [vmem:[#allocation2 + $0xe0] sm:$0xff] %vm2458, %v2419
  %2488 = vst.msk [vmem:[#allocation2 + $0xe8] sm:$0xff] %vm2458, %v2421
  %2489 = vst.msk [vmem:[#allocation2 + $0xf0] sm:$0xff] %vm2458, %v2423
  %2490 = vst.msk [vmem:[#allocation2 + $0xf8] sm:$0xff] %vm2458, %v2425
  %v2492 = vshrl.u32 %v117, 16
  %v2494 = vrot.slane %v2492, 4
  %v2495 = vshll.u32 %v117, 16
  %v2497 = vrot.slane %v2495, 5
  %v2498 = vor.u32 %v2494, %v2497
  %v2499 = vrot.slane %v2498, 4
  %v2501 = vshll.u32 %v118, 16
  %v2503 = vrot.slane %v2501, 5
  %v2504 = vsel %vm401, %v2499, %v2503
  %v2505 = vshrl.u32 %v118, 16
  %v2507 = vrot.slane %v2505, 4
  %v2508 = vor.u32 %v2507, %v2503
  %v2509 = vrot.slane %v2508, 4
  %v2511 = vshll.u32 %v119, 16
  %v2513 = vrot.slane %v2511, 5
  %v2514 = vsel %vm401, %v2509, %v2513
  %v2516 = vshrl.u32 %v171, 16
  %v2518 = vrot.slane %v2516, 4
  %v2519 = vshll.u32 %v171, 16
  %v2521 = vrot.slane %v2519, 5
  %v2522 = vor.u32 %v2518, %v2521
  %v2523 = vrot.slane %v2522, 4
  %v2525 = vshll.u32 %v172, 16
  %v2527 = vrot.slane %v2525, 5
  %v2528 = vsel %vm401, %v2523, %v2527
  %v2529 = vshrl.u32 %v172, 16
  %v2531 = vrot.slane %v2529, 4
  %v2532 = vor.u32 %v2531, %v2527
  %v2533 = vrot.slane %v2532, 4
  %v2535 = vshll.u32 %v173, 16
  %v2537 = vrot.slane %v2535, 5
  %v2538 = vsel %vm401, %v2533, %v2537
  %v2539 = vunpack.c.l.b16 %v2504
  %v2540 = vunpack.c.l.b16 %v2514
  %v2541 = vunpack.c.l.b16 %v2528
  %v2542 = vunpack.c.l.b16 %v2538
  %v2543 = vpack.c.b16 %v2540, %v2539
  %v2544 = vpack.c.b16 %v2542, %v2541
  %2545 = vrot.lane.b32.xlu0 %v1236, 28
  %v2546 = vpop.permute.xlu0 %2545
  %2547 = vrot.lane.b32.xlu0 %v1237, 28
  %v2548 = vpop.permute.xlu0 %2547
  %2549 = vrot.lane.b32.xlu0 %v1238, 28
  %v2550 = vpop.permute.xlu0 %2549
  %2551 = vrot.lane.b32.xlu0 %v1239, 28
  %v2552 = vpop.permute.xlu0 %2551
  %2553 = vrot.lane.b32.xlu0 %v1240, 28
  %v2554 = vpop.permute.xlu0 %2553
  %2555 = vrot.lane.b32.xlu0 %v1241, 28
  %v2556 = vpop.permute.xlu0 %2555
  %2557 = vrot.lane.b32.xlu0 %v1242, 28
  %v2558 = vpop.permute.xlu0 %2557
  %2559 = vrot.lane.b32.xlu0 %v1243, 28
  %v2560 = vpop.permute.xlu0 %2559
  %2561 = vrot.lane.b32.xlu0 %v1244, 28
  %v2562 = vpop.permute.xlu0 %2561
  %2563 = vrot.lane.b32.xlu0 %v1245, 28
  %v2564 = vpop.permute.xlu0 %2563
  %2565 = vrot.lane.b32.xlu0 %v1246, 28
  %v2566 = vpop.permute.xlu0 %2565
  %2567 = vrot.lane.b32.xlu0 %v1247, 28
  %v2568 = vpop.permute.xlu0 %2567
  %2569 = vrot.lane.b32.xlu0 %v1248, 28
  %v2570 = vpop.permute.xlu0 %2569
  %2571 = vrot.lane.b32.xlu0 %v1249, 28
  %v2572 = vpop.permute.xlu0 %2571
  %2573 = vrot.lane.b32.xlu0 %v2070, 28
  %v2574 = vpop.permute.xlu0 %2573
  %2575 = vrot.lane.b32.xlu0 %v2543, 28
  %v2576 = vpop.permute.xlu0 %2575
  %2577 = vrot.lane.b32.xlu0 %v1252, 28
  %v2578 = vpop.permute.xlu0 %2577
  %2579 = vrot.lane.b32.xlu0 %v1253, 28
  %v2580 = vpop.permute.xlu0 %2579
  %2581 = vrot.lane.b32.xlu0 %v1254, 28
  %v2582 = vpop.permute.xlu0 %2581
  %2583 = vrot.lane.b32.xlu0 %v1255, 28
  %v2584 = vpop.permute.xlu0 %2583
  %2585 = vrot.lane.b32.xlu0 %v1256, 28
  %v2586 = vpop.permute.xlu0 %2585
  %2587 = vrot.lane.b32.xlu0 %v1257, 28
  %v2588 = vpop.permute.xlu0 %2587
  %2589 = vrot.lane.b32.xlu0 %v1258, 28
  %v2590 = vpop.permute.xlu0 %2589
  %2591 = vrot.lane.b32.xlu0 %v1259, 28
  %v2592 = vpop.permute.xlu0 %2591
  %2593 = vrot.lane.b32.xlu0 %v1260, 28
  %v2594 = vpop.permute.xlu0 %2593
  %2595 = vrot.lane.b32.xlu0 %v1261, 28
  %v2596 = vpop.permute.xlu0 %2595
  %2597 = vrot.lane.b32.xlu0 %v1262, 28
  %v2598 = vpop.permute.xlu0 %2597
  %2599 = vrot.lane.b32.xlu0 %v1263, 28
  %v2600 = vpop.permute.xlu0 %2599
  %2601 = vrot.lane.b32.xlu0 %v1264, 28
  %v2602 = vpop.permute.xlu0 %2601
  %2603 = vrot.lane.b32.xlu0 %v1265, 28
  %v2604 = vpop.permute.xlu0 %2603
  %2605 = vrot.lane.b32.xlu0 %v2071, 28
  %v2606 = vpop.permute.xlu0 %2605
  %2607 = vrot.lane.b32.xlu0 %v2544, 28
  %v2608 = vpop.permute.xlu0 %2607
  %vm2641 = vcmask 261344
  %2642 = vst.msk [vmem:[#allocation2] sm:$0xff] %vm2641, %v2546
  %2643 = vst.msk [vmem:[#allocation2 + $0x8] sm:$0xff] %vm2641, %v2548
  %2644 = vst.msk [vmem:[#allocation2 + $0x10] sm:$0xff] %vm2641, %v2550
  %2645 = vst.msk [vmem:[#allocation2 + $0x18] sm:$0xff] %vm2641, %v2552
  %2646 = vst.msk [vmem:[#allocation2 + $0x20] sm:$0xff] %vm2641, %v2554
  %2647 = vst.msk [vmem:[#allocation2 + $0x28] sm:$0xff] %vm2641, %v2556
  %2648 = vst.msk [vmem:[#allocation2 + $0x30] sm:$0xff] %vm2641, %v2558
  %2649 = vst.msk [vmem:[#allocation2 + $0x38] sm:$0xff] %vm2641, %v2560
  %2650 = vst.msk [vmem:[#allocation2 + $0x40] sm:$0xff] %vm2641, %v2562
  %2651 = vst.msk [vmem:[#allocation2 + $0x48] sm:$0xff] %vm2641, %v2564
  %2652 = vst.msk [vmem:[#allocation2 + $0x50] sm:$0xff] %vm2641, %v2566
  %2653 = vst.msk [vmem:[#allocation2 + $0x58] sm:$0xff] %vm2641, %v2568
  %2654 = vst.msk [vmem:[#allocation2 + $0x60] sm:$0xff] %vm2641, %v2570
  %2655 = vst.msk [vmem:[#allocation2 + $0x68] sm:$0xff] %vm2641, %v2572
  %2656 = vst.msk [vmem:[#allocation2 + $0x70] sm:$0xff] %vm2641, %v2574
  %2657 = vst.msk [vmem:[#allocation2 + $0x78] sm:$0xff] %vm2641, %v2576
  %2658 = vst.msk [vmem:[#allocation2 + $0x80] sm:$0xff] %vm2641, %v2578
  %2659 = vst.msk [vmem:[#allocation2 + $0x88] sm:$0xff] %vm2641, %v2580
  %2660 = vst.msk [vmem:[#allocation2 + $0x90] sm:$0xff] %vm2641, %v2582
  %2661 = vst.msk [vmem:[#allocation2 + $0x98] sm:$0xff] %vm2641, %v2584
  %2662 = vst.msk [vmem:[#allocation2 + $0xa0] sm:$0xff] %vm2641, %v2586
  %2663 = vst.msk [vmem:[#allocation2 + $0xa8] sm:$0xff] %vm2641, %v2588
  %2664 = vst.msk [vmem:[#allocation2 + $0xb0] sm:$0xff] %vm2641, %v2590
  %2665 = vst.msk [vmem:[#allocation2 + $0xb8] sm:$0xff] %vm2641, %v2592
  %2666 = vst.msk [vmem:[#allocation2 + $0xc0] sm:$0xff] %vm2641, %v2594
  %2667 = vst.msk [vmem:[#allocation2 + $0xc8] sm:$0xff] %vm2641, %v2596
  %2668 = vst.msk [vmem:[#allocation2 + $0xd0] sm:$0xff] %vm2641, %v2598
  %2669 = vst.msk [vmem:[#allocation2 + $0xd8] sm:$0xff] %vm2641, %v2600
  %2670 = vst.msk [vmem:[#allocation2 + $0xe0] sm:$0xff] %vm2641, %v2602
  %2671 = vst.msk [vmem:[#allocation2 + $0xe8] sm:$0xff] %vm2641, %v2604
  %2672 = vst.msk [vmem:[#allocation2 + $0xf0] sm:$0xff] %vm2641, %v2606
  %2673 = vst.msk [vmem:[#allocation2 + $0xf8] sm:$0xff] %vm2641, %v2608
  %v2676 = vrot.slane %v117, 5
  %v2677 = vrot.slane %v2676, 4
  %v2678 = vrot.slane %v118, 5
  %v2679 = vsel %vm1429, %v2677, %v2678
  %v2680 = vrot.slane %v2678, 4
  %v2681 = vrot.slane %v119, 5
  %v2682 = vsel %vm1429, %v2680, %v2681
  %v2683 = vrot.slane %v171, 5
  %v2684 = vrot.slane %v2683, 4
  %v2685 = vrot.slane %v172, 5
  %v2686 = vsel %vm1429, %v2684, %v2685
  %v2687 = vrot.slane %v2685, 4
  %v2688 = vrot.slane %v173, 5
  %v2689 = vsel %vm1429, %v2687, %v2688
  %v2690 = vunpack.c.l.b16 %v2679
  %v2691 = vunpack.c.l.b16 %v2682
  %v2692 = vunpack.c.l.b16 %v2686
  %v2693 = vunpack.c.l.b16 %v2689
  %v2694 = vpack.c.b16 %v2691, %v2690
  %v2695 = vpack.c.b16 %v2693, %v2692
  %2696 = vrot.lane.b32.xlu0 %v1720, 32
  %v2697 = vpop.permute.xlu0 %2696
  %2698 = vrot.lane.b32.xlu0 %v1721, 32
  %v2699 = vpop.permute.xlu0 %2698
  %2700 = vrot.lane.b32.xlu0 %v1722, 32
  %v2701 = vpop.permute.xlu0 %2700
  %2702 = vrot.lane.b32.xlu0 %v1723, 32
  %v2703 = vpop.permute.xlu0 %2702
  %2704 = vrot.lane.b32.xlu0 %v1724, 32
  %v2705 = vpop.permute.xlu0 %2704
  %2706 = vrot.lane.b32.xlu0 %v1725, 32
  %v2707 = vpop.permute.xlu0 %2706
  %2708 = vrot.lane.b32.xlu0 %v1726, 32
  %v2709 = vpop.permute.xlu0 %2708
  %2710 = vrot.lane.b32.xlu0 %v1727, 32
  %v2711 = vpop.permute.xlu0 %2710
  %2712 = vrot.lane.b32.xlu0 %v1728, 32
  %v2713 = vpop.permute.xlu0 %2712
  %2714 = vrot.lane.b32.xlu0 %v1729, 32
  %v2715 = vpop.permute.xlu0 %2714
  %2716 = vrot.lane.b32.xlu0 %v1730, 32
  %v2717 = vpop.permute.xlu0 %2716
  %2718 = vrot.lane.b32.xlu0 %v1731, 32
  %v2719 = vpop.permute.xlu0 %2718
  %2720 = vrot.lane.b32.xlu0 %v1732, 32
  %v2721 = vpop.permute.xlu0 %2720
  %2722 = vrot.lane.b32.xlu0 %v1733, 32
  %v2723 = vpop.permute.xlu0 %2722
  %2724 = vrot.lane.b32.xlu0 %v2221, 32
  %v2725 = vpop.permute.xlu0 %2724
  %2726 = vrot.lane.b32.xlu0 %v2694, 32
  %v2727 = vpop.permute.xlu0 %2726
  %2728 = vrot.lane.b32.xlu0 %v1736, 32
  %v2729 = vpop.permute.xlu0 %2728
  %2730 = vrot.lane.b32.xlu0 %v1737, 32
  %v2731 = vpop.permute.xlu0 %2730
  %2732 = vrot.lane.b32.xlu0 %v1738, 32
  %v2733 = vpop.permute.xlu0 %2732
  %2734 = vrot.lane.b32.xlu0 %v1739, 32
  %v2735 = vpop.permute.xlu0 %2734
  %2736 = vrot.lane.b32.xlu0 %v1740, 32
  %v2737 = vpop.permute.xlu0 %2736
  %2738 = vrot.lane.b32.xlu0 %v1741, 32
  %v2739 = vpop.permute.xlu0 %2738
  %2740 = vrot.lane.b32.xlu0 %v1742, 32
  %v2741 = vpop.permute.xlu0 %2740
  %2742 = vrot.lane.b32.xlu0 %v1743, 32
  %v2743 = vpop.permute.xlu0 %2742
  %2744 = vrot.lane.b32.xlu0 %v1744, 32
  %v2745 = vpop.permute.xlu0 %2744
  %2746 = vrot.lane.b32.xlu0 %v1745, 32
  %v2747 = vpop.permute.xlu0 %2746
  %2748 = vrot.lane.b32.xlu0 %v1746, 32
  %v2749 = vpop.permute.xlu0 %2748
  %2750 = vrot.lane.b32.xlu0 %v1747, 32
  %v2751 = vpop.permute.xlu0 %2750
  %2752 = vrot.lane.b32.xlu0 %v1748, 32
  %v2753 = vpop.permute.xlu0 %2752
  %2754 = vrot.lane.b32.xlu0 %v1749, 32
  %v2755 = vpop.permute.xlu0 %2754
  %2756 = vrot.lane.b32.xlu0 %v2222, 32
  %v2757 = vpop.permute.xlu0 %2756
  %2758 = vrot.lane.b32.xlu0 %v2695, 32
  %v2759 = vpop.permute.xlu0 %2758
  %vm2792 = vcmask 294144
  %2793 = vst.msk [vmem:[#allocation2] sm:$0xff] %vm2792, %v2697
  %2794 = vst.msk [vmem:[#allocation2 + $0x8] sm:$0xff] %vm2792, %v2699
  %2795 = vst.msk [vmem:[#allocation2 + $0x10] sm:$0xff] %vm2792, %v2701
  %2796 = vst.msk [vmem:[#allocation2 + $0x18] sm:$0xff] %vm2792, %v2703
  %2797 = vst.msk [vmem:[#allocation2 + $0x20] sm:$0xff] %vm2792, %v2705
  %2798 = vst.msk [vmem:[#allocation2 + $0x28] sm:$0xff] %vm2792, %v2707
  %2799 = vst.msk [vmem:[#allocation2 + $0x30] sm:$0xff] %vm2792, %v2709
  %2800 = vst.msk [vmem:[#allocation2 + $0x38] sm:$0xff] %vm2792, %v2711
  %2801 = vst.msk [vmem:[#allocation2 + $0x40] sm:$0xff] %vm2792, %v2713
  %2802 = vst.msk [vmem:[#allocation2 + $0x48] sm:$0xff] %vm2792, %v2715
  %2803 = vst.msk [vmem:[#allocation2 + $0x50] sm:$0xff] %vm2792, %v2717
  %2804 = vst.msk [vmem:[#allocation2 + $0x58] sm:$0xff] %vm2792, %v2719
  %2805 = vst.msk [vmem:[#allocation2 + $0x60] sm:$0xff] %vm2792, %v2721
  %2806 = vst.msk [vmem:[#allocation2 + $0x68] sm:$0xff] %vm2792, %v2723
  %2807 = vst.msk [vmem:[#allocation2 + $0x70] sm:$0xff] %vm2792, %v2725
  %2808 = vst.msk [vmem:[#allocation2 + $0x78] sm:$0xff] %vm2792, %v2727
  %2809 = vst.msk [vmem:[#allocation2 + $0x80] sm:$0xff] %vm2792, %v2729
  %2810 = vst.msk [vmem:[#allocation2 + $0x88] sm:$0xff] %vm2792, %v2731
  %2811 = vst.msk [vmem:[#allocation2 + $0x90] sm:$0xff] %vm2792, %v2733
  %2812 = vst.msk [vmem:[#allocation2 + $0x98] sm:$0xff] %vm2792, %v2735
  %2813 = vst.msk [vmem:[#allocation2 + $0xa0] sm:$0xff] %vm2792, %v2737
  %2814 = vst.msk [vmem:[#allocation2 + $0xa8] sm:$0xff] %vm2792, %v2739
  %2815 = vst.msk [vmem:[#allocation2 + $0xb0] sm:$0xff] %vm2792, %v2741
  %2816 = vst.msk [vmem:[#allocation2 + $0xb8] sm:$0xff] %vm2792, %v2743
  %2817 = vst.msk [vmem:[#allocation2 + $0xc0] sm:$0xff] %vm2792, %v2745
  %2818 = vst.msk [vmem:[#allocation2 + $0xc8] sm:$0xff] %vm2792, %v2747
  %2819 = vst.msk [vmem:[#allocation2 + $0xd0] sm:$0xff] %vm2792, %v2749
  %2820 = vst.msk [vmem:[#allocation2 + $0xd8] sm:$0xff] %vm2792, %v2751
  %2821 = vst.msk [vmem:[#allocation2 + $0xe0] sm:$0xff] %vm2792, %v2753
  %2822 = vst.msk [vmem:[#allocation2 + $0xe8] sm:$0xff] %vm2792, %v2755
  %2823 = vst.msk [vmem:[#allocation2 + $0xf0] sm:$0xff] %vm2792, %v2757
  %2824 = vst.msk [vmem:[#allocation2 + $0xf8] sm:$0xff] %vm2792, %v2759
  %v2825 = vld [vmem:[#allocation2] sm:$0xff]
  %v2826 = vld [vmem:[#allocation2 + $0x8] sm:$0xff]
  %v2827 = vld [vmem:[#allocation2 + $0x10] sm:$0xff]
  %v2828 = vld [vmem:[#allocation2 + $0x18] sm:$0xff]
  %v2829 = vld [vmem:[#allocation2 + $0x20] sm:$0xff]
  %v2830 = vld [vmem:[#allocation2 + $0x28] sm:$0xff]
  %v2831 = vld [vmem:[#allocation2 + $0x30] sm:$0xff]
  %v2832 = vld [vmem:[#allocation2 + $0x38] sm:$0xff]
  %v2833 = vld [vmem:[#allocation2 + $0x40] sm:$0xff]
  %v2834 = vld [vmem:[#allocation2 + $0x48] sm:$0xff]
  %v2835 = vld [vmem:[#allocation2 + $0x50] sm:$0xff]
  %v2836 = vld [vmem:[#allocation2 + $0x58] sm:$0xff]
  %v2837 = vld [vmem:[#allocation2 + $0x60] sm:$0xff]
  %v2838 = vld [vmem:[#allocation2 + $0x68] sm:$0xff]
  %v2839 = vld [vmem:[#allocation2 + $0x70] sm:$0xff]
  %v2840 = vld [vmem:[#allocation2 + $0x78] sm:$0xff]
  %v2841 = vld [vmem:[#allocation2 + $0x80] sm:$0xff]
  %v2842 = vld [vmem:[#allocation2 + $0x88] sm:$0xff]
  %v2843 = vld [vmem:[#allocation2 + $0x90] sm:$0xff]
  %v2844 = vld [vmem:[#allocation2 + $0x98] sm:$0xff]
  %v2845 = vld [vmem:[#allocation2 + $0xa0] sm:$0xff]
  %v2846 = vld [vmem:[#allocation2 + $0xa8] sm:$0xff]
  %v2847 = vld [vmem:[#allocation2 + $0xb0] sm:$0xff]
  %v2848 = vld [vmem:[#allocation2 + $0xb8] sm:$0xff]
  %v2849 = vld [vmem:[#allocation2 + $0xc0] sm:$0xff]
  %v2850 = vld [vmem:[#allocation2 + $0xc8] sm:$0xff]
  %v2851 = vld [vmem:[#allocation2 + $0xd0] sm:$0xff]
  %v2852 = vld [vmem:[#allocation2 + $0xd8] sm:$0xff]
  %v2853 = vld [vmem:[#allocation2 + $0xe0] sm:$0xff]
  %v2854 = vld [vmem:[#allocation2 + $0xe8] sm:$0xff]
  %v2855 = vld [vmem:[#allocation2 + $0xf0] sm:$0xff]
  %v2856 = vld [vmem:[#allocation2 + $0xf8] sm:$0xff]
  %v2857 = vld [vmem:[%s2] sm:$0xf]
  %v2858 = vld [vmem:[%s2 + $0x4] sm:$0xf]
  %v2859 = vld [vmem:[%s2 + $0x8] sm:$0xf]
  %v2860 = vld [vmem:[%s2 + $0xc] sm:$0xf]
  %v2861 = vld [vmem:[%s2 + $0x10] sm:$0xf]
  %v2862 = vld [vmem:[%s2 + $0x14] sm:$0xf]
  %v2863 = vld [vmem:[%s2 + $0x18] sm:$0xf]
  %v2864 = vld [vmem:[%s2 + $0x1c] sm:$0xf]
  %v2865 = vld [vmem:[%s2 + $0x20] sm:$0xf]
  %v2866 = vld [vmem:[%s2 + $0x24] sm:$0xf]
  %v2867 = vld [vmem:[%s2 + $0x28] sm:$0xf]
  %v2868 = vld [vmem:[%s2 + $0x2c] sm:$0xf]
  %v2869 = vld [vmem:[%s2 + $0x30] sm:$0xf]
  %v2870 = vld [vmem:[%s2 + $0x34] sm:$0xf]
  %v2871 = vld [vmem:[%s2 + $0x38] sm:$0xf]
  %v2872 = vld [vmem:[%s2 + $0x3c] sm:$0xf]
  %v2889 = vunpack.c.l.b16 %v2857
  %v2890 = vunpack.c.l.b16 %v2858
  %v2891 = vunpack.c.l.b16 %v2859
  %v2892 = vunpack.c.l.b16 %v2860
  %v2893 = vunpack.c.l.b16 %v2861
  %v2894 = vunpack.c.l.b16 %v2862
  %v2895 = vunpack.c.l.b16 %v2863
  %v2896 = vunpack.c.l.b16 %v2864
  %v2897 = vunpack.c.l.b16 %v2865
  %v2898 = vunpack.c.l.b16 %v2866
  %v2899 = vunpack.c.l.b16 %v2867
  %v2900 = vunpack.c.l.b16 %v2868
  %v2901 = vunpack.c.l.b16 %v2869
  %v2902 = vunpack.c.l.b16 %v2870
  %v2903 = vunpack.c.l.b16 %v2871
  %v2904 = vunpack.c.l.b16 %v2872
  %v2905 = vpack.c.b16 %v2890, %v2889
  %v2906 = vpack.c.b16 %v2892, %v2891
  %v2907 = vpack.c.b16 %v2894, %v2893
  %v2908 = vpack.c.b16 %v2896, %v2895
  %v2909 = vpack.c.b16 %v2898, %v2897
  %v2910 = vpack.c.b16 %v2900, %v2899
  %v2911 = vpack.c.b16 %v2902, %v2901
  %v2912 = vpack.c.b16 %v2904, %v2903
  %2921 = vmatprep.subr.bf16.mxu0 0
  %2922 = vmatpush1.bf16.msra.mxu0 %v2905
  %2923 = vmatprep.subr.bf16.mxu0 0
  %2924 = vmatpush1.bf16.msra.mxu0 %v2906
  %2925 = vmatprep.subr.bf16.mxu0 0
  %2926 = vmatpush1.bf16.msra.mxu0 %v2907
  %2927 = vmatprep.subr.bf16.mxu0 0
  %2928 = vmatpush1.bf16.msra.mxu0 %v2908
  %2929 = vmatprep.subr.bf16.mxu0 0
  %2930 = vmatpush1.bf16.msra.mxu0 %v2909
  %2931 = vmatprep.subr.bf16.mxu0 0
  %2932 = vmatpush1.bf16.msra.mxu0 %v2910
  %2933 = vmatprep.subr.bf16.mxu0 0
  %2934 = vmatpush1.bf16.msra.mxu0 %v2911
  %2935 = vmatprep.subr.bf16.mxu0 0
  %2936 = vmatpush1.bf16.msra.mxu0 %v2912
  %2937 = vmatprep.subr.bf16.mxu0 0
  %2938 = vmatpush1.bf16.msra.mxu0 0
  %2939 = vmatprep.subr.bf16.mxu0 0
  %2940 = vmatpush1.bf16.msra.mxu0 0
  %2941 = vmatprep.subr.bf16.mxu0 0
  %2942 = vmatpush1.bf16.msra.mxu0 0
  %2943 = vmatprep.subr.bf16.mxu0 0
  %2944 = vmatpush1.bf16.msra.mxu0 0
  %2945 = vmatprep.subr.bf16.mxu0 0
  %2946 = vmatpush1.bf16.msra.mxu0 0
  %2947 = vmatprep.subr.bf16.mxu0 0
  %2948 = vmatpush1.bf16.msra.mxu0 0
  %2949 = vmatprep.subr.bf16.mxu0 0
  %2950 = vmatpush1.bf16.msra.mxu0 0
  %2951 = vmatprep.subr.bf16.mxu0 0
  %2952 = vmatpush1.bf16.msra.mxu0 0
  %2953 = vmatprep.mubr.bf16.mxu0 0
  %2954 = vmatmul.mubr.bf16.gmra.mrb[0].mxu0 %v2825
  %v2955 = vpop.f32.mrb[0].mxu0
  %v2956 = vadd.f32 0.0, %v2955
  %v2957 = vpop.f32.mrb[0].mxu0
  %v2958 = vpop.f32.mrb[0].mxu0
  %v2959 = vadd.f32 0.0, %v2958
  %v2960 = vpop.f32.mrb[0].mxu0
  %2961 = vmatprep.mubr.bf16.mxu0 0
  %2962 = vmatmul.mubr.bf16.gmra.mrb[0].mxu0 %v2826
  %v2963 = vpop.f32.mrb[0].mxu0
  %v2964 = vadd.f32 0.0, %v2963
  %v2965 = vpop.f32.mrb[0].mxu0
  %v2966 = vpop.f32.mrb[0].mxu0
  %v2967 = vadd.f32 0.0, %v2966
  %v2968 = vpop.f32.mrb[0].mxu0
  %2969 = vmatprep.mubr.bf16.mxu0 0
  %2970 = vmatmul.mubr.bf16.gmra.mrb[0].mxu0 %v2827
  %v2971 = vpop.f32.mrb[0].mxu0
  %v2972 = vadd.f32 0.0, %v2971
  %v2973 = vpop.f32.mrb[0].mxu0
  %v2974 = vpop.f32.mrb[0].mxu0
  %v2975 = vadd.f32 0.0, %v2974
  %v2976 = vpop.f32.mrb[0].mxu0
  %2977 = vmatprep.mubr.bf16.mxu0 0
  %2978 = vmatmul.mubr.bf16.gmra.mrb[0].mxu0 %v2828
  %v2979 = vpop.f32.mrb[0].mxu0
  %v2980 = vadd.f32 0.0, %v2979
  %v2981 = vpop.f32.mrb[0].mxu0
  %v2982 = vpop.f32.mrb[0].mxu0
  %v2983 = vadd.f32 0.0, %v2982
  %v2984 = vpop.f32.mrb[0].mxu0
  %2985 = vmatprep.mubr.bf16.mxu0 0
  %2986 = vmatmul.mubr.bf16.gmra.mrb[0].mxu0 %v2829
  %v2987 = vpop.f32.mrb[0].mxu0
  %v2988 = vadd.f32 0.0, %v2987
  %v2989 = vpop.f32.mrb[0].mxu0
  %v2990 = vpop.f32.mrb[0].mxu0
  %v2991 = vadd.f32 0.0, %v2990
  %v2992 = vpop.f32.mrb[0].mxu0
  %2993 = vmatprep.mubr.bf16.mxu0 0
  %2994 = vmatmul.mubr.bf16.gmra.mrb[0].mxu0 %v2830
  %v2995 = vpop.f32.mrb[0].mxu0
  %v2996 = vadd.f32 0.0, %v2995
  %v2997 = vpop.f32.mrb[0].mxu0
  %v2998 = vpop.f32.mrb[0].mxu0
  %v2999 = vadd.f32 0.0, %v2998
  %v3000 = vpop.f32.mrb[0].mxu0
  %3001 = vmatprep.mubr.bf16.mxu0 0
  %3002 = vmatmul.mubr.bf16.gmra.mrb[0].mxu0 %v2831
  %v3003 = vpop.f32.mrb[0].mxu0
  %v3004 = vadd.f32 0.0, %v3003
  %v3005 = vpop.f32.mrb[0].mxu0
  %v3006 = vpop.f32.mrb[0].mxu0
  %v3007 = vadd.f32 0.0, %v3006
  %v3008 = vpop.f32.mrb[0].mxu0
  %3009 = vmatprep.mubr.bf16.mxu0 0
  %3010 = vmatmul.mubr.bf16.gmra.mrb[0].mxu0 %v2832
  %v3011 = vpop.f32.mrb[0].mxu0
  %v3012 = vadd.f32 0.0, %v3011
  %v3013 = vpop.f32.mrb[0].mxu0
  %v3014 = vpop.f32.mrb[0].mxu0
  %v3015 = vadd.f32 0.0, %v3014
  %v3016 = vpop.f32.mrb[0].mxu0
  %3017 = vmatprep.mubr.bf16.mxu0 0
  %3018 = vmatmul.mubr.bf16.gmra.mrb[0].mxu0 %v2833
  %v3019 = vpop.f32.mrb[0].mxu0
  %v3020 = vadd.f32 0.0, %v3019
  %v3021 = vpop.f32.mrb[0].mxu0
  %v3022 = vpop.f32.mrb[0].mxu0
  %v3023 = vadd.f32 0.0, %v3022
  %v3024 = vpop.f32.mrb[0].mxu0
  %3025 = vmatprep.mubr.bf16.mxu0 0
  %3026 = vmatmul.mubr.bf16.gmra.mrb[0].mxu0 %v2834
  %v3027 = vpop.f32.mrb[0].mxu0
  %v3028 = vadd.f32 0.0, %v3027
  %v3029 = vpop.f32.mrb[0].mxu0
  %v3030 = vpop.f32.mrb[0].mxu0
  %v3031 = vadd.f32 0.0, %v3030
  %v3032 = vpop.f32.mrb[0].mxu0
  %3033 = vmatprep.mubr.bf16.mxu0 0
  %3034 = vmatmul.mubr.bf16.gmra.mrb[0].mxu0 %v2835
  %v3035 = vpop.f32.mrb[0].mxu0
  %v3036 = vadd.f32 0.0, %v3035
  %v3037 = vpop.f32.mrb[0].mxu0
  %v3038 = vpop.f32.mrb[0].mxu0
  %v3039 = vadd.f32 0.0, %v3038
  %v3040 = vpop.f32.mrb[0].mxu0
  %3041 = vmatprep.mubr.bf16.mxu0 0
  %3042 = vmatmul.mubr.bf16.gmra.mrb[0].mxu0 %v2836
  %v3043 = vpop.f32.mrb[0].mxu0
  %v3044 = vadd.f32 0.0, %v3043
  %v3045 = vpop.f32.mrb[0].mxu0
  %v3046 = vpop.f32.mrb[0].mxu0
  %v3047 = vadd.f32 0.0, %v3046
  %v3048 = vpop.f32.mrb[0].mxu0
  %3049 = vmatprep.mubr.bf16.mxu0 0
  %3050 = vmatmul.mubr.bf16.gmra.mrb[0].mxu0 %v2837
  %v3051 = vpop.f32.mrb[0].mxu0
  %v3052 = vadd.f32 0.0, %v3051
  %v3053 = vpop.f32.mrb[0].mxu0
  %v3054 = vpop.f32.mrb[0].mxu0
  %v3055 = vadd.f32 0.0, %v3054
  %v3056 = vpop.f32.mrb[0].mxu0
  %3057 = vmatprep.mubr.bf16.mxu0 0
  %3058 = vmatmul.mubr.bf16.gmra.mrb[0].mxu0 %v2838
  %v3059 = vpop.f32.mrb[0].mxu0
  %v3060 = vadd.f32 0.0, %v3059
  %v3061 = vpop.f32.mrb[0].mxu0
  %v3062 = vpop.f32.mrb[0].mxu0
  %v3063 = vadd.f32 0.0, %v3062
  %v3064 = vpop.f32.mrb[0].mxu0
  %3065 = vmatprep.mubr.bf16.mxu0 0
  %3066 = vmatmul.mubr.bf16.gmra.mrb[0].mxu0 %v2839
  %v3067 = vpop.f32.mrb[0].mxu0
  %v3068 = vadd.f32 0.0, %v3067
  %v3069 = vpop.f32.mrb[0].mxu0
  %v3070 = vpop.f32.mrb[0].mxu0
  %v3071 = vadd.f32 0.0, %v3070
  %v3072 = vpop.f32.mrb[0].mxu0
  %3073 = vmatprep.mubr.bf16.mxu0 0
  %3074 = vmatmul.mubr.bf16.gmra.mrb[0].mxu0 %v2840
  %v3075 = vpop.f32.mrb[0].mxu0
  %v3076 = vadd.f32 0.0, %v3075
  %v3077 = vpop.f32.mrb[0].mxu0
  %v3078 = vpop.f32.mrb[0].mxu0
  %v3079 = vadd.f32 0.0, %v3078
  %v3080 = vpop.f32.mrb[0].mxu0
  %3081 = vmatprep.mubr.bf16.mxu0 0
  %3082 = vmatmul.mubr.bf16.gmra.mrb[0].mxu0 %v2841
  %v3083 = vpop.f32.mrb[0].mxu0
  %v3084 = vadd.f32 0.0, %v3083
  %v3085 = vpop.f32.mrb[0].mxu0
  %v3086 = vpop.f32.mrb[0].mxu0
  %v3087 = vadd.f32 0.0, %v3086
  %v3088 = vpop.f32.mrb[0].mxu0
  %3089 = vmatprep.mubr.bf16.mxu0 0
  %3090 = vmatmul.mubr.bf16.gmra.mrb[0].mxu0 %v2842
  %v3091 = vpop.f32.mrb[0].mxu0
  %v3092 = vadd.f32 0.0, %v3091
  %v3093 = vpop.f32.mrb[0].mxu0
  %v3094 = vpop.f32.mrb[0].mxu0
  %v3095 = vadd.f32 0.0, %v3094
  %v3096 = vpop.f32.mrb[0].mxu0
  %3097 = vmatprep.mubr.bf16.mxu0 0
  %3098 = vmatmul.mubr.bf16.gmra.mrb[0].mxu0 %v2843
  %v3099 = vpop.f32.mrb[0].mxu0
  %v3100 = vadd.f32 0.0, %v3099
  %v3101 = vpop.f32.mrb[0].mxu0
  %v3102 = vpop.f32.mrb[0].mxu0
  %v3103 = vadd.f32 0.0, %v3102
  %v3104 = vpop.f32.mrb[0].mxu0
  %3105 = vmatprep.mubr.bf16.mxu0 0
  %3106 = vmatmul.mubr.bf16.gmra.mrb[0].mxu0 %v2844
  %v3107 = vpop.f32.mrb[0].mxu0
  %v3108 = vadd.f32 0.0, %v3107
  %v3109 = vpop.f32.mrb[0].mxu0
  %v3110 = vpop.f32.mrb[0].mxu0
  %v3111 = vadd.f32 0.0, %v3110
  %v3112 = vpop.f32.mrb[0].mxu0
  %3113 = vmatprep.mubr.bf16.mxu0 0
  %3114 = vmatmul.mubr.bf16.gmra.mrb[0].mxu0 %v2845
  %v3115 = vpop.f32.mrb[0].mxu0
  %v3116 = vadd.f32 0.0, %v3115
  %v3117 = vpop.f32.mrb[0].mxu0
  %v3118 = vpop.f32.mrb[0].mxu0
  %v3119 = vadd.f32 0.0, %v3118
  %v3120 = vpop.f32.mrb[0].mxu0
  %3121 = vmatprep.mubr.bf16.mxu0 0
  %3122 = vmatmul.mubr.bf16.gmra.mrb[0].mxu0 %v2846
  %v3123 = vpop.f32.mrb[0].mxu0
  %v3124 = vadd.f32 0.0, %v3123
  %v3125 = vpop.f32.mrb[0].mxu0
  %v3126 = vpop.f32.mrb[0].mxu0
  %v3127 = vadd.f32 0.0, %v3126
  %v3128 = vpop.f32.mrb[0].mxu0
  %3129 = vmatprep.mubr.bf16.mxu0 0
  %3130 = vmatmul.mubr.bf16.gmra.mrb[0].mxu0 %v2847
  %v3131 = vpop.f32.mrb[0].mxu0
  %v3132 = vadd.f32 0.0, %v3131
  %v3133 = vpop.f32.mrb[0].mxu0
  %v3134 = vpop.f32.mrb[0].mxu0
  %v3135 = vadd.f32 0.0, %v3134
  %v3136 = vpop.f32.mrb[0].mxu0
  %3137 = vmatprep.mubr.bf16.mxu0 0
  %3138 = vmatmul.mubr.bf16.gmra.mrb[0].mxu0 %v2848
  %v3139 = vpop.f32.mrb[0].mxu0
  %v3140 = vadd.f32 0.0, %v3139
  %v3141 = vpop.f32.mrb[0].mxu0
  %v3142 = vpop.f32.mrb[0].mxu0
  %v3143 = vadd.f32 0.0, %v3142
  %v3144 = vpop.f32.mrb[0].mxu0
  %3145 = vmatprep.mubr.bf16.mxu0 0
  %3146 = vmatmul.mubr.bf16.gmra.mrb[0].mxu0 %v2849
  %v3147 = vpop.f32.mrb[0].mxu0
  %v3148 = vadd.f32 0.0, %v3147
  %v3149 = vpop.f32.mrb[0].mxu0
  %v3150 = vpop.f32.mrb[0].mxu0
  %v3151 = vadd.f32 0.0, %v3150
  %v3152 = vpop.f32.mrb[0].mxu0
  %3153 = vmatprep.mubr.bf16.mxu0 0
  %3154 = vmatmul.mubr.bf16.gmra.mrb[0].mxu0 %v2850
  %v3155 = vpop.f32.mrb[0].mxu0
  %v3156 = vadd.f32 0.0, %v3155
  %v3157 = vpop.f32.mrb[0].mxu0
  %v3158 = vpop.f32.mrb[0].mxu0
  %v3159 = vadd.f32 0.0, %v3158
  %v3160 = vpop.f32.mrb[0].mxu0
  %3161 = vmatprep.mubr.bf16.mxu0 0
  %3162 = vmatmul.mubr.bf16.gmra.mrb[0].mxu0 %v2851
  %v3163 = vpop.f32.mrb[0].mxu0
  %v3164 = vadd.f32 0.0, %v3163
  %v3165 = vpop.f32.mrb[0].mxu0
  %v3166 = vpop.f32.mrb[0].mxu0
  %v3167 = vadd.f32 0.0, %v3166
  %v3168 = vpop.f32.mrb[0].mxu0
  %3169 = vmatprep.mubr.bf16.mxu0 0
  %3170 = vmatmul.mubr.bf16.gmra.mrb[0].mxu0 %v2852
  %v3171 = vpop.f32.mrb[0].mxu0
  %v3172 = vadd.f32 0.0, %v3171
  %v3173 = vpop.f32.mrb[0].mxu0
  %v3174 = vpop.f32.mrb[0].mxu0
  %v3175 = vadd.f32 0.0, %v3174
  %v3176 = vpop.f32.mrb[0].mxu0
  %3177 = vmatprep.mubr.bf16.mxu0 0
  %3178 = vmatmul.mubr.bf16.gmra.mrb[0].mxu0 %v2853
  %v3179 = vpop.f32.mrb[0].mxu0
  %v3180 = vadd.f32 0.0, %v3179
  %v3181 = vpop.f32.mrb[0].mxu0
  %v3182 = vpop.f32.mrb[0].mxu0
  %v3183 = vadd.f32 0.0, %v3182
  %v3184 = vpop.f32.mrb[0].mxu0
  %3185 = vmatprep.mubr.bf16.mxu0 0
  %3186 = vmatmul.mubr.bf16.gmra.mrb[0].mxu0 %v2854
  %v3187 = vpop.f32.mrb[0].mxu0
  %v3188 = vadd.f32 0.0, %v3187
  %v3189 = vpop.f32.mrb[0].mxu0
  %v3190 = vpop.f32.mrb[0].mxu0
  %v3191 = vadd.f32 0.0, %v3190
  %v3192 = vpop.f32.mrb[0].mxu0
  %3193 = vmatprep.mubr.bf16.mxu0 0
  %3194 = vmatmul.mubr.bf16.gmra.mrb[0].mxu0 %v2855
  %v3195 = vpop.f32.mrb[0].mxu0
  %v3196 = vadd.f32 0.0, %v3195
  %v3197 = vpop.f32.mrb[0].mxu0
  %v3198 = vpop.f32.mrb[0].mxu0
  %v3199 = vadd.f32 0.0, %v3198
  %v3200 = vpop.f32.mrb[0].mxu0
  %3201 = vmatprep.mubr.bf16.mxu0 0
  %3202 = vmatmul.mubr.bf16.gmra.mrb[0].mxu0 %v2856
  %v3203 = vpop.f32.mrb[0].mxu0
  %v3204 = vadd.f32 0.0, %v3203
  %v3205 = vpop.f32.mrb[0].mxu0
  %v3206 = vpop.f32.mrb[0].mxu0
  %v3207 = vadd.f32 0.0, %v3206
  %v3208 = vpop.f32.mrb[0].mxu0
  %3209 = vdwg.mxu0
  %v3210 = vadd.f32 %v2956, %v2959
  %v3211 = vadd.f32 %v3210, %v2964
  %v3212 = vadd.f32 %v3211, %v2967
  %v3213 = vadd.f32 %v3212, %v2972
  %v3214 = vadd.f32 %v3213, %v2975
  %v3215 = vadd.f32 %v3214, %v2980
  %v3216 = vadd.f32 %v3215, %v2983
  %v3217 = vadd.f32 %v3216, %v2988
  %v3218 = vadd.f32 %v3217, %v2991
  %v3219 = vadd.f32 %v3218, %v2996
  %v3220 = vadd.f32 %v3219, %v2999
  %v3221 = vadd.f32 %v3220, %v3004
  %v3222 = vadd.f32 %v3221, %v3007
  %v3223 = vadd.f32 %v3222, %v3012
  %v3224 = vadd.f32 %v3223, %v3015
  %v3225 = vadd.f32 %v3224, %v3020
  %v3226 = vadd.f32 %v3225, %v3023
  %v3227 = vadd.f32 %v3226, %v3028
  %v3228 = vadd.f32 %v3227, %v3031
  %v3229 = vadd.f32 %v3228, %v3036
  %v3230 = vadd.f32 %v3229, %v3039
  %v3231 = vadd.f32 %v3230, %v3044
  %v3232 = vadd.f32 %v3231, %v3047
  %v3233 = vadd.f32 %v3232, %v3052
  %v3234 = vadd.f32 %v3233, %v3055
  %v3235 = vadd.f32 %v3234, %v3060
  %v3236 = vadd.f32 %v3235, %v3063
  %v3237 = vadd.f32 %v3236, %v3068
  %v3238 = vadd.f32 %v3237, %v3071
  %v3239 = vadd.f32 %v3238, %v3076
  %v3240 = vadd.f32 %v3239, %v3079
  %v3241 = vadd.f32 %v3240, %v3084
  %v3242 = vadd.f32 %v3241, %v3087
  %v3243 = vadd.f32 %v3242, %v3092
  %v3244 = vadd.f32 %v3243, %v3095
  %v3245 = vadd.f32 %v3244, %v3100
  %v3246 = vadd.f32 %v3245, %v3103
  %v3247 = vadd.f32 %v3246, %v3108
  %v3248 = vadd.f32 %v3247, %v3111
  %v3249 = vadd.f32 %v3248, %v3116
  %v3250 = vadd.f32 %v3249, %v3119
  %v3251 = vadd.f32 %v3250, %v3124
  %v3252 = vadd.f32 %v3251, %v3127
  %v3253 = vadd.f32 %v3252, %v3132
  %v3254 = vadd.f32 %v3253, %v3135
  %v3255 = vadd.f32 %v3254, %v3140
  %v3256 = vadd.f32 %v3255, %v3143
  %v3257 = vadd.f32 %v3256, %v3148
  %v3258 = vadd.f32 %v3257, %v3151
  %v3259 = vadd.f32 %v3258, %v3156
  %v3260 = vadd.f32 %v3259, %v3159
  %v3261 = vadd.f32 %v3260, %v3164
  %v3262 = vadd.f32 %v3261, %v3167
  %v3263 = vadd.f32 %v3262, %v3172
  %v3264 = vadd.f32 %v3263, %v3175
  %v3265 = vadd.f32 %v3264, %v3180
  %v3266 = vadd.f32 %v3265, %v3183
  %v3267 = vadd.f32 %v3266, %v3188
  %v3268 = vadd.f32 %v3267, %v3191
  %v3269 = vadd.f32 %v3268, %v3196
  %v3270 = vadd.f32 %v3269, %v3199
  %v3271 = vadd.f32 %v3270, %v3204
  %v3272 = vadd.f32 %v3271, %v3207
  %v3273 = vrot.slane %v3272, 4
  %v3274 = vadd.f32 %v3272, %v3273
  %v3275 = vrot.slane %v3274, 2
  %v3276 = vadd.f32 %v3274, %v3275
  %v3277 = vrot.slane %v3276, 1
  %v3278 = vadd.f32 %v3276, %v3277
  %v3279 = vrcp.pop 512.0
  %v3280 = vmul.f32 %v3278, %v3279
  %v3281 = vmul.f32 %v2956, %v2956
  %v3282 = vmul.f32 %v2959, %v2959
  %v3283 = vmul.f32 %v2964, %v2964
  %v3284 = vmul.f32 %v2967, %v2967
  %v3285 = vmul.f32 %v2972, %v2972
  %v3286 = vmul.f32 %v2975, %v2975
  %v3287 = vmul.f32 %v2980, %v2980
  %v3288 = vmul.f32 %v2983, %v2983
  %v3289 = vmul.f32 %v2988, %v2988
  %v3290 = vmul.f32 %v2991, %v2991
  %v3291 = vmul.f32 %v2996, %v2996
  %v3292 = vmul.f32 %v2999, %v2999
  %v3293 = vmul.f32 %v3004, %v3004
  %v3294 = vmul.f32 %v3007, %v3007
  %v3295 = vmul.f32 %v3012, %v3012
  %v3296 = vmul.f32 %v3015, %v3015
  %v3297 = vmul.f32 %v3020, %v3020
  %v3298 = vmul.f32 %v3023, %v3023
  %v3299 = vmul.f32 %v3028, %v3028
  %v3300 = vmul.f32 %v3031, %v3031
  %v3301 = vmul.f32 %v3036, %v3036
  %v3302 = vmul.f32 %v3039, %v3039
  %v3303 = vmul.f32 %v3044, %v3044
  %v3304 = vmul.f32 %v3047, %v3047
  %v3305 = vmul.f32 %v3052, %v3052
  %v3306 = vmul.f32 %v3055, %v3055
  %v3307 = vmul.f32 %v3060, %v3060
  %v3308 = vmul.f32 %v3063, %v3063
  %v3309 = vmul.f32 %v3068, %v3068
  %v3310 = vmul.f32 %v3071, %v3071
  %v3311 = vmul.f32 %v3076, %v3076
  %v3312 = vmul.f32 %v3079, %v3079
  %v3313 = vmul.f32 %v3084, %v3084
  %v3314 = vmul.f32 %v3087, %v3087
  %v3315 = vmul.f32 %v3092, %v3092
  %v3316 = vmul.f32 %v3095, %v3095
  %v3317 = vmul.f32 %v3100, %v3100
  %v3318 = vmul.f32 %v3103, %v3103
  %v3319 = vmul.f32 %v3108, %v3108
  %v3320 = vmul.f32 %v3111, %v3111
  %v3321 = vmul.f32 %v3116, %v3116
  %v3322 = vmul.f32 %v3119, %v3119
  %v3323 = vmul.f32 %v3124, %v3124
  %v3324 = vmul.f32 %v3127, %v3127
  %v3325 = vmul.f32 %v3132, %v3132
  %v3326 = vmul.f32 %v3135, %v3135
  %v3327 = vmul.f32 %v3140, %v3140
  %v3328 = vmul.f32 %v3143, %v3143
  %v3329 = vmul.f32 %v3148, %v3148
  %v3330 = vmul.f32 %v3151, %v3151
  %v3331 = vmul.f32 %v3156, %v3156
  %v3332 = vmul.f32 %v3159, %v3159
  %v3333 = vmul.f32 %v3164, %v3164
  %v3334 = vmul.f32 %v3167, %v3167
  %v3335 = vmul.f32 %v3172, %v3172
  %v3336 = vmul.f32 %v3175, %v3175
  %v3337 = vmul.f32 %v3180, %v3180
  %v3338 = vmul.f32 %v3183, %v3183
  %v3339 = vmul.f32 %v3188, %v3188
  %v3340 = vmul.f32 %v3191, %v3191
  %v3341 = vmul.f32 %v3196, %v3196
  %v3342 = vmul.f32 %v3199, %v3199
  %v3343 = vmul.f32 %v3204, %v3204
  %v3344 = vmul.f32 %v3207, %v3207
  %v3345 = vadd.f32 %v3281, %v3282
  %v3346 = vadd.f32 %v3345, %v3283
  %v3347 = vadd.f32 %v3346, %v3284
  %v3348 = vadd.f32 %v3347, %v3285
  %v3349 = vadd.f32 %v3348, %v3286
  %v3350 = vadd.f32 %v3349, %v3287
  %v3351 = vadd.f32 %v3350, %v3288
  %v3352 = vadd.f32 %v3351, %v3289
  %v3353 = vadd.f32 %v3352, %v3290
  %v3354 = vadd.f32 %v3353, %v3291
  %v3355 = vadd.f32 %v3354, %v3292
  %v3356 = vadd.f32 %v3355, %v3293
  %v3357 = vadd.f32 %v3356, %v3294
  %v3358 = vadd.f32 %v3357, %v3295
  %v3359 = vadd.f32 %v3358, %v3296
  %v3360 = vadd.f32 %v3359, %v3297
  %v3361 = vadd.f32 %v3360, %v3298
  %v3362 = vadd.f32 %v3361, %v3299
  %v3363 = vadd.f32 %v3362, %v3300
  %v3364 = vadd.f32 %v3363, %v3301
  %v3365 = vadd.f32 %v3364, %v3302
  %v3366 = vadd.f32 %v3365, %v3303
  %v3367 = vadd.f32 %v3366, %v3304
  %v3368 = vadd.f32 %v3367, %v3305
  %v3369 = vadd.f32 %v3368, %v3306
  %v3370 = vadd.f32 %v3369, %v3307
  %v3371 = vadd.f32 %v3370, %v3308
  %v3372 = vadd.f32 %v3371, %v3309
  %v3373 = vadd.f32 %v3372, %v3310
  %v3374 = vadd.f32 %v3373, %v3311
  %v3375 = vadd.f32 %v3374, %v3312
  %v3376 = vadd.f32 %v3375, %v3313
  %v3377 = vadd.f32 %v3376, %v3314
  %v3378 = vadd.f32 %v3377, %v3315
  %v3379 = vadd.f32 %v3378, %v3316
  %v3380 = vadd.f32 %v3379, %v3317
  %v3381 = vadd.f32 %v3380, %v3318
  %v3382 = vadd.f32 %v3381, %v3319
  %v3383 = vadd.f32 %v3382, %v3320
  %v3384 = vadd.f32 %v3383, %v3321
  %v3385 = vadd.f32 %v3384, %v3322
  %v3386 = vadd.f32 %v3385, %v3323
  %v3387 = vadd.f32 %v3386, %v3324
  %v3388 = vadd.f32 %v3387, %v3325
  %v3389 = vadd.f32 %v3388, %v3326
  %v3390 = vadd.f32 %v3389, %v3327
  %v3391 = vadd.f32 %v3390, %v3328
  %v3392 = vadd.f32 %v3391, %v3329
  %v3393 = vadd.f32 %v3392, %v3330
  %v3394 = vadd.f32 %v3393, %v3331
  %v3395 = vadd.f32 %v3394, %v3332
  %v3396 = vadd.f32 %v3395, %v3333
  %v3397 = vadd.f32 %v3396, %v3334
  %v3398 = vadd.f32 %v3397, %v3335
  %v3399 = vadd.f32 %v3398, %v3336
  %v3400 = vadd.f32 %v3399, %v3337
  %v3401 = vadd.f32 %v3400, %v3338
  %v3402 = vadd.f32 %v3401, %v3339
  %v3403 = vadd.f32 %v3402, %v3340
  %v3404 = vadd.f32 %v3403, %v3341
  %v3405 = vadd.f32 %v3404, %v3342
  %v3406 = vadd.f32 %v3405, %v3343
  %v3407 = vadd.f32 %v3406, %v3344
  %v3408 = vrot.slane %v3407, 4
  %v3409 = vadd.f32 %v3407, %v3408
  %v3410 = vrot.slane %v3409, 2
  %v3411 = vadd.f32 %v3409, %v3410
  %v3412 = vrot.slane %v3411, 1
  %v3413 = vadd.f32 %v3411, %v3412
  %v3414 = vmul.f32 %v3413, %v3279
  %v3415 = vmul.f32 %v3280, %v3280
  %v3416 = vsub.f32 %v3414, %v3415
  %v3417 = vmax.f32 %v3416, 0.0
  %v3418 = vadd.f32 %v3417, 1e-05
  %v3419 = vrsqrt.pop %v3418
  %v3420 = vld [vmem:[%s3] sm:$0x1]
  %v3421 = vmul.f32 %v3419, %v3420
  %v3422 = vsub.f32 %v2956, %v3280
  %v3423 = vsub.f32 %v2959, %v3280
  %v3424 = vsub.f32 %v2964, %v3280
  %v3425 = vsub.f32 %v2967, %v3280
  %v3426 = vsub.f32 %v2972, %v3280
  %v3427 = vsub.f32 %v2975, %v3280
  %v3428 = vsub.f32 %v2980, %v3280
  %v3429 = vsub.f32 %v2983, %v3280
  %v3430 = vsub.f32 %v2988, %v3280
  %v3431 = vsub.f32 %v2991, %v3280
  %v3432 = vsub.f32 %v2996, %v3280
  %v3433 = vsub.f32 %v2999, %v3280
  %v3434 = vsub.f32 %v3004, %v3280
  %v3435 = vsub.f32 %v3007, %v3280
  %v3436 = vsub.f32 %v3012, %v3280
  %v3437 = vsub.f32 %v3015, %v3280
  %v3438 = vsub.f32 %v3020, %v3280
  %v3439 = vsub.f32 %v3023, %v3280
  %v3440 = vsub.f32 %v3028, %v3280
  %v3441 = vsub.f32 %v3031, %v3280
  %v3442 = vsub.f32 %v3036, %v3280
  %v3443 = vsub.f32 %v3039, %v3280
  %v3444 = vsub.f32 %v3044, %v3280
  %v3445 = vsub.f32 %v3047, %v3280
  %v3446 = vsub.f32 %v3052, %v3280
  %v3447 = vsub.f32 %v3055, %v3280
  %v3448 = vsub.f32 %v3060, %v3280
  %v3449 = vsub.f32 %v3063, %v3280
  %v3450 = vsub.f32 %v3068, %v3280
  %v3451 = vsub.f32 %v3071, %v3280
  %v3452 = vsub.f32 %v3076, %v3280
  %v3453 = vsub.f32 %v3079, %v3280
  %v3454 = vsub.f32 %v3084, %v3280
  %v3455 = vsub.f32 %v3087, %v3280
  %v3456 = vsub.f32 %v3092, %v3280
  %v3457 = vsub.f32 %v3095, %v3280
  %v3458 = vsub.f32 %v3100, %v3280
  %v3459 = vsub.f32 %v3103, %v3280
  %v3460 = vsub.f32 %v3108, %v3280
  %v3461 = vsub.f32 %v3111, %v3280
  %v3462 = vsub.f32 %v3116, %v3280
  %v3463 = vsub.f32 %v3119, %v3280
  %v3464 = vsub.f32 %v3124, %v3280
  %v3465 = vsub.f32 %v3127, %v3280
  %v3466 = vsub.f32 %v3132, %v3280
  %v3467 = vsub.f32 %v3135, %v3280
  %v3468 = vsub.f32 %v3140, %v3280
  %v3469 = vsub.f32 %v3143, %v3280
  %v3470 = vsub.f32 %v3148, %v3280
  %v3471 = vsub.f32 %v3151, %v3280
  %v3472 = vsub.f32 %v3156, %v3280
  %v3473 = vsub.f32 %v3159, %v3280
  %v3474 = vsub.f32 %v3164, %v3280
  %v3475 = vsub.f32 %v3167, %v3280
  %v3476 = vsub.f32 %v3172, %v3280
  %v3477 = vsub.f32 %v3175, %v3280
  %v3478 = vsub.f32 %v3180, %v3280
  %v3479 = vsub.f32 %v3183, %v3280
  %v3480 = vsub.f32 %v3188, %v3280
  %v3481 = vsub.f32 %v3191, %v3280
  %v3482 = vsub.f32 %v3196, %v3280
  %v3483 = vsub.f32 %v3199, %v3280
  %v3484 = vsub.f32 %v3204, %v3280
  %v3485 = vsub.f32 %v3207, %v3280
  %v3486 = vlaneseq
  %v3487 = vshrl.u32 %v3486, 7
  %v3488 = vsub.s32 0, %v3487
  %v3489 = vrot.slane %v3421, %v3488
  %v3490 = vmul.f32 %v3422, %v3489
  %v3491 = vmul.f32 %v3423, %v3489
  %v3492 = vmul.f32 %v3424, %v3489
  %v3493 = vmul.f32 %v3425, %v3489
  %v3494 = vmul.f32 %v3426, %v3489
  %v3495 = vmul.f32 %v3427, %v3489
  %v3496 = vmul.f32 %v3428, %v3489
  %v3497 = vmul.f32 %v3429, %v3489
  %v3498 = vmul.f32 %v3430, %v3489
  %v3499 = vmul.f32 %v3431, %v3489
  %v3500 = vmul.f32 %v3432, %v3489
  %v3501 = vmul.f32 %v3433, %v3489
  %v3502 = vmul.f32 %v3434, %v3489
  %v3503 = vmul.f32 %v3435, %v3489
  %v3504 = vmul.f32 %v3436, %v3489
  %v3505 = vmul.f32 %v3437, %v3489
  %v3506 = vmul.f32 %v3438, %v3489
  %v3507 = vmul.f32 %v3439, %v3489
  %v3508 = vmul.f32 %v3440, %v3489
  %v3509 = vmul.f32 %v3441, %v3489
  %v3510 = vmul.f32 %v3442, %v3489
  %v3511 = vmul.f32 %v3443, %v3489
  %v3512 = vmul.f32 %v3444, %v3489
  %v3513 = vmul.f32 %v3445, %v3489
  %v3514 = vmul.f32 %v3446, %v3489
  %v3515 = vmul.f32 %v3447, %v3489
  %v3516 = vmul.f32 %v3448, %v3489
  %v3517 = vmul.f32 %v3449, %v3489
  %v3518 = vmul.f32 %v3450, %v3489
  %v3519 = vmul.f32 %v3451, %v3489
  %v3520 = vmul.f32 %v3452, %v3489
  %v3521 = vmul.f32 %v3453, %v3489
  %v3522 = vmul.f32 %v3454, %v3489
  %v3523 = vmul.f32 %v3455, %v3489
  %v3524 = vmul.f32 %v3456, %v3489
  %v3525 = vmul.f32 %v3457, %v3489
  %v3526 = vmul.f32 %v3458, %v3489
  %v3527 = vmul.f32 %v3459, %v3489
  %v3528 = vmul.f32 %v3460, %v3489
  %v3529 = vmul.f32 %v3461, %v3489
  %v3530 = vmul.f32 %v3462, %v3489
  %v3531 = vmul.f32 %v3463, %v3489
  %v3532 = vmul.f32 %v3464, %v3489
  %v3533 = vmul.f32 %v3465, %v3489
  %v3534 = vmul.f32 %v3466, %v3489
  %v3535 = vmul.f32 %v3467, %v3489
  %v3536 = vmul.f32 %v3468, %v3489
  %v3537 = vmul.f32 %v3469, %v3489
  %v3538 = vmul.f32 %v3470, %v3489
  %v3539 = vmul.f32 %v3471, %v3489
  %v3540 = vmul.f32 %v3472, %v3489
  %v3541 = vmul.f32 %v3473, %v3489
  %v3542 = vmul.f32 %v3474, %v3489
  %v3543 = vmul.f32 %v3475, %v3489
  %v3544 = vmul.f32 %v3476, %v3489
  %v3545 = vmul.f32 %v3477, %v3489
  %v3546 = vmul.f32 %v3478, %v3489
  %v3547 = vmul.f32 %v3479, %v3489
  %v3548 = vmul.f32 %v3480, %v3489
  %v3549 = vmul.f32 %v3481, %v3489
  %v3550 = vmul.f32 %v3482, %v3489
  %v3551 = vmul.f32 %v3483, %v3489
  %v3552 = vmul.f32 %v3484, %v3489
  %v3553 = vmul.f32 %v3485, %v3489
  %v3554 = vld [vmem:[%s4] sm:$0x1]
  %v3556 = vlaneseq
  %v3557 = vshrl.u32 %v3556, 7
  %v3558 = vsub.s32 0, %v3557
  %v3559 = vrot.slane %v3554, %v3558
  %v3561 = vadd.f32 %v3490, %v3559
  %v3562 = vadd.f32 %v3491, %v3559
  %v3563 = vadd.f32 %v3492, %v3559
  %v3564 = vadd.f32 %v3493, %v3559
  %v3565 = vadd.f32 %v3494, %v3559
  %v3566 = vadd.f32 %v3495, %v3559
  %v3567 = vadd.f32 %v3496, %v3559
  %v3568 = vadd.f32 %v3497, %v3559
  %v3569 = vadd.f32 %v3498, %v3559
  %v3570 = vadd.f32 %v3499, %v3559
  %v3571 = vadd.f32 %v3500, %v3559
  %v3572 = vadd.f32 %v3501, %v3559
  %v3573 = vadd.f32 %v3502, %v3559
  %v3574 = vadd.f32 %v3503, %v3559
  %v3575 = vadd.f32 %v3504, %v3559
  %v3576 = vadd.f32 %v3505, %v3559
  %v3577 = vadd.f32 %v3506, %v3559
  %v3578 = vadd.f32 %v3507, %v3559
  %v3579 = vadd.f32 %v3508, %v3559
  %v3580 = vadd.f32 %v3509, %v3559
  %v3581 = vadd.f32 %v3510, %v3559
  %v3582 = vadd.f32 %v3511, %v3559
  %v3583 = vadd.f32 %v3512, %v3559
  %v3584 = vadd.f32 %v3513, %v3559
  %v3585 = vadd.f32 %v3514, %v3559
  %v3586 = vadd.f32 %v3515, %v3559
  %v3587 = vadd.f32 %v3516, %v3559
  %v3588 = vadd.f32 %v3517, %v3559
  %v3589 = vadd.f32 %v3518, %v3559
  %v3590 = vadd.f32 %v3519, %v3559
  %v3591 = vadd.f32 %v3520, %v3559
  %v3592 = vadd.f32 %v3521, %v3559
  %v3593 = vadd.f32 %v3522, %v3559
  %v3594 = vadd.f32 %v3523, %v3559
  %v3595 = vadd.f32 %v3524, %v3559
  %v3596 = vadd.f32 %v3525, %v3559
  %v3597 = vadd.f32 %v3526, %v3559
  %v3598 = vadd.f32 %v3527, %v3559
  %v3599 = vadd.f32 %v3528, %v3559
  %v3600 = vadd.f32 %v3529, %v3559
  %v3601 = vadd.f32 %v3530, %v3559
  %v3602 = vadd.f32 %v3531, %v3559
  %v3603 = vadd.f32 %v3532, %v3559
  %v3604 = vadd.f32 %v3533, %v3559
  %v3605 = vadd.f32 %v3534, %v3559
  %v3606 = vadd.f32 %v3535, %v3559
  %v3607 = vadd.f32 %v3536, %v3559
  %v3608 = vadd.f32 %v3537, %v3559
  %v3609 = vadd.f32 %v3538, %v3559
  %v3610 = vadd.f32 %v3539, %v3559
  %v3611 = vadd.f32 %v3540, %v3559
  %v3612 = vadd.f32 %v3541, %v3559
  %v3613 = vadd.f32 %v3542, %v3559
  %v3614 = vadd.f32 %v3543, %v3559
  %v3615 = vadd.f32 %v3544, %v3559
  %v3616 = vadd.f32 %v3545, %v3559
  %v3617 = vadd.f32 %v3546, %v3559
  %v3618 = vadd.f32 %v3547, %v3559
  %v3619 = vadd.f32 %v3548, %v3559
  %v3620 = vadd.f32 %v3549, %v3559
  %v3621 = vadd.f32 %v3550, %v3559
  %v3622 = vadd.f32 %v3551, %v3559
  %v3623 = vadd.f32 %v3552, %v3559
  %v3624 = vadd.f32 %v3553, %v3559
  %s3625 = sld [smem:[#allocation3]]
  %vm3626 = vcmp.gt.f32.partialorder %v3561, 0.0
  %vm3627 = vcmp.gt.f32.partialorder %v3562, 0.0
  %vm3628 = vcmp.gt.f32.partialorder %v3563, 0.0
  %vm3629 = vcmp.gt.f32.partialorder %v3564, 0.0
  %vm3630 = vcmp.gt.f32.partialorder %v3565, 0.0
  %vm3631 = vcmp.gt.f32.partialorder %v3566, 0.0
  %vm3632 = vcmp.gt.f32.partialorder %v3567, 0.0
  %vm3633 = vcmp.gt.f32.partialorder %v3568, 0.0
  %vm3634 = vcmp.gt.f32.partialorder %v3569, 0.0
  %vm3635 = vcmp.gt.f32.partialorder %v3570, 0.0
  %vm3636 = vcmp.gt.f32.partialorder %v3571, 0.0
  %vm3637 = vcmp.gt.f32.partialorder %v3572, 0.0
  %vm3638 = vcmp.gt.f32.partialorder %v3573, 0.0
  %vm3639 = vcmp.gt.f32.partialorder %v3574, 0.0
  %vm3640 = vcmp.gt.f32.partialorder %v3575, 0.0
  %vm3641 = vcmp.gt.f32.partialorder %v3576, 0.0
  %vm3642 = vcmp.gt.f32.partialorder %v3577, 0.0
  %vm3643 = vcmp.gt.f32.partialorder %v3578, 0.0
  %vm3644 = vcmp.gt.f32.partialorder %v3579, 0.0
  %vm3645 = vcmp.gt.f32.partialorder %v3580, 0.0
  %vm3646 = vcmp.gt.f32.partialorder %v3581, 0.0
  %vm3647 = vcmp.gt.f32.partialorder %v3582, 0.0
  %vm3648 = vcmp.gt.f32.partialorder %v3583, 0.0
  %vm3649 = vcmp.gt.f32.partialorder %v3584, 0.0
  %vm3650 = vcmp.gt.f32.partialorder %v3585, 0.0
  %vm3651 = vcmp.gt.f32.partialorder %v3586, 0.0
  %vm3652 = vcmp.gt.f32.partialorder %v3587, 0.0
  %vm3653 = vcmp.gt.f32.partialorder %v3588, 0.0
  %vm3654 = vcmp.gt.f32.partialorder %v3589, 0.0
  %vm3655 = vcmp.gt.f32.partialorder %v3590, 0.0
  %vm3656 = vcmp.gt.f32.partialorder %v3591, 0.0
  %vm3657 = vcmp.gt.f32.partialorder %v3592, 0.0
  %vm3658 = vcmp.gt.f32.partialorder %v3593, 0.0
  %vm3659 = vcmp.gt.f32.partialorder %v3594, 0.0
  %vm3660 = vcmp.gt.f32.partialorder %v3595, 0.0
  %vm3661 = vcmp.gt.f32.partialorder %v3596, 0.0
  %vm3662 = vcmp.gt.f32.partialorder %v3597, 0.0
  %vm3663 = vcmp.gt.f32.partialorder %v3598, 0.0
  %vm3664 = vcmp.gt.f32.partialorder %v3599, 0.0
  %vm3665 = vcmp.gt.f32.partialorder %v3600, 0.0
  %vm3666 = vcmp.gt.f32.partialorder %v3601, 0.0
  %vm3667 = vcmp.gt.f32.partialorder %v3602, 0.0
  %vm3668 = vcmp.gt.f32.partialorder %v3603, 0.0
  %vm3669 = vcmp.gt.f32.partialorder %v3604, 0.0
  %vm3670 = vcmp.gt.f32.partialorder %v3605, 0.0
  %vm3671 = vcmp.gt.f32.partialorder %v3606, 0.0
  %vm3672 = vcmp.gt.f32.partialorder %v3607, 0.0
  %vm3673 = vcmp.gt.f32.partialorder %v3608, 0.0
  %vm3674 = vcmp.gt.f32.partialorder %v3609, 0.0
  %vm3675 = vcmp.gt.f32.partialorder %v3610, 0.0
  %vm3676 = vcmp.gt.f32.partialorder %v3611, 0.0
  %vm3677 = vcmp.gt.f32.partialorder %v3612, 0.0
  %vm3678 = vcmp.gt.f32.partialorder %v3613, 0.0
  %vm3679 = vcmp.gt.f32.partialorder %v3614, 0.0
  %vm3680 = vcmp.gt.f32.partialorder %v3615, 0.0
  %vm3681 = vcmp.gt.f32.partialorder %v3616, 0.0
  %vm3682 = vcmp.gt.f32.partialorder %v3617, 0.0
  %vm3683 = vcmp.gt.f32.partialorder %v3618, 0.0
  %vm3684 = vcmp.gt.f32.partialorder %v3619, 0.0
  %vm3685 = vcmp.gt.f32.partialorder %v3620, 0.0
  %vm3686 = vcmp.gt.f32.partialorder %v3621, 0.0
  %vm3687 = vcmp.gt.f32.partialorder %v3622, 0.0
  %vm3688 = vcmp.gt.f32.partialorder %v3623, 0.0
  %vm3689 = vcmp.gt.f32.partialorder %v3624, 0.0
  %v3690 = vstv %s3625
  %v3691 = vmul.f32 %v3690, %v3561
  %v3692 = vmul.f32 %v3690, %v3562
  %v3693 = vmul.f32 %v3690, %v3563
  %v3694 = vmul.f32 %v3690, %v3564
  %v3695 = vmul.f32 %v3690, %v3565
  %v3696 = vmul.f32 %v3690, %v3566
  %v3697 = vmul.f32 %v3690, %v3567
  %v3698 = vmul.f32 %v3690, %v3568
  %v3699 = vmul.f32 %v3690, %v3569
  %v3700 = vmul.f32 %v3690, %v3570
  %v3701 = vmul.f32 %v3690, %v3571
  %v3702 = vmul.f32 %v3690, %v3572
  %v3703 = vmul.f32 %v3690, %v3573
  %v3704 = vmul.f32 %v3690, %v3574
  %v3705 = vmul.f32 %v3690, %v3575
  %v3706 = vmul.f32 %v3690, %v3576
  %v3707 = vmul.f32 %v3690, %v3577
  %v3708 = vmul.f32 %v3690, %v3578
  %v3709 = vmul.f32 %v3690, %v3579
  %v3710 = vmul.f32 %v3690, %v3580
  %v3711 = vmul.f32 %v3690, %v3581
  %v3712 = vmul.f32 %v3690, %v3582
  %v3713 = vmul.f32 %v3690, %v3583
  %v3714 = vmul.f32 %v3690, %v3584
  %v3715 = vmul.f32 %v3690, %v3585
  %v3716 = vmul.f32 %v3690, %v3586
  %v3717 = vmul.f32 %v3690, %v3587
  %v3718 = vmul.f32 %v3690, %v3588
  %v3719 = vmul.f32 %v3690, %v3589
  %v3720 = vmul.f32 %v3690, %v3590
  %v3721 = vmul.f32 %v3690, %v3591
  %v3722 = vmul.f32 %v3690, %v3592
  %v3723 = vmul.f32 %v3690, %v3593
  %v3724 = vmul.f32 %v3690, %v3594
  %v3725 = vmul.f32 %v3690, %v3595
  %v3726 = vmul.f32 %v3690, %v3596
  %v3727 = vmul.f32 %v3690, %v3597
  %v3728 = vmul.f32 %v3690, %v3598
  %v3729 = vmul.f32 %v3690, %v3599
  %v3730 = vmul.f32 %v3690, %v3600
  %v3731 = vmul.f32 %v3690, %v3601
  %v3732 = vmul.f32 %v3690, %v3602
  %v3733 = vmul.f32 %v3690, %v3603
  %v3734 = vmul.f32 %v3690, %v3604
  %v3735 = vmul.f32 %v3690, %v3605
  %v3736 = vmul.f32 %v3690, %v3606
  %v3737 = vmul.f32 %v3690, %v3607
  %v3738 = vmul.f32 %v3690, %v3608
  %v3739 = vmul.f32 %v3690, %v3609
  %v3740 = vmul.f32 %v3690, %v3610
  %v3741 = vmul.f32 %v3690, %v3611
  %v3742 = vmul.f32 %v3690, %v3612
  %v3743 = vmul.f32 %v3690, %v3613
  %v3744 = vmul.f32 %v3690, %v3614
  %v3745 = vmul.f32 %v3690, %v3615
  %v3746 = vmul.f32 %v3690, %v3616
  %v3747 = vmul.f32 %v3690, %v3617
  %v3748 = vmul.f32 %v3690, %v3618
  %v3749 = vmul.f32 %v3690, %v3619
  %v3750 = vmul.f32 %v3690, %v3620
  %v3751 = vmul.f32 %v3690, %v3621
  %v3752 = vmul.f32 %v3690, %v3622
  %v3753 = vmul.f32 %v3690, %v3623
  %v3754 = vmul.f32 %v3690, %v3624
  %v3755 = vsel %vm3626, %v3561, %v3691
  %v3756 = vsel %vm3627, %v3562, %v3692
  %v3757 = vsel %vm3628, %v3563, %v3693
  %v3758 = vsel %vm3629, %v3564, %v3694
  %v3759 = vsel %vm3630, %v3565, %v3695
  %v3760 = vsel %vm3631, %v3566, %v3696
  %v3761 = vsel %vm3632, %v3567, %v3697
  %v3762 = vsel %vm3633, %v3568, %v3698
  %v3763 = vsel %vm3634, %v3569, %v3699
  %v3764 = vsel %vm3635, %v3570, %v3700
  %v3765 = vsel %vm3636, %v3571, %v3701
  %v3766 = vsel %vm3637, %v3572, %v3702
  %v3767 = vsel %vm3638, %v3573, %v3703
  %v3768 = vsel %vm3639, %v3574, %v3704
  %v3769 = vsel %vm3640, %v3575, %v3705
  %v3770 = vsel %vm3641, %v3576, %v3706
  %v3771 = vsel %vm3642, %v3577, %v3707
  %v3772 = vsel %vm3643, %v3578, %v3708
  %v3773 = vsel %vm3644, %v3579, %v3709
  %v3774 = vsel %vm3645, %v3580, %v3710
  %v3775 = vsel %vm3646, %v3581, %v3711
  %v3776 = vsel %vm3647, %v3582, %v3712
  %v3777 = vsel %vm3648, %v3583, %v3713
  %v3778 = vsel %vm3649, %v3584, %v3714
  %v3779 = vsel %vm3650, %v3585, %v3715
  %v3780 = vsel %vm3651, %v3586, %v3716
  %v3781 = vsel %vm3652, %v3587, %v3717
  %v3782 = vsel %vm3653, %v3588, %v3718
  %v3783 = vsel %vm3654, %v3589, %v3719
  %v3784 = vsel %vm3655, %v3590, %v3720
  %v3785 = vsel %vm3656, %v3591, %v3721
  %v3786 = vsel %vm3657, %v3592, %v3722
  %v3787 = vsel %vm3658, %v3593, %v3723
  %v3788 = vsel %vm3659, %v3594, %v3724
  %v3789 = vsel %vm3660, %v3595, %v3725
  %v3790 = vsel %vm3661, %v3596, %v3726
  %v3791 = vsel %vm3662, %v3597, %v3727
  %v3792 = vsel %vm3663, %v3598, %v3728
  %v3793 = vsel %vm3664, %v3599, %v3729
  %v3794 = vsel %vm3665, %v3600, %v3730
  %v3795 = vsel %vm3666, %v3601, %v3731
  %v3796 = vsel %vm3667, %v3602, %v3732
  %v3797 = vsel %vm3668, %v3603, %v3733
  %v3798 = vsel %vm3669, %v3604, %v3734
  %v3799 = vsel %vm3670, %v3605, %v3735
  %v3800 = vsel %vm3671, %v3606, %v3736
  %v3801 = vsel %vm3672, %v3607, %v3737
  %v3802 = vsel %vm3673, %v3608, %v3738
  %v3803 = vsel %vm3674, %v3609, %v3739
  %v3804 = vsel %vm3675, %v3610, %v3740
  %v3805 = vsel %vm3676, %v3611, %v3741
  %v3806 = vsel %vm3677, %v3612, %v3742
  %v3807 = vsel %vm3678, %v3613, %v3743
  %v3808 = vsel %vm3679, %v3614, %v3744
  %v3809 = vsel %vm3680, %v3615, %v3745
  %v3810 = vsel %vm3681, %v3616, %v3746
  %v3811 = vsel %vm3682, %v3617, %v3747
  %v3812 = vsel %vm3683, %v3618, %v3748
  %v3813 = vsel %vm3684, %v3619, %v3749
  %v3814 = vsel %vm3685, %v3620, %v3750
  %v3815 = vsel %vm3686, %v3621, %v3751
  %v3816 = vsel %vm3687, %v3622, %v3752
  %v3817 = vsel %vm3688, %v3623, %v3753
  %v3818 = vsel %vm3689, %v3624, %v3754
  %v3851 = vrot.slane %v3757, 1
  %v3852 = vrot.slane %v3755, 1
  %v3853 = vrot.slane %v3759, 1
  %v3854 = vrot.slane %v3761, 1
  %v3855 = vrot.slane %v3763, 1
  %v3856 = vrot.slane %v3765, 1
  %v3857 = vrot.slane %v3767, 1
  %v3858 = vrot.slane %v3769, 1
  %v3859 = vrot.slane %v3771, 1
  %v3860 = vrot.slane %v3773, 1
  %v3861 = vrot.slane %v3775, 1
  %v3862 = vrot.slane %v3777, 1
  %v3863 = vrot.slane %v3779, 1
  %v3864 = vrot.slane %v3781, 1
  %v3865 = vrot.slane %v3783, 1
  %v3866 = vrot.slane %v3785, 1
  %v3867 = vrot.slane %v3789, 1
  %v3868 = vrot.slane %v3787, 1
  %v3869 = vrot.slane %v3791, 1
  %v3870 = vrot.slane %v3793, 1
  %v3871 = vrot.slane %v3795, 1
  %v3872 = vrot.slane %v3797, 1
  %v3873 = vrot.slane %v3799, 1
  %v3874 = vrot.slane %v3801, 1
  %v3875 = vrot.slane %v3803, 1
  %v3876 = vrot.slane %v3805, 1
  %v3877 = vrot.slane %v3807, 1
  %v3878 = vrot.slane %v3809, 1
  %v3879 = vrot.slane %v3811, 1
  %v3880 = vrot.slane %v3813, 1
  %v3881 = vrot.slane %v3815, 1
  %v3882 = vrot.slane %v3817, 1
  %vm3947 = vcmask 1040384
  %v3948 = vrot.slane %v3757, 7
  %v3949 = vrot.slane %v3758, 7
  %v3950 = vsel %vm3947, %v3948, %v3949
  %v3951 = vrot.slane %v3755, 7
  %v3952 = vrot.slane %v3756, 7
  %v3953 = vsel %vm3947, %v3951, %v3952
  %v3954 = vrot.slane %v3759, 7
  %v3955 = vrot.slane %v3760, 7
  %v3956 = vsel %vm3947, %v3954, %v3955
  %v3957 = vrot.slane %v3761, 7
  %v3958 = vrot.slane %v3762, 7
  %v3959 = vsel %vm3947, %v3957, %v3958
  %v3960 = vrot.slane %v3763, 7
  %v3961 = vrot.slane %v3764, 7
  %v3962 = vsel %vm3947, %v3960, %v3961
  %v3963 = vrot.slane %v3765, 7
  %v3964 = vrot.slane %v3766, 7
  %v3965 = vsel %vm3947, %v3963, %v3964
  %v3966 = vrot.slane %v3767, 7
  %v3967 = vrot.slane %v3768, 7
  %v3968 = vsel %vm3947, %v3966, %v3967
  %v3969 = vrot.slane %v3769, 7
  %v3970 = vrot.slane %v3770, 7
  %v3971 = vsel %vm3947, %v3969, %v3970
  %v3972 = vrot.slane %v3771, 7
  %v3973 = vrot.slane %v3772, 7
  %v3974 = vsel %vm3947, %v3972, %v3973
  %v3975 = vrot.slane %v3773, 7
  %v3976 = vrot.slane %v3774, 7
  %v3977 = vsel %vm3947, %v3975, %v3976
  %v3978 = vrot.slane %v3775, 7
  %v3979 = vrot.slane %v3776, 7
  %v3980 = vsel %vm3947, %v3978, %v3979
  %v3981 = vrot.slane %v3777, 7
  %v3982 = vrot.slane %v3778, 7
  %v3983 = vsel %vm3947, %v3981, %v3982
  %v3984 = vrot.slane %v3779, 7
  %v3985 = vrot.slane %v3780, 7
  %v3986 = vsel %vm3947, %v3984, %v3985
  %v3987 = vrot.slane %v3781, 7
  %v3988 = vrot.slane %v3782, 7
  %v3989 = vsel %vm3947, %v3987, %v3988
  %v3990 = vrot.slane %v3783, 7
  %v3991 = vrot.slane %v3784, 7
  %v3992 = vsel %vm3947, %v3990, %v3991
  %v3993 = vrot.slane %v3785, 7
  %v3994 = vrot.slane %v3786, 7
  %v3995 = vsel %vm3947, %v3993, %v3994
  %v3996 = vrot.slane %v3789, 7
  %v3997 = vrot.slane %v3790, 7
  %v3998 = vsel %vm3947, %v3996, %v3997
  %v3999 = vrot.slane %v3787, 7
  %v4000 = vrot.slane %v3788, 7
  %v4001 = vsel %vm3947, %v3999, %v4000
  %v4002 = vrot.slane %v3791, 7
  %v4003 = vrot.slane %v3792, 7
  %v4004 = vsel %vm3947, %v4002, %v4003
  %v4005 = vrot.slane %v3793, 7
  %v4006 = vrot.slane %v3794, 7
  %v4007 = vsel %vm3947, %v4005, %v4006
  %v4008 = vrot.slane %v3795, 7
  %v4009 = vrot.slane %v3796, 7
  %v4010 = vsel %vm3947, %v4008, %v4009
  %v4011 = vrot.slane %v3797, 7
  %v4012 = vrot.slane %v3798, 7
  %v4013 = vsel %vm3947, %v4011, %v4012
  %v4014 = vrot.slane %v3799, 7
  %v4015 = vrot.slane %v3800, 7
  %v4016 = vsel %vm3947, %v4014, %v4015
  %v4017 = vrot.slane %v3801, 7
  %v4018 = vrot.slane %v3802, 7
  %v4019 = vsel %vm3947, %v4017, %v4018
  %v4020 = vrot.slane %v3803, 7
  %v4021 = vrot.slane %v3804, 7
  %v4022 = vsel %vm3947, %v4020, %v4021
  %v4023 = vrot.slane %v3805, 7
  %v4024 = vrot.slane %v3806, 7
  %v4025 = vsel %vm3947, %v4023, %v4024
  %v4026 = vrot.slane %v3807, 7
  %v4027 = vrot.slane %v3808, 7
  %v4028 = vsel %vm3947, %v4026, %v4027
  %v4029 = vrot.slane %v3809, 7
  %v4030 = vrot.slane %v3810, 7
  %v4031 = vsel %vm3947, %v4029, %v4030
  %v4032 = vrot.slane %v3811, 7
  %v4033 = vrot.slane %v3812, 7
  %v4034 = vsel %vm3947, %v4032, %v4033
  %v4035 = vrot.slane %v3813, 7
  %v4036 = vrot.slane %v3814, 7
  %v4037 = vsel %vm3947, %v4035, %v4036
  %v4038 = vrot.slane %v3815, 7
  %v4039 = vrot.slane %v3816, 7
  %v4040 = vsel %vm3947, %v4038, %v4039
  %v4041 = vrot.slane %v3817, 7
  %v4042 = vrot.slane %v3818, 7
  %v4043 = vsel %vm3947, %v4041, %v4042
  %v4140 = vrot.slane %v3758, 5
  %v4141 = vrot.slane %v3756, 5
  %v4142 = vrot.slane %v3760, 5
  %v4143 = vrot.slane %v3762, 5
  %v4144 = vrot.slane %v3764, 5
  %v4145 = vrot.slane %v3766, 5
  %v4146 = vrot.slane %v3768, 5
  %v4147 = vrot.slane %v3770, 5
  %v4148 = vrot.slane %v3772, 5
  %v4149 = vrot.slane %v3774, 5
  %v4150 = vrot.slane %v3776, 5
  %v4151 = vrot.slane %v3778, 5
  %v4152 = vrot.slane %v3780, 5
  %v4153 = vrot.slane %v3782, 5
  %v4154 = vrot.slane %v3784, 5
  %v4155 = vrot.slane %v3786, 5
  %v4156 = vrot.slane %v3790, 5
  %v4157 = vrot.slane %v3788, 5
  %v4158 = vrot.slane %v3792, 5
  %v4159 = vrot.slane %v3794, 5
  %v4160 = vrot.slane %v3796, 5
  %v4161 = vrot.slane %v3798, 5
  %v4162 = vrot.slane %v3800, 5
  %v4163 = vrot.slane %v3802, 5
  %v4164 = vrot.slane %v3804, 5
  %v4165 = vrot.slane %v3806, 5
  %v4166 = vrot.slane %v3808, 5
  %v4167 = vrot.slane %v3810, 5
  %v4168 = vrot.slane %v3812, 5
  %v4169 = vrot.slane %v3814, 5
  %v4170 = vrot.slane %v3816, 5
  %v4171 = vrot.slane %v3818, 5
  %v4204 = vsel %vm3947, %v3851, %v3948
  %v4205 = vsel %vm3947, %v3852, %v3951
  %v4206 = vsel %vm3947, %v3853, %v3954
  %v4207 = vsel %vm3947, %v3854, %v3957
  %v4208 = vsel %vm3947, %v3855, %v3960
  %v4209 = vsel %vm3947, %v3856, %v3963
  %v4210 = vsel %vm3947, %v3857, %v3966
  %v4211 = vsel %vm3947, %v3858, %v3969
  %v4212 = vsel %vm3947, %v3859, %v3972
  %v4213 = vsel %vm3947, %v3860, %v3975
  %v4214 = vsel %vm3947, %v3861, %v3978
  %v4215 = vsel %vm3947, %v3862, %v3981
  %v4216 = vsel %vm3947, %v3863, %v3984
  %v4217 = vsel %vm3947, %v3864, %v3987
  %v4218 = vsel %vm3947, %v3865, %v3990
  %v4219 = vsel %vm3947, %v3866, %v3993
  %v4220 = vsel %vm3947, %v3867, %v3996
  %v4221 = vsel %vm3947, %v3868, %v3999
  %v4222 = vsel %vm3947, %v3869, %v4002
  %v4223 = vsel %vm3947, %v3870, %v4005
  %v4224 = vsel %vm3947, %v3871, %v4008
  %v4225 = vsel %vm3947, %v3872, %v4011
  %v4226 = vsel %vm3947, %v3873, %v4014
  %v4227 = vsel %vm3947, %v3874, %v4017
  %v4228 = vsel %vm3947, %v3875, %v4020
  %v4229 = vsel %vm3947, %v3876, %v4023
  %v4230 = vsel %vm3947, %v3877, %v4026
  %v4231 = vsel %vm3947, %v3878, %v4029
  %v4232 = vsel %vm3947, %v3879, %v4032
  %v4233 = vsel %vm3947, %v3880, %v4035
  %v4234 = vsel %vm3947, %v3881, %v4038
  %v4235 = vsel %vm3947, %v3882, %v4041
  %v4236 = vsel %vm3947, %v3949, %v4140
  %v4237 = vsel %vm3947, %v3952, %v4141
  %v4238 = vsel %vm3947, %v3955, %v4142
  %v4239 = vsel %vm3947, %v3958, %v4143
  %v4240 = vsel %vm3947, %v3961, %v4144
  %v4241 = vsel %vm3947, %v3964, %v4145
  %v4242 = vsel %vm3947, %v3967, %v4146
  %v4243 = vsel %vm3947, %v3970, %v4147
  %v4244 = vsel %vm3947, %v3973, %v4148
  %v4245 = vsel %vm3947, %v3976, %v4149
  %v4246 = vsel %vm3947, %v3979, %v4150
  %v4247 = vsel %vm3947, %v3982, %v4151
  %v4248 = vsel %vm3947, %v3985, %v4152
  %v4249 = vsel %vm3947, %v3988, %v4153
  %v4250 = vsel %vm3947, %v3991, %v4154
  %v4251 = vsel %vm3947, %v3994, %v4155
  %v4252 = vsel %vm3947, %v3997, %v4156
  %v4253 = vsel %vm3947, %v4000, %v4157
  %v4254 = vsel %vm3947, %v4003, %v4158
  %v4255 = vsel %vm3947, %v4006, %v4159
  %v4256 = vsel %vm3947, %v4009, %v4160
  %v4257 = vsel %vm3947, %v4012, %v4161
  %v4258 = vsel %vm3947, %v4015, %v4162
  %v4259 = vsel %vm3947, %v4018, %v4163
  %v4260 = vsel %vm3947, %v4021, %v4164
  %v4261 = vsel %vm3947, %v4024, %v4165
  %v4262 = vsel %vm3947, %v4027, %v4166
  %v4263 = vsel %vm3947, %v4030, %v4167
  %v4264 = vsel %vm3947, %v4033, %v4168
  %v4265 = vsel %vm3947, %v4036, %v4169
  %v4266 = vsel %vm3947, %v4039, %v4170
  %v4267 = vsel %vm3947, %v4042, %v4171
  %v4268 = vpack.c.bf16 %v3950, %v4204
  %v4269 = vpack.c.bf16 %v3953, %v4205
  %v4270 = vpack.c.bf16 %v3956, %v4206
  %v4271 = vpack.c.bf16 %v3959, %v4207
  %v4272 = vpack.c.bf16 %v3962, %v4208
  %v4273 = vpack.c.bf16 %v3965, %v4209
  %v4274 = vpack.c.bf16 %v3968, %v4210
  %v4275 = vpack.c.bf16 %v3971, %v4211
  %v4276 = vpack.c.bf16 %v3974, %v4212
  %v4277 = vpack.c.bf16 %v3977, %v4213
  %v4278 = vpack.c.bf16 %v3980, %v4214
  %v4279 = vpack.c.bf16 %v3983, %v4215
  %v4280 = vpack.c.bf16 %v3986, %v4216
  %v4281 = vpack.c.bf16 %v3989, %v4217
  %v4282 = vpack.c.bf16 %v3992, %v4218
  %v4283 = vpack.c.bf16 %v3998, %v4220
  %v4284 = vpack.c.bf16 %v4001, %v4221
  %v4285 = vpack.c.bf16 %v4004, %v4222
  %v4286 = vpack.c.bf16 %v4007, %v4223
  %v4287 = vpack.c.bf16 %v4010, %v4224
  %v4288 = vpack.c.bf16 %v4013, %v4225
  %v4289 = vpack.c.bf16 %v4016, %v4226
  %v4290 = vpack.c.bf16 %v4019, %v4227
  %v4291 = vpack.c.bf16 %v4022, %v4228
  %v4292 = vpack.c.bf16 %v4025, %v4229
  %v4293 = vpack.c.bf16 %v4028, %v4230
  %v4294 = vpack.c.bf16 %v4031, %v4231
  %v4295 = vpack.c.bf16 %v4034, %v4232
  %v4296 = vpack.c.bf16 %v4037, %v4233
  %v4297 = vpack.c.bf16 %v4040, %v4234
  %4298 = vst.msk [vmem:[#allocation2] sm:$0xff] %vm366, %v4268
  %4299 = vst.msk [vmem:[#allocation2 + $0x8] sm:$0xff] %vm366, %v4269
  %4300 = vst.msk [vmem:[#allocation2 + $0x10] sm:$0xff] %vm366, %v4268
  %4301 = vst.msk [vmem:[#allocation2 + $0x18] sm:$0xff] %vm366, %v4270
  %4302 = vst.msk [vmem:[#allocation2 + $0x20] sm:$0xff] %vm366, %v4271
  %4303 = vst.msk [vmem:[#allocation2 + $0x28] sm:$0xff] %vm366, %v4272
  %4304 = vst.msk [vmem:[#allocation2 + $0x30] sm:$0xff] %vm366, %v4273
  %4305 = vst.msk [vmem:[#allocation2 + $0x38] sm:$0xff] %vm366, %v4274
  %4306 = vst.msk [vmem:[#allocation2 + $0x40] sm:$0xff] %vm366, %v4275
  %4307 = vst.msk [vmem:[#allocation2 + $0x48] sm:$0xff] %vm366, %v4276
  %4308 = vst.msk [vmem:[#allocation2 + $0x50] sm:$0xff] %vm366, %v4277
  %4309 = vst.msk [vmem:[#allocation2 + $0x58] sm:$0xff] %vm366, %v4278
  %4310 = vst.msk [vmem:[#allocation2 + $0x60] sm:$0xff] %vm366, %v4279
  %4311 = vst.msk [vmem:[#allocation2 + $0x68] sm:$0xff] %vm366, %v4280
  %4312 = vst.msk [vmem:[#allocation2 + $0x70] sm:$0xff] %vm366, %v4281
  %4313 = vst.msk [vmem:[#allocation2 + $0x78] sm:$0xff] %vm366, %v4282
  %4314 = vst.msk [vmem:[#allocation2 + $0x80] sm:$0xff] %vm366, %v4283
  %4315 = vst.msk [vmem:[#allocation2 + $0x88] sm:$0xff] %vm366, %v4284
  %4316 = vst.msk [vmem:[#allocation2 + $0x90] sm:$0xff] %vm366, %v4283
  %4317 = vst.msk [vmem:[#allocation2 + $0x98] sm:$0xff] %vm366, %v4285
  %4318 = vst.msk [vmem:[#allocation2 + $0xa0] sm:$0xff] %vm366, %v4286
  %4319 = vst.msk [vmem:[#allocation2 + $0xa8] sm:$0xff] %vm366, %v4287
  %4320 = vst.msk [vmem:[#allocation2 + $0xb0] sm:$0xff] %vm366, %v4288
  %4321 = vst.msk [vmem:[#allocation2 + $0xb8] sm:$0xff] %vm366, %v4289
  %4322 = vst.msk [vmem:[#allocation2 + $0xc0] sm:$0xff] %vm366, %v4290
  %4323 = vst.msk [vmem:[#allocation2 + $0xc8] sm:$0xff] %vm366, %v4291
  %4324 = vst.msk [vmem:[#allocation2 + $0xd0] sm:$0xff] %vm366, %v4292
  %4325 = vst.msk [vmem:[#allocation2 + $0xd8] sm:$0xff] %vm366, %v4293
  %4326 = vst.msk [vmem:[#allocation2 + $0xe0] sm:$0xff] %vm366, %v4294
  %4327 = vst.msk [vmem:[#allocation2 + $0xe8] sm:$0xff] %vm366, %v4295
  %4328 = vst.msk [vmem:[#allocation2 + $0xf0] sm:$0xff] %vm366, %v4296
  %4329 = vst.msk [vmem:[#allocation2 + $0xf8] sm:$0xff] %vm366, %v4297
  %vm4390 = vcmask 1046528
  %v4391 = vrot.slane %v4204, 1
  %v4392 = vrot.slane %v3950, 1
  %v4393 = vsel %vm4390, %v4391, %v4392
  %v4394 = vrot.slane %v4236, 1
  %v4395 = vsel %vm4390, %v4392, %v4394
  %v4396 = vrot.slane %v4205, 1
  %v4397 = vrot.slane %v3953, 1
  %v4398 = vsel %vm4390, %v4396, %v4397
  %v4399 = vrot.slane %v4237, 1
  %v4400 = vsel %vm4390, %v4397, %v4399
  %v4401 = vrot.slane %v4206, 1
  %v4402 = vrot.slane %v3956, 1
  %v4403 = vsel %vm4390, %v4401, %v4402
  %v4404 = vrot.slane %v4238, 1
  %v4405 = vsel %vm4390, %v4402, %v4404
  %v4406 = vrot.slane %v4207, 1
  %v4407 = vrot.slane %v3959, 1
  %v4408 = vsel %vm4390, %v4406, %v4407
  %v4409 = vrot.slane %v4239, 1
  %v4410 = vsel %vm4390, %v4407, %v4409
  %v4411 = vrot.slane %v4208, 1
  %v4412 = vrot.slane %v3962, 1
  %v4413 = vsel %vm4390, %v4411, %v4412
  %v4414 = vrot.slane %v4240, 1
  %v4415 = vsel %vm4390, %v4412, %v4414
  %v4416 = vrot.slane %v4209, 1
  %v4417 = vrot.slane %v3965, 1
  %v4418 = vsel %vm4390, %v4416, %v4417
  %v4419 = vrot.slane %v4241, 1
  %v4420 = vsel %vm4390, %v4417, %v4419
  %v4421 = vrot.slane %v4210, 1
  %v4422 = vrot.slane %v3968, 1
  %v4423 = vsel %vm4390, %v4421, %v4422
  %v4424 = vrot.slane %v4242, 1
  %v4425 = vsel %vm4390, %v4422, %v4424
  %v4426 = vrot.slane %v4211, 1
  %v4427 = vrot.slane %v3971, 1
  %v4428 = vsel %vm4390, %v4426, %v4427
  %v4429 = vrot.slane %v4243, 1
  %v4430 = vsel %vm4390, %v4427, %v4429
  %v4431 = vrot.slane %v4212, 1
  %v4432 = vrot.slane %v3974, 1
  %v4433 = vsel %vm4390, %v4431, %v4432
  %v4434 = vrot.slane %v4244, 1
  %v4435 = vsel %vm4390, %v4432, %v4434
  %v4436 = vrot.slane %v4213, 1
  %v4437 = vrot.slane %v3977, 1
  %v4438 = vsel %vm4390, %v4436, %v4437
  %v4439 = vrot.slane %v4245, 1
  %v4440 = vsel %vm4390, %v4437, %v4439
  %v4441 = vrot.slane %v4214, 1
  %v4442 = vrot.slane %v3980, 1
  %v4443 = vsel %vm4390, %v4441, %v4442
  %v4444 = vrot.slane %v4246, 1
  %v4445 = vsel %vm4390, %v4442, %v4444
  %v4446 = vrot.slane %v4215, 1
  %v4447 = vrot.slane %v3983, 1
  %v4448 = vsel %vm4390, %v4446, %v4447
  %v4449 = vrot.slane %v4247, 1
  %v4450 = vsel %vm4390, %v4447, %v4449
  %v4451 = vrot.slane %v4216, 1
  %v4452 = vrot.slane %v3986, 1
  %v4453 = vsel %vm4390, %v4451, %v4452
  %v4454 = vrot.slane %v4248, 1
  %v4455 = vsel %vm4390, %v4452, %v4454
  %v4456 = vrot.slane %v4217, 1
  %v4457 = vrot.slane %v3989, 1
  %v4458 = vsel %vm4390, %v4456, %v4457
  %v4459 = vrot.slane %v4249, 1
  %v4460 = vsel %vm4390, %v4457, %v4459
  %v4461 = vrot.slane %v4218, 1
  %v4462 = vrot.slane %v3992, 1
  %v4463 = vsel %vm4390, %v4461, %v4462
  %v4464 = vrot.slane %v4250, 1
  %v4465 = vsel %vm4390, %v4462, %v4464
  %v4466 = vrot.slane %v4220, 1
  %v4467 = vrot.slane %v3998, 1
  %v4468 = vsel %vm4390, %v4466, %v4467
  %v4469 = vrot.slane %v4252, 1
  %v4470 = vsel %vm4390, %v4467, %v4469
  %v4471 = vrot.slane %v4221, 1
  %v4472 = vrot.slane %v4001, 1
  %v4473 = vsel %vm4390, %v4471, %v4472
  %v4474 = vrot.slane %v4253, 1
  %v4475 = vsel %vm4390, %v4472, %v4474
  %v4476 = vrot.slane %v4222, 1
  %v4477 = vrot.slane %v4004, 1
  %v4478 = vsel %vm4390, %v4476, %v4477
  %v4479 = vrot.slane %v4254, 1
  %v4480 = vsel %vm4390, %v4477, %v4479
  %v4481 = vrot.slane %v4223, 1
  %v4482 = vrot.slane %v4007, 1
  %v4483 = vsel %vm4390, %v4481, %v4482
  %v4484 = vrot.slane %v4255, 1
  %v4485 = vsel %vm4390, %v4482, %v4484
  %v4486 = vrot.slane %v4224, 1
  %v4487 = vrot.slane %v4010, 1
  %v4488 = vsel %vm4390, %v4486, %v4487
  %v4489 = vrot.slane %v4256, 1
  %v4490 = vsel %vm4390, %v4487, %v4489
  %v4491 = vrot.slane %v4225, 1
  %v4492 = vrot.slane %v4013, 1
  %v4493 = vsel %vm4390, %v4491, %v4492
  %v4494 = vrot.slane %v4257, 1
  %v4495 = vsel %vm4390, %v4492, %v4494
  %v4496 = vrot.slane %v4226, 1
  %v4497 = vrot.slane %v4016, 1
  %v4498 = vsel %vm4390, %v4496, %v4497
  %v4499 = vrot.slane %v4258, 1
  %v4500 = vsel %vm4390, %v4497, %v4499
  %v4501 = vrot.slane %v4227, 1
  %v4502 = vrot.slane %v4019, 1
  %v4503 = vsel %vm4390, %v4501, %v4502
  %v4504 = vrot.slane %v4259, 1
  %v4505 = vsel %vm4390, %v4502, %v4504
  %v4506 = vrot.slane %v4228, 1
  %v4507 = vrot.slane %v4022, 1
  %v4508 = vsel %vm4390, %v4506, %v4507
  %v4509 = vrot.slane %v4260, 1
  %v4510 = vsel %vm4390, %v4507, %v4509
  %v4511 = vrot.slane %v4229, 1
  %v4512 = vrot.slane %v4025, 1
  %v4513 = vsel %vm4390, %v4511, %v4512
  %v4514 = vrot.slane %v4261, 1
  %v4515 = vsel %vm4390, %v4512, %v4514
  %v4516 = vrot.slane %v4230, 1
  %v4517 = vrot.slane %v4028, 1
  %v4518 = vsel %vm4390, %v4516, %v4517
  %v4519 = vrot.slane %v4262, 1
  %v4520 = vsel %vm4390, %v4517, %v4519
  %v4521 = vrot.slane %v4231, 1
  %v4522 = vrot.slane %v4031, 1
  %v4523 = vsel %vm4390, %v4521, %v4522
  %v4524 = vrot.slane %v4263, 1
  %v4525 = vsel %vm4390, %v4522, %v4524
  %v4526 = vrot.slane %v4232, 1
  %v4527 = vrot.slane %v4034, 1
  %v4528 = vsel %vm4390, %v4526, %v4527
  %v4529 = vrot.slane %v4264, 1
  %v4530 = vsel %vm4390, %v4527, %v4529
  %v4531 = vrot.slane %v4233, 1
  %v4532 = vrot.slane %v4037, 1
  %v4533 = vsel %vm4390, %v4531, %v4532
  %v4534 = vrot.slane %v4265, 1
  %v4535 = vsel %vm4390, %v4532, %v4534
  %v4536 = vrot.slane %v4234, 1
  %v4537 = vrot.slane %v4040, 1
  %v4538 = vsel %vm4390, %v4536, %v4537
  %v4539 = vrot.slane %v4266, 1
  %v4540 = vsel %vm4390, %v4537, %v4539
  %v4601 = vpack.c.bf16 %v4395, %v4393
  %v4602 = vpack.c.bf16 %v4400, %v4398
  %v4603 = vpack.c.bf16 %v4405, %v4403
  %v4604 = vpack.c.bf16 %v4410, %v4408
  %v4605 = vpack.c.bf16 %v4415, %v4413
  %v4606 = vpack.c.bf16 %v4420, %v4418
  %v4607 = vpack.c.bf16 %v4425, %v4423
  %v4608 = vpack.c.bf16 %v4430, %v4428
  %v4609 = vpack.c.bf16 %v4435, %v4433
  %v4610 = vpack.c.bf16 %v4440, %v4438
  %v4611 = vpack.c.bf16 %v4445, %v4443
  %v4612 = vpack.c.bf16 %v4450, %v4448
  %v4613 = vpack.c.bf16 %v4455, %v4453
  %v4614 = vpack.c.bf16 %v4460, %v4458
  %v4615 = vpack.c.bf16 %v4465, %v4463
  %v4616 = vpack.c.bf16 %v4470, %v4468
  %v4617 = vpack.c.bf16 %v4475, %v4473
  %v4618 = vpack.c.bf16 %v4480, %v4478
  %v4619 = vpack.c.bf16 %v4485, %v4483
  %v4620 = vpack.c.bf16 %v4490, %v4488
  %v4621 = vpack.c.bf16 %v4495, %v4493
  %v4622 = vpack.c.bf16 %v4500, %v4498
  %v4623 = vpack.c.bf16 %v4505, %v4503
  %v4624 = vpack.c.bf16 %v4510, %v4508
  %v4625 = vpack.c.bf16 %v4515, %v4513
  %v4626 = vpack.c.bf16 %v4520, %v4518
  %v4627 = vpack.c.bf16 %v4525, %v4523
  %v4628 = vpack.c.bf16 %v4530, %v4528
  %v4629 = vpack.c.bf16 %v4535, %v4533
  %v4630 = vpack.c.bf16 %v4540, %v4538
  %4661 = vrot.lane.b32.xlu0 %v4601, 4
  %v4662 = vpop.permute.xlu0 %4661
  %4663 = vrot.lane.b32.xlu0 %v4602, 4
  %v4664 = vpop.permute.xlu0 %4663
  %4665 = vrot.lane.b32.xlu0 %v4603, 4
  %v4666 = vpop.permute.xlu0 %4665
  %4667 = vrot.lane.b32.xlu0 %v4604, 4
  %v4668 = vpop.permute.xlu0 %4667
  %4669 = vrot.lane.b32.xlu0 %v4605, 4
  %v4670 = vpop.permute.xlu0 %4669
  %4671 = vrot.lane.b32.xlu0 %v4606, 4
  %v4672 = vpop.permute.xlu0 %4671
  %4673 = vrot.lane.b32.xlu0 %v4607, 4
  %v4674 = vpop.permute.xlu0 %4673
  %4675 = vrot.lane.b32.xlu0 %v4608, 4
  %v4676 = vpop.permute.xlu0 %4675
  %4677 = vrot.lane.b32.xlu0 %v4609, 4
  %v4678 = vpop.permute.xlu0 %4677
  %4679 = vrot.lane.b32.xlu0 %v4610, 4
  %v4680 = vpop.permute.xlu0 %4679
  %4681 = vrot.lane.b32.xlu0 %v4611, 4
  %v4682 = vpop.permute.xlu0 %4681
  %4683 = vrot.lane.b32.xlu0 %v4612, 4
  %v4684 = vpop.permute.xlu0 %4683
  %4685 = vrot.lane.b32.xlu0 %v4613, 4
  %v4686 = vpop.permute.xlu0 %4685
  %4687 = vrot.lane.b32.xlu0 %v4614, 4
  %v4688 = vpop.permute.xlu0 %4687
  %4689 = vrot.lane.b32.xlu0 %v4615, 4
  %v4690 = vpop.permute.xlu0 %4689
  %4691 = vrot.lane.b32.xlu0 %v4616, 4
  %v4692 = vpop.permute.xlu0 %4691
  %4693 = vrot.lane.b32.xlu0 %v4617, 4
  %v4694 = vpop.permute.xlu0 %4693
  %4695 = vrot.lane.b32.xlu0 %v4618, 4
  %v4696 = vpop.permute.xlu0 %4695
  %4697 = vrot.lane.b32.xlu0 %v4619, 4
  %v4698 = vpop.permute.xlu0 %4697
  %4699 = vrot.lane.b32.xlu0 %v4620, 4
  %v4700 = vpop.permute.xlu0 %4699
  %4701 = vrot.lane.b32.xlu0 %v4621, 4
  %v4702 = vpop.permute.xlu0 %4701
  %4703 = vrot.lane.b32.xlu0 %v4622, 4
  %v4704 = vpop.permute.xlu0 %4703
  %4705 = vrot.lane.b32.xlu0 %v4623, 4
  %v4706 = vpop.permute.xlu0 %4705
  %4707 = vrot.lane.b32.xlu0 %v4624, 4
  %v4708 = vpop.permute.xlu0 %4707
  %4709 = vrot.lane.b32.xlu0 %v4625, 4
  %v4710 = vpop.permute.xlu0 %4709
  %4711 = vrot.lane.b32.xlu0 %v4626, 4
  %v4712 = vpop.permute.xlu0 %4711
  %4713 = vrot.lane.b32.xlu0 %v4627, 4
  %v4714 = vpop.permute.xlu0 %4713
  %4715 = vrot.lane.b32.xlu0 %v4628, 4
  %v4716 = vpop.permute.xlu0 %4715
  %4717 = vrot.lane.b32.xlu0 %v4629, 4
  %v4718 = vpop.permute.xlu0 %4717
  %4719 = vrot.lane.b32.xlu0 %v4630, 4
  %v4720 = vpop.permute.xlu0 %4719
  %4751 = vst.msk [vmem:[#allocation2] sm:$0xff] %vm1362, %v4662
  %4752 = vst.msk [vmem:[#allocation2 + $0x8] sm:$0xff] %vm1362, %v4664
  %4753 = vst.msk [vmem:[#allocation2 + $0x10] sm:$0xff] %vm1362, %v4662
  %4754 = vst.msk [vmem:[#allocation2 + $0x18] sm:$0xff] %vm1362, %v4666
  %4755 = vst.msk [vmem:[#allocation2 + $0x20] sm:$0xff] %vm1362, %v4668
  %4756 = vst.msk [vmem:[#allocation2 + $0x28] sm:$0xff] %vm1362, %v4670
  %4757 = vst.msk [vmem:[#allocation2 + $0x30] sm:$0xff] %vm1362, %v4672
  %4758 = vst.msk [vmem:[#allocation2 + $0x38] sm:$0xff] %vm1362, %v4674
  %4759 = vst.msk [vmem:[#allocation2 + $0x40] sm:$0xff] %vm1362, %v4676
  %4760 = vst.msk [vmem:[#allocation2 + $0x48] sm:$0xff] %vm1362, %v4678
  %4761 = vst.msk [vmem:[#allocation2 + $0x50] sm:$0xff] %vm1362, %v4680
  %4762 = vst.msk [vmem:[#allocation2 + $0x58] sm:$0xff] %vm1362, %v4682
  %4763 = vst.msk [vmem:[#allocation2 + $0x60] sm:$0xff] %vm1362, %v4684
  %4764 = vst.msk [vmem:[#allocation2 + $0x68] sm:$0xff] %vm1362, %v4686
  %4765 = vst.msk [vmem:[#allocation2 + $0x70] sm:$0xff] %vm1362, %v4688
  %4766 = vst.msk [vmem:[#allocation2 + $0x78] sm:$0xff] %vm1362, %v4690
  %4767 = vst.msk [vmem:[#allocation2 + $0x80] sm:$0xff] %vm1362, %v4692
  %4768 = vst.msk [vmem:[#allocation2 + $0x88] sm:$0xff] %vm1362, %v4694
  %4769 = vst.msk [vmem:[#allocation2 + $0x90] sm:$0xff] %vm1362, %v4692
  %4770 = vst.msk [vmem:[#allocation2 + $0x98] sm:$0xff] %vm1362, %v4696
  %4771 = vst.msk [vmem:[#allocation2 + $0xa0] sm:$0xff] %vm1362, %v4698
  %4772 = vst.msk [vmem:[#allocation2 + $0xa8] sm:$0xff] %vm1362, %v4700
  %4773 = vst.msk [vmem:[#allocation2 + $0xb0] sm:$0xff] %vm1362, %v4702
  %4774 = vst.msk [vmem:[#allocation2 + $0xb8] sm:$0xff] %vm1362, %v4704
  %4775 = vst.msk [vmem:[#allocation2 + $0xc0] sm:$0xff] %vm1362, %v4706
  %4776 = vst.msk [vmem:[#allocation2 + $0xc8] sm:$0xff] %vm1362, %v4708
  %4777 = vst.msk [vmem:[#allocation2 + $0xd0] sm:$0xff] %vm1362, %v4710
  %4778 = vst.msk [vmem:[#allocation2 + $0xd8] sm:$0xff] %vm1362, %v4712
  %4779 = vst.msk [vmem:[#allocation2 + $0xe0] sm:$0xff] %vm1362, %v4714
  %4780 = vst.msk [vmem:[#allocation2 + $0xe8] sm:$0xff] %vm1362, %v4716
  %4781 = vst.msk [vmem:[#allocation2 + $0xf0] sm:$0xff] %vm1362, %v4718
  %4782 = vst.msk [vmem:[#allocation2 + $0xf8] sm:$0xff] %vm1362, %v4720
  %vm4783 = vcmask 1045504
  %v4784 = vrot.slane %v4204, 2
  %v4785 = vrot.slane %v3950, 2
  %v4786 = vsel %vm4783, %v4784, %v4785
  %v4787 = vrot.slane %v4236, 2
  %v4788 = vsel %vm4783, %v4785, %v4787
  %v4789 = vrot.slane %v4205, 2
  %v4790 = vrot.slane %v3953, 2
  %v4791 = vsel %vm4783, %v4789, %v4790
  %v4792 = vrot.slane %v4237, 2
  %v4793 = vsel %vm4783, %v4790, %v4792
  %v4794 = vrot.slane %v4206, 2
  %v4795 = vrot.slane %v3956, 2
  %v4796 = vsel %vm4783, %v4794, %v4795
  %v4797 = vrot.slane %v4238, 2
  %v4798 = vsel %vm4783, %v4795, %v4797
  %v4799 = vrot.slane %v4207, 2
  %v4800 = vrot.slane %v3959, 2
  %v4801 = vsel %vm4783, %v4799, %v4800
  %v4802 = vrot.slane %v4239, 2
  %v4803 = vsel %vm4783, %v4800, %v4802
  %v4804 = vrot.slane %v4208, 2
  %v4805 = vrot.slane %v3962, 2
  %v4806 = vsel %vm4783, %v4804, %v4805
  %v4807 = vrot.slane %v4240, 2
  %v4808 = vsel %vm4783, %v4805, %v4807
  %v4809 = vrot.slane %v4209, 2
  %v4810 = vrot.slane %v3965, 2
  %v4811 = vsel %vm4783, %v4809, %v4810
  %v4812 = vrot.slane %v4241, 2
  %v4813 = vsel %vm4783, %v4810, %v4812
  %v4814 = vrot.slane %v4210, 2
  %v4815 = vrot.slane %v3968, 2
  %v4816 = vsel %vm4783, %v4814, %v4815
  %v4817 = vrot.slane %v4242, 2
  %v4818 = vsel %vm4783, %v4815, %v4817
  %v4819 = vrot.slane %v4211, 2
  %v4820 = vrot.slane %v3971, 2
  %v4821 = vsel %vm4783, %v4819, %v4820
  %v4822 = vrot.slane %v4243, 2
  %v4823 = vsel %vm4783, %v4820, %v4822
  %v4824 = vrot.slane %v4212, 2
  %v4825 = vrot.slane %v3974, 2
  %v4826 = vsel %vm4783, %v4824, %v4825
  %v4827 = vrot.slane %v4244, 2
  %v4828 = vsel %vm4783, %v4825, %v4827
  %v4829 = vrot.slane %v4213, 2
  %v4830 = vrot.slane %v3977, 2
  %v4831 = vsel %vm4783, %v4829, %v4830
  %v4832 = vrot.slane %v4245, 2
  %v4833 = vsel %vm4783, %v4830, %v4832
  %v4834 = vrot.slane %v4214, 2
  %v4835 = vrot.slane %v3980, 2
  %v4836 = vsel %vm4783, %v4834, %v4835
  %v4837 = vrot.slane %v4246, 2
  %v4838 = vsel %vm4783, %v4835, %v4837
  %v4839 = vrot.slane %v4215, 2
  %v4840 = vrot.slane %v3983, 2
  %v4841 = vsel %vm4783, %v4839, %v4840
  %v4842 = vrot.slane %v4247, 2
  %v4843 = vsel %vm4783, %v4840, %v4842
  %v4844 = vrot.slane %v4216, 2
  %v4845 = vrot.slane %v3986, 2
  %v4846 = vsel %vm4783, %v4844, %v4845
  %v4847 = vrot.slane %v4248, 2
  %v4848 = vsel %vm4783, %v4845, %v4847
  %v4849 = vrot.slane %v4217, 2
  %v4850 = vrot.slane %v3989, 2
  %v4851 = vsel %vm4783, %v4849, %v4850
  %v4852 = vrot.slane %v4249, 2
  %v4853 = vsel %vm4783, %v4850, %v4852
  %v4854 = vrot.slane %v4218, 2
  %v4855 = vrot.slane %v3992, 2
  %v4856 = vsel %vm4783, %v4854, %v4855
  %v4857 = vrot.slane %v4250, 2
  %v4858 = vsel %vm4783, %v4855, %v4857
  %v4859 = vrot.slane %v4220, 2
  %v4860 = vrot.slane %v3998, 2
  %v4861 = vsel %vm4783, %v4859, %v4860
  %v4862 = vrot.slane %v4252, 2
  %v4863 = vsel %vm4783, %v4860, %v4862
  %v4864 = vrot.slane %v4221, 2
  %v4865 = vrot.slane %v4001, 2
  %v4866 = vsel %vm4783, %v4864, %v4865
  %v4867 = vrot.slane %v4253, 2
  %v4868 = vsel %vm4783, %v4865, %v4867
  %v4869 = vrot.slane %v4222, 2
  %v4870 = vrot.slane %v4004, 2
  %v4871 = vsel %vm4783, %v4869, %v4870
  %v4872 = vrot.slane %v4254, 2
  %v4873 = vsel %vm4783, %v4870, %v4872
  %v4874 = vrot.slane %v4223, 2
  %v4875 = vrot.slane %v4007, 2
  %v4876 = vsel %vm4783, %v4874, %v4875
  %v4877 = vrot.slane %v4255, 2
  %v4878 = vsel %vm4783, %v4875, %v4877
  %v4879 = vrot.slane %v4224, 2
  %v4880 = vrot.slane %v4010, 2
  %v4881 = vsel %vm4783, %v4879, %v4880
  %v4882 = vrot.slane %v4256, 2
  %v4883 = vsel %vm4783, %v4880, %v4882
  %v4884 = vrot.slane %v4225, 2
  %v4885 = vrot.slane %v4013, 2
  %v4886 = vsel %vm4783, %v4884, %v4885
  %v4887 = vrot.slane %v4257, 2
  %v4888 = vsel %vm4783, %v4885, %v4887
  %v4889 = vrot.slane %v4226, 2
  %v4890 = vrot.slane %v4016, 2
  %v4891 = vsel %vm4783, %v4889, %v4890
  %v4892 = vrot.slane %v4258, 2
  %v4893 = vsel %vm4783, %v4890, %v4892
  %v4894 = vrot.slane %v4227, 2
  %v4895 = vrot.slane %v4019, 2
  %v4896 = vsel %vm4783, %v4894, %v4895
  %v4897 = vrot.slane %v4259, 2
  %v4898 = vsel %vm4783, %v4895, %v4897
  %v4899 = vrot.slane %v4228, 2
  %v4900 = vrot.slane %v4022, 2
  %v4901 = vsel %vm4783, %v4899, %v4900
  %v4902 = vrot.slane %v4260, 2
  %v4903 = vsel %vm4783, %v4900, %v4902
  %v4904 = vrot.slane %v4229, 2
  %v4905 = vrot.slane %v4025, 2
  %v4906 = vsel %vm4783, %v4904, %v4905
  %v4907 = vrot.slane %v4261, 2
  %v4908 = vsel %vm4783, %v4905, %v4907
  %v4909 = vrot.slane %v4230, 2
  %v4910 = vrot.slane %v4028, 2
  %v4911 = vsel %vm4783, %v4909, %v4910
  %v4912 = vrot.slane %v4262, 2
  %v4913 = vsel %vm4783, %v4910, %v4912
  %v4914 = vrot.slane %v4231, 2
  %v4915 = vrot.slane %v4031, 2
  %v4916 = vsel %vm4783, %v4914, %v4915
  %v4917 = vrot.slane %v4263, 2
  %v4918 = vsel %vm4783, %v4915, %v4917
  %v4919 = vrot.slane %v4232, 2
  %v4920 = vrot.slane %v4034, 2
  %v4921 = vsel %vm4783, %v4919, %v4920
  %v4922 = vrot.slane %v4264, 2
  %v4923 = vsel %vm4783, %v4920, %v4922
  %v4924 = vrot.slane %v4233, 2
  %v4925 = vrot.slane %v4037, 2
  %v4926 = vsel %vm4783, %v4924, %v4925
  %v4927 = vrot.slane %v4265, 2
  %v4928 = vsel %vm4783, %v4925, %v4927
  %v4929 = vrot.slane %v4234, 2
  %v4930 = vrot.slane %v4040, 2
  %v4931 = vsel %vm4783, %v4929, %v4930
  %v4932 = vrot.slane %v4266, 2
  %v4933 = vsel %vm4783, %v4930, %v4932
  %v4994 = vpack.c.bf16 %v4788, %v4786
  %v4995 = vpack.c.bf16 %v4793, %v4791
  %v4996 = vpack.c.bf16 %v4798, %v4796
  %v4997 = vpack.c.bf16 %v4803, %v4801
  %v4998 = vpack.c.bf16 %v4808, %v4806
  %v4999 = vpack.c.bf16 %v4813, %v4811
  %v5000 = vpack.c.bf16 %v4818, %v4816
  %v5001 = vpack.c.bf16 %v4823, %v4821
  %v5002 = vpack.c.bf16 %v4828, %v4826
  %v5003 = vpack.c.bf16 %v4833, %v4831
  %v5004 = vpack.c.bf16 %v4838, %v4836
  %v5005 = vpack.c.bf16 %v4843, %v4841
  %v5006 = vpack.c.bf16 %v4848, %v4846
  %v5007 = vpack.c.bf16 %v4853, %v4851
  %v5008 = vpack.c.bf16 %v4858, %v4856
  %v5009 = vpack.c.bf16 %v4863, %v4861
  %v5010 = vpack.c.bf16 %v4868, %v4866
  %v5011 = vpack.c.bf16 %v4873, %v4871
  %v5012 = vpack.c.bf16 %v4878, %v4876
  %v5013 = vpack.c.bf16 %v4883, %v4881
  %v5014 = vpack.c.bf16 %v4888, %v4886
  %v5015 = vpack.c.bf16 %v4893, %v4891
  %v5016 = vpack.c.bf16 %v4898, %v4896
  %v5017 = vpack.c.bf16 %v4903, %v4901
  %v5018 = vpack.c.bf16 %v4908, %v4906
  %v5019 = vpack.c.bf16 %v4913, %v4911
  %v5020 = vpack.c.bf16 %v4918, %v4916
  %v5021 = vpack.c.bf16 %v4923, %v4921
  %v5022 = vpack.c.bf16 %v4928, %v4926
  %v5023 = vpack.c.bf16 %v4933, %v4931
  %5054 = vrot.lane.b32.xlu0 %v4994, 8
  %v5055 = vpop.permute.xlu0 %5054
  %5056 = vrot.lane.b32.xlu0 %v4995, 8
  %v5057 = vpop.permute.xlu0 %5056
  %5058 = vrot.lane.b32.xlu0 %v4996, 8
  %v5059 = vpop.permute.xlu0 %5058
  %5060 = vrot.lane.b32.xlu0 %v4997, 8
  %v5061 = vpop.permute.xlu0 %5060
  %5062 = vrot.lane.b32.xlu0 %v4998, 8
  %v5063 = vpop.permute.xlu0 %5062
  %5064 = vrot.lane.b32.xlu0 %v4999, 8
  %v5065 = vpop.permute.xlu0 %5064
  %5066 = vrot.lane.b32.xlu0 %v5000, 8
  %v5067 = vpop.permute.xlu0 %5066
  %5068 = vrot.lane.b32.xlu0 %v5001, 8
  %v5069 = vpop.permute.xlu0 %5068
  %5070 = vrot.lane.b32.xlu0 %v5002, 8
  %v5071 = vpop.permute.xlu0 %5070
  %5072 = vrot.lane.b32.xlu0 %v5003, 8
  %v5073 = vpop.permute.xlu0 %5072
  %5074 = vrot.lane.b32.xlu0 %v5004, 8
  %v5075 = vpop.permute.xlu0 %5074
  %5076 = vrot.lane.b32.xlu0 %v5005, 8
  %v5077 = vpop.permute.xlu0 %5076
  %5078 = vrot.lane.b32.xlu0 %v5006, 8
  %v5079 = vpop.permute.xlu0 %5078
  %5080 = vrot.lane.b32.xlu0 %v5007, 8
  %v5081 = vpop.permute.xlu0 %5080
  %5082 = vrot.lane.b32.xlu0 %v5008, 8
  %v5083 = vpop.permute.xlu0 %5082
  %5084 = vrot.lane.b32.xlu0 %v5009, 8
  %v5085 = vpop.permute.xlu0 %5084
  %5086 = vrot.lane.b32.xlu0 %v5010, 8
  %v5087 = vpop.permute.xlu0 %5086
  %5088 = vrot.lane.b32.xlu0 %v5011, 8
  %v5089 = vpop.permute.xlu0 %5088
  %5090 = vrot.lane.b32.xlu0 %v5012, 8
  %v5091 = vpop.permute.xlu0 %5090
  %5092 = vrot.lane.b32.xlu0 %v5013, 8
  %v5093 = vpop.permute.xlu0 %5092
  %5094 = vrot.lane.b32.xlu0 %v5014, 8
  %v5095 = vpop.permute.xlu0 %5094
  %5096 = vrot.lane.b32.xlu0 %v5015, 8
  %v5097 = vpop.permute.xlu0 %5096
  %5098 = vrot.lane.b32.xlu0 %v5016, 8
  %v5099 = vpop.permute.xlu0 %5098
  %5100 = vrot.lane.b32.xlu0 %v5017, 8
  %v5101 = vpop.permute.xlu0 %5100
  %5102 = vrot.lane.b32.xlu0 %v5018, 8
  %v5103 = vpop.permute.xlu0 %5102
  %5104 = vrot.lane.b32.xlu0 %v5019, 8
  %v5105 = vpop.permute.xlu0 %5104
  %5106 = vrot.lane.b32.xlu0 %v5020, 8
  %v5107 = vpop.permute.xlu0 %5106
  %5108 = vrot.lane.b32.xlu0 %v5021, 8
  %v5109 = vpop.permute.xlu0 %5108
  %5110 = vrot.lane.b32.xlu0 %v5022, 8
  %v5111 = vpop.permute.xlu0 %5110
  %5112 = vrot.lane.b32.xlu0 %v5023, 8
  %v5113 = vpop.permute.xlu0 %5112
  %5144 = vst.msk [vmem:[#allocation2] sm:$0xff] %vm1846, %v5055
  %5145 = vst.msk [vmem:[#allocation2 + $0x8] sm:$0xff] %vm1846, %v5057
  %5146 = vst.msk [vmem:[#allocation2 + $0x10] sm:$0xff] %vm1846, %v5055
  %5147 = vst.msk [vmem:[#allocation2 + $0x18] sm:$0xff] %vm1846, %v5059
  %5148 = vst.msk [vmem:[#allocation2 + $0x20] sm:$0xff] %vm1846, %v5061
  %5149 = vst.msk [vmem:[#allocation2 + $0x28] sm:$0xff] %vm1846, %v5063
  %5150 = vst.msk [vmem:[#allocation2 + $0x30] sm:$0xff] %vm1846, %v5065
  %5151 = vst.msk [vmem:[#allocation2 + $0x38] sm:$0xff] %vm1846, %v5067
  %5152 = vst.msk [vmem:[#allocation2 + $0x40] sm:$0xff] %vm1846, %v5069
  %5153 = vst.msk [vmem:[#allocation2 + $0x48] sm:$0xff] %vm1846, %v5071
  %5154 = vst.msk [vmem:[#allocation2 + $0x50] sm:$0xff] %vm1846, %v5073
  %5155 = vst.msk [vmem:[#allocation2 + $0x58] sm:$0xff] %vm1846, %v5075
  %5156 = vst.msk [vmem:[#allocation2 + $0x60] sm:$0xff] %vm1846, %v5077
  %5157 = vst.msk [vmem:[#allocation2 + $0x68] sm:$0xff] %vm1846, %v5079
  %5158 = vst.msk [vmem:[#allocation2 + $0x70] sm:$0xff] %vm1846, %v5081
  %5159 = vst.msk [vmem:[#allocation2 + $0x78] sm:$0xff] %vm1846, %v5083
  %5160 = vst.msk [vmem:[#allocation2 + $0x80] sm:$0xff] %vm1846, %v5085
  %5161 = vst.msk [vmem:[#allocation2 + $0x88] sm:$0xff] %vm1846, %v5087
  %5162 = vst.msk [vmem:[#allocation2 + $0x90] sm:$0xff] %vm1846, %v5085
  %5163 = vst.msk [vmem:[#allocation2 + $0x98] sm:$0xff] %vm1846, %v5089
  %5164 = vst.msk [vmem:[#allocation2 + $0xa0] sm:$0xff] %vm1846, %v5091
  %5165 = vst.msk [vmem:[#allocation2 + $0xa8] sm:$0xff] %vm1846, %v5093
  %5166 = vst.msk [vmem:[#allocation2 + $0xb0] sm:$0xff] %vm1846, %v5095
  %5167 = vst.msk [vmem:[#allocation2 + $0xb8] sm:$0xff] %vm1846, %v5097
  %5168 = vst.msk [vmem:[#allocation2 + $0xc0] sm:$0xff] %vm1846, %v5099
  %5169 = vst.msk [vmem:[#allocation2 + $0xc8] sm:$0xff] %vm1846, %v5101
  %5170 = vst.msk [vmem:[#allocation2 + $0xd0] sm:$0xff] %vm1846, %v5103
  %5171 = vst.msk [vmem:[#allocation2 + $0xd8] sm:$0xff] %vm1846, %v5105
  %5172 = vst.msk [vmem:[#allocation2 + $0xe0] sm:$0xff] %vm1846, %v5107
  %5173 = vst.msk [vmem:[#allocation2 + $0xe8] sm:$0xff] %vm1846, %v5109
  %5174 = vst.msk [vmem:[#allocation2 + $0xf0] sm:$0xff] %vm1846, %v5111
  %5175 = vst.msk [vmem:[#allocation2 + $0xf8] sm:$0xff] %vm1846, %v5113
  %v5176 = vpack.c.bf16 %v3995, %v4219
  %v5177 = vpack.c.bf16 %v4043, %v4235
  %5210 = vrot.lane.b32.xlu0 %v4269, 12
  %v5211 = vpop.permute.xlu0 %5210
  %5212 = vrot.lane.b32.xlu0 %v4268, 12
  %v5213 = vpop.permute.xlu0 %5212
  %5214 = vrot.lane.b32.xlu0 %v4270, 12
  %v5215 = vpop.permute.xlu0 %5214
  %5216 = vrot.lane.b32.xlu0 %v4271, 12
  %v5217 = vpop.permute.xlu0 %5216
  %5218 = vrot.lane.b32.xlu0 %v4272, 12
  %v5219 = vpop.permute.xlu0 %5218
  %5220 = vrot.lane.b32.xlu0 %v4273, 12
  %v5221 = vpop.permute.xlu0 %5220
  %5222 = vrot.lane.b32.xlu0 %v4274, 12
  %v5223 = vpop.permute.xlu0 %5222
  %5224 = vrot.lane.b32.xlu0 %v4275, 12
  %v5225 = vpop.permute.xlu0 %5224
  %5226 = vrot.lane.b32.xlu0 %v4276, 12
  %v5227 = vpop.permute.xlu0 %5226
  %5228 = vrot.lane.b32.xlu0 %v4277, 12
  %v5229 = vpop.permute.xlu0 %5228
  %5230 = vrot.lane.b32.xlu0 %v4278, 12
  %v5231 = vpop.permute.xlu0 %5230
  %5232 = vrot.lane.b32.xlu0 %v4279, 12
  %v5233 = vpop.permute.xlu0 %5232
  %5234 = vrot.lane.b32.xlu0 %v4280, 12
  %v5235 = vpop.permute.xlu0 %5234
  %5236 = vrot.lane.b32.xlu0 %v4281, 12
  %v5237 = vpop.permute.xlu0 %5236
  %5238 = vrot.lane.b32.xlu0 %v4282, 12
  %v5239 = vpop.permute.xlu0 %5238
  %5240 = vrot.lane.b32.xlu0 %v5176, 12
  %v5241 = vpop.permute.xlu0 %5240
  %5242 = vrot.lane.b32.xlu0 %v4284, 12
  %v5243 = vpop.permute.xlu0 %5242
  %5244 = vrot.lane.b32.xlu0 %v4283, 12
  %v5245 = vpop.permute.xlu0 %5244
  %5246 = vrot.lane.b32.xlu0 %v4285, 12
  %v5247 = vpop.permute.xlu0 %5246
  %5248 = vrot.lane.b32.xlu0 %v4286, 12
  %v5249 = vpop.permute.xlu0 %5248
  %5250 = vrot.lane.b32.xlu0 %v4287, 12
  %v5251 = vpop.permute.xlu0 %5250
  %5252 = vrot.lane.b32.xlu0 %v4288, 12
  %v5253 = vpop.permute.xlu0 %5252
  %5254 = vrot.lane.b32.xlu0 %v4289, 12
  %v5255 = vpop.permute.xlu0 %5254
  %5256 = vrot.lane.b32.xlu0 %v4290, 12
  %v5257 = vpop.permute.xlu0 %5256
  %5258 = vrot.lane.b32.xlu0 %v4291, 12
  %v5259 = vpop.permute.xlu0 %5258
  %5260 = vrot.lane.b32.xlu0 %v4292, 12
  %v5261 = vpop.permute.xlu0 %5260
  %5262 = vrot.lane.b32.xlu0 %v4293, 12
  %v5263 = vpop.permute.xlu0 %5262
  %5264 = vrot.lane.b32.xlu0 %v4294, 12
  %v5265 = vpop.permute.xlu0 %5264
  %5266 = vrot.lane.b32.xlu0 %v4295, 12
  %v5267 = vpop.permute.xlu0 %5266
  %5268 = vrot.lane.b32.xlu0 %v4296, 12
  %v5269 = vpop.permute.xlu0 %5268
  %5270 = vrot.lane.b32.xlu0 %v4297, 12
  %v5271 = vpop.permute.xlu0 %5270
  %5272 = vrot.lane.b32.xlu0 %v5177, 12
  %v5273 = vpop.permute.xlu0 %5272
  %5306 = vst.msk [vmem:[#allocation2] sm:$0xff] %vm1985, %v5211
  %5307 = vst.msk [vmem:[#allocation2 + $0x8] sm:$0xff] %vm1985, %v5213
  %5308 = vst.msk [vmem:[#allocation2 + $0x10] sm:$0xff] %vm1985, %v5215
  %5309 = vst.msk [vmem:[#allocation2 + $0x18] sm:$0xff] %vm1985, %v5217
  %5310 = vst.msk [vmem:[#allocation2 + $0x20] sm:$0xff] %vm1985, %v5219
  %5311 = vst.msk [vmem:[#allocation2 + $0x28] sm:$0xff] %vm1985, %v5221
  %5312 = vst.msk [vmem:[#allocation2 + $0x30] sm:$0xff] %vm1985, %v5223
  %5313 = vst.msk [vmem:[#allocation2 + $0x38] sm:$0xff] %vm1985, %v5225
  %5314 = vst.msk [vmem:[#allocation2 + $0x40] sm:$0xff] %vm1985, %v5227
  %5315 = vst.msk [vmem:[#allocation2 + $0x48] sm:$0xff] %vm1985, %v5229
  %5316 = vst.msk [vmem:[#allocation2 + $0x50] sm:$0xff] %vm1985, %v5231
  %5317 = vst.msk [vmem:[#allocation2 + $0x58] sm:$0xff] %vm1985, %v5233
  %5318 = vst.msk [vmem:[#allocation2 + $0x60] sm:$0xff] %vm1985, %v5235
  %5319 = vst.msk [vmem:[#allocation2 + $0x68] sm:$0xff] %vm1985, %v5237
  %5320 = vst.msk [vmem:[#allocation2 + $0x70] sm:$0xff] %vm1985, %v5239
  %5321 = vst.msk [vmem:[#allocation2 + $0x78] sm:$0xff] %vm1985, %v5241
  %5322 = vst.msk [vmem:[#allocation2 + $0x80] sm:$0xff] %vm1985, %v5243
  %5323 = vst.msk [vmem:[#allocation2 + $0x88] sm:$0xff] %vm1985, %v5245
  %5324 = vst.msk [vmem:[#allocation2 + $0x90] sm:$0xff] %vm1985, %v5247
  %5325 = vst.msk [vmem:[#allocation2 + $0x98] sm:$0xff] %vm1985, %v5249
  %5326 = vst.msk [vmem:[#allocation2 + $0xa0] sm:$0xff] %vm1985, %v5251
  %5327 = vst.msk [vmem:[#allocation2 + $0xa8] sm:$0xff] %vm1985, %v5253
  %5328 = vst.msk [vmem:[#allocation2 + $0xb0] sm:$0xff] %vm1985, %v5255
  %5329 = vst.msk [vmem:[#allocation2 + $0xb8] sm:$0xff] %vm1985, %v5257
  %5330 = vst.msk [vmem:[#allocation2 + $0xc0] sm:$0xff] %vm1985, %v5259
  %5331 = vst.msk [vmem:[#allocation2 + $0xc8] sm:$0xff] %vm1985, %v5261
  %5332 = vst.msk [vmem:[#allocation2 + $0xd0] sm:$0xff] %vm1985, %v5263
  %5333 = vst.msk [vmem:[#allocation2 + $0xd8] sm:$0xff] %vm1985, %v5265
  %5334 = vst.msk [vmem:[#allocation2 + $0xe0] sm:$0xff] %vm1985, %v5267
  %5335 = vst.msk [vmem:[#allocation2 + $0xe8] sm:$0xff] %vm1985, %v5269
  %5336 = vst.msk [vmem:[#allocation2 + $0xf0] sm:$0xff] %vm1985, %v5271
  %5337 = vst.msk [vmem:[#allocation2 + $0xf8] sm:$0xff] %vm1985, %v5273
  %v5342 = vrot.slane %v4219, 1
  %v5343 = vrot.slane %v3995, 1
  %v5344 = vsel %vm4390, %v5342, %v5343
  %v5345 = vrot.slane %v4251, 1
  %v5346 = vsel %vm4390, %v5343, %v5345
  %v5347 = vrot.slane %v4235, 1
  %v5348 = vrot.slane %v4043, 1
  %v5349 = vsel %vm4390, %v5347, %v5348
  %v5350 = vrot.slane %v4267, 1
  %v5351 = vsel %vm4390, %v5348, %v5350
  %v5356 = vpack.c.bf16 %v5346, %v5344
  %v5357 = vpack.c.bf16 %v5351, %v5349
  %5360 = vrot.lane.b32.xlu0 %v4602, 16
  %v5361 = vpop.permute.xlu0 %5360
  %5362 = vrot.lane.b32.xlu0 %v4601, 16
  %v5363 = vpop.permute.xlu0 %5362
  %5364 = vrot.lane.b32.xlu0 %v4603, 16
  %v5365 = vpop.permute.xlu0 %5364
  %5366 = vrot.lane.b32.xlu0 %v4604, 16
  %v5367 = vpop.permute.xlu0 %5366
  %5368 = vrot.lane.b32.xlu0 %v4605, 16
  %v5369 = vpop.permute.xlu0 %5368
  %5370 = vrot.lane.b32.xlu0 %v4606, 16
  %v5371 = vpop.permute.xlu0 %5370
  %5372 = vrot.lane.b32.xlu0 %v4607, 16
  %v5373 = vpop.permute.xlu0 %5372
  %5374 = vrot.lane.b32.xlu0 %v4608, 16
  %v5375 = vpop.permute.xlu0 %5374
  %5376 = vrot.lane.b32.xlu0 %v4609, 16
  %v5377 = vpop.permute.xlu0 %5376
  %5378 = vrot.lane.b32.xlu0 %v4610, 16
  %v5379 = vpop.permute.xlu0 %5378
  %5380 = vrot.lane.b32.xlu0 %v4611, 16
  %v5381 = vpop.permute.xlu0 %5380
  %5382 = vrot.lane.b32.xlu0 %v4612, 16
  %v5383 = vpop.permute.xlu0 %5382
  %5384 = vrot.lane.b32.xlu0 %v4613, 16
  %v5385 = vpop.permute.xlu0 %5384
  %5386 = vrot.lane.b32.xlu0 %v4614, 16
  %v5387 = vpop.permute.xlu0 %5386
  %5388 = vrot.lane.b32.xlu0 %v4615, 16
  %v5389 = vpop.permute.xlu0 %5388
  %5390 = vrot.lane.b32.xlu0 %v5356, 16
  %v5391 = vpop.permute.xlu0 %5390
  %5392 = vrot.lane.b32.xlu0 %v4617, 16
  %v5393 = vpop.permute.xlu0 %5392
  %5394 = vrot.lane.b32.xlu0 %v4616, 16
  %v5395 = vpop.permute.xlu0 %5394
  %5396 = vrot.lane.b32.xlu0 %v4618, 16
  %v5397 = vpop.permute.xlu0 %5396
  %5398 = vrot.lane.b32.xlu0 %v4619, 16
  %v5399 = vpop.permute.xlu0 %5398
  %5400 = vrot.lane.b32.xlu0 %v4620, 16
  %v5401 = vpop.permute.xlu0 %5400
  %5402 = vrot.lane.b32.xlu0 %v4621, 16
  %v5403 = vpop.permute.xlu0 %5402
  %5404 = vrot.lane.b32.xlu0 %v4622, 16
  %v5405 = vpop.permute.xlu0 %5404
  %5406 = vrot.lane.b32.xlu0 %v4623, 16
  %v5407 = vpop.permute.xlu0 %5406
  %5408 = vrot.lane.b32.xlu0 %v4624, 16
  %v5409 = vpop.permute.xlu0 %5408
  %5410 = vrot.lane.b32.xlu0 %v4625, 16
  %v5411 = vpop.permute.xlu0 %5410
  %5412 = vrot.lane.b32.xlu0 %v4626, 16
  %v5413 = vpop.permute.xlu0 %5412
  %5414 = vrot.lane.b32.xlu0 %v4627, 16
  %v5415 = vpop.permute.xlu0 %5414
  %5416 = vrot.lane.b32.xlu0 %v4628, 16
  %v5417 = vpop.permute.xlu0 %5416
  %5418 = vrot.lane.b32.xlu0 %v4629, 16
  %v5419 = vpop.permute.xlu0 %5418
  %5420 = vrot.lane.b32.xlu0 %v4630, 16
  %v5421 = vpop.permute.xlu0 %5420
  %5422 = vrot.lane.b32.xlu0 %v5357, 16
  %v5423 = vpop.permute.xlu0 %5422
  %5456 = vst.msk [vmem:[#allocation2] sm:$0xff] %vm2168, %v5361
  %5457 = vst.msk [vmem:[#allocation2 + $0x8] sm:$0xff] %vm2168, %v5363
  %5458 = vst.msk [vmem:[#allocation2 + $0x10] sm:$0xff] %vm2168, %v5365
  %5459 = vst.msk [vmem:[#allocation2 + $0x18] sm:$0xff] %vm2168, %v5367
  %5460 = vst.msk [vmem:[#allocation2 + $0x20] sm:$0xff] %vm2168, %v5369
  %5461 = vst.msk [vmem:[#allocation2 + $0x28] sm:$0xff] %vm2168, %v5371
  %5462 = vst.msk [vmem:[#allocation2 + $0x30] sm:$0xff] %vm2168, %v5373
  %5463 = vst.msk [vmem:[#allocation2 + $0x38] sm:$0xff] %vm2168, %v5375
  %5464 = vst.msk [vmem:[#allocation2 + $0x40] sm:$0xff] %vm2168, %v5377
  %5465 = vst.msk [vmem:[#allocation2 + $0x48] sm:$0xff] %vm2168, %v5379
  %5466 = vst.msk [vmem:[#allocation2 + $0x50] sm:$0xff] %vm2168, %v5381
  %5467 = vst.msk [vmem:[#allocation2 + $0x58] sm:$0xff] %vm2168, %v5383
  %5468 = vst.msk [vmem:[#allocation2 + $0x60] sm:$0xff] %vm2168, %v5385
  %5469 = vst.msk [vmem:[#allocation2 + $0x68] sm:$0xff] %vm2168, %v5387
  %5470 = vst.msk [vmem:[#allocation2 + $0x70] sm:$0xff] %vm2168, %v5389
  %5471 = vst.msk [vmem:[#allocation2 + $0x78] sm:$0xff] %vm2168, %v5391
  %5472 = vst.msk [vmem:[#allocation2 + $0x80] sm:$0xff] %vm2168, %v5393
  %5473 = vst.msk [vmem:[#allocation2 + $0x88] sm:$0xff] %vm2168, %v5395
  %5474 = vst.msk [vmem:[#allocation2 + $0x90] sm:$0xff] %vm2168, %v5397
  %5475 = vst.msk [vmem:[#allocation2 + $0x98] sm:$0xff] %vm2168, %v5399
  %5476 = vst.msk [vmem:[#allocation2 + $0xa0] sm:$0xff] %vm2168, %v5401
  %5477 = vst.msk [vmem:[#allocation2 + $0xa8] sm:$0xff] %vm2168, %v5403
  %5478 = vst.msk [vmem:[#allocation2 + $0xb0] sm:$0xff] %vm2168, %v5405
  %5479 = vst.msk [vmem:[#allocation2 + $0xb8] sm:$0xff] %vm2168, %v5407
  %5480 = vst.msk [vmem:[#allocation2 + $0xc0] sm:$0xff] %vm2168, %v5409
  %5481 = vst.msk [vmem:[#allocation2 + $0xc8] sm:$0xff] %vm2168, %v5411
  %5482 = vst.msk [vmem:[#allocation2 + $0xd0] sm:$0xff] %vm2168, %v5413
  %5483 = vst.msk [vmem:[#allocation2 + $0xd8] sm:$0xff] %vm2168, %v5415
  %5484 = vst.msk [vmem:[#allocation2 + $0xe0] sm:$0xff] %vm2168, %v5417
  %5485 = vst.msk [vmem:[#allocation2 + $0xe8] sm:$0xff] %vm2168, %v5419
  %5486 = vst.msk [vmem:[#allocation2 + $0xf0] sm:$0xff] %vm2168, %v5421
  %5487 = vst.msk [vmem:[#allocation2 + $0xf8] sm:$0xff] %vm2168, %v5423
  %v5488 = vrot.slane %v4219, 2
  %v5489 = vrot.slane %v3995, 2
  %v5490 = vsel %vm4783, %v5488, %v5489
  %v5491 = vrot.slane %v4251, 2
  %v5492 = vsel %vm4783, %v5489, %v5491
  %v5493 = vrot.slane %v4235, 2
  %v5494 = vrot.slane %v4043, 2
  %v5495 = vsel %vm4783, %v5493, %v5494
  %v5496 = vrot.slane %v4267, 2
  %v5497 = vsel %vm4783, %v5494, %v5496
  %v5502 = vpack.c.bf16 %v5492, %v5490
  %v5503 = vpack.c.bf16 %v5497, %v5495
  %5506 = vrot.lane.b32.xlu0 %v4995, 20
  %v5507 = vpop.permute.xlu0 %5506
  %5508 = vrot.lane.b32.xlu0 %v4994, 20
  %v5509 = vpop.permute.xlu0 %5508
  %5510 = vrot.lane.b32.xlu0 %v4996, 20
  %v5511 = vpop.permute.xlu0 %5510
  %5512 = vrot.lane.b32.xlu0 %v4997, 20
  %v5513 = vpop.permute.xlu0 %5512
  %5514 = vrot.lane.b32.xlu0 %v4998, 20
  %v5515 = vpop.permute.xlu0 %5514
  %5516 = vrot.lane.b32.xlu0 %v4999, 20
  %v5517 = vpop.permute.xlu0 %5516
  %5518 = vrot.lane.b32.xlu0 %v5000, 20
  %v5519 = vpop.permute.xlu0 %5518
  %5520 = vrot.lane.b32.xlu0 %v5001, 20
  %v5521 = vpop.permute.xlu0 %5520
  %5522 = vrot.lane.b32.xlu0 %v5002, 20
  %v5523 = vpop.permute.xlu0 %5522
  %5524 = vrot.lane.b32.xlu0 %v5003, 20
  %v5525 = vpop.permute.xlu0 %5524
  %5526 = vrot.lane.b32.xlu0 %v5004, 20
  %v5527 = vpop.permute.xlu0 %5526
  %5528 = vrot.lane.b32.xlu0 %v5005, 20
  %v5529 = vpop.permute.xlu0 %5528
  %5530 = vrot.lane.b32.xlu0 %v5006, 20
  %v5531 = vpop.permute.xlu0 %5530
  %5532 = vrot.lane.b32.xlu0 %v5007, 20
  %v5533 = vpop.permute.xlu0 %5532
  %5534 = vrot.lane.b32.xlu0 %v5008, 20
  %v5535 = vpop.permute.xlu0 %5534
  %5536 = vrot.lane.b32.xlu0 %v5502, 20
  %v5537 = vpop.permute.xlu0 %5536
  %5538 = vrot.lane.b32.xlu0 %v5010, 20
  %v5539 = vpop.permute.xlu0 %5538
  %5540 = vrot.lane.b32.xlu0 %v5009, 20
  %v5541 = vpop.permute.xlu0 %5540
  %5542 = vrot.lane.b32.xlu0 %v5011, 20
  %v5543 = vpop.permute.xlu0 %5542
  %5544 = vrot.lane.b32.xlu0 %v5012, 20
  %v5545 = vpop.permute.xlu0 %5544
  %5546 = vrot.lane.b32.xlu0 %v5013, 20
  %v5547 = vpop.permute.xlu0 %5546
  %5548 = vrot.lane.b32.xlu0 %v5014, 20
  %v5549 = vpop.permute.xlu0 %5548
  %5550 = vrot.lane.b32.xlu0 %v5015, 20
  %v5551 = vpop.permute.xlu0 %5550
  %5552 = vrot.lane.b32.xlu0 %v5016, 20
  %v5553 = vpop.permute.xlu0 %5552
  %5554 = vrot.lane.b32.xlu0 %v5017, 20
  %v5555 = vpop.permute.xlu0 %5554
  %5556 = vrot.lane.b32.xlu0 %v5018, 20
  %v5557 = vpop.permute.xlu0 %5556
  %5558 = vrot.lane.b32.xlu0 %v5019, 20
  %v5559 = vpop.permute.xlu0 %5558
  %5560 = vrot.lane.b32.xlu0 %v5020, 20
  %v5561 = vpop.permute.xlu0 %5560
  %5562 = vrot.lane.b32.xlu0 %v5021, 20
  %v5563 = vpop.permute.xlu0 %5562
  %5564 = vrot.lane.b32.xlu0 %v5022, 20
  %v5565 = vpop.permute.xlu0 %5564
  %5566 = vrot.lane.b32.xlu0 %v5023, 20
  %v5567 = vpop.permute.xlu0 %5566
  %5568 = vrot.lane.b32.xlu0 %v5503, 20
  %v5569 = vpop.permute.xlu0 %5568
  %5602 = vst.msk [vmem:[#allocation2] sm:$0xff] %vm2319, %v5507
  %5603 = vst.msk [vmem:[#allocation2 + $0x8] sm:$0xff] %vm2319, %v5509
  %5604 = vst.msk [vmem:[#allocation2 + $0x10] sm:$0xff] %vm2319, %v5511
  %5605 = vst.msk [vmem:[#allocation2 + $0x18] sm:$0xff] %vm2319, %v5513
  %5606 = vst.msk [vmem:[#allocation2 + $0x20] sm:$0xff] %vm2319, %v5515
  %5607 = vst.msk [vmem:[#allocation2 + $0x28] sm:$0xff] %vm2319, %v5517
  %5608 = vst.msk [vmem:[#allocation2 + $0x30] sm:$0xff] %vm2319, %v5519
  %5609 = vst.msk [vmem:[#allocation2 + $0x38] sm:$0xff] %vm2319, %v5521
  %5610 = vst.msk [vmem:[#allocation2 + $0x40] sm:$0xff] %vm2319, %v5523
  %5611 = vst.msk [vmem:[#allocation2 + $0x48] sm:$0xff] %vm2319, %v5525
  %5612 = vst.msk [vmem:[#allocation2 + $0x50] sm:$0xff] %vm2319, %v5527
  %5613 = vst.msk [vmem:[#allocation2 + $0x58] sm:$0xff] %vm2319, %v5529
  %5614 = vst.msk [vmem:[#allocation2 + $0x60] sm:$0xff] %vm2319, %v5531
  %5615 = vst.msk [vmem:[#allocation2 + $0x68] sm:$0xff] %vm2319, %v5533
  %5616 = vst.msk [vmem:[#allocation2 + $0x70] sm:$0xff] %vm2319, %v5535
  %5617 = vst.msk [vmem:[#allocation2 + $0x78] sm:$0xff] %vm2319, %v5537
  %5618 = vst.msk [vmem:[#allocation2 + $0x80] sm:$0xff] %vm2319, %v5539
  %5619 = vst.msk [vmem:[#allocation2 + $0x88] sm:$0xff] %vm2319, %v5541
  %5620 = vst.msk [vmem:[#allocation2 + $0x90] sm:$0xff] %vm2319, %v5543
  %5621 = vst.msk [vmem:[#allocation2 + $0x98] sm:$0xff] %vm2319, %v5545
  %5622 = vst.msk [vmem:[#allocation2 + $0xa0] sm:$0xff] %vm2319, %v5547
  %5623 = vst.msk [vmem:[#allocation2 + $0xa8] sm:$0xff] %vm2319, %v5549
  %5624 = vst.msk [vmem:[#allocation2 + $0xb0] sm:$0xff] %vm2319, %v5551
  %5625 = vst.msk [vmem:[#allocation2 + $0xb8] sm:$0xff] %vm2319, %v5553
  %5626 = vst.msk [vmem:[#allocation2 + $0xc0] sm:$0xff] %vm2319, %v5555
  %5627 = vst.msk [vmem:[#allocation2 + $0xc8] sm:$0xff] %vm2319, %v5557
  %5628 = vst.msk [vmem:[#allocation2 + $0xd0] sm:$0xff] %vm2319, %v5559
  %5629 = vst.msk [vmem:[#allocation2 + $0xd8] sm:$0xff] %vm2319, %v5561
  %5630 = vst.msk [vmem:[#allocation2 + $0xe0] sm:$0xff] %vm2319, %v5563
  %5631 = vst.msk [vmem:[#allocation2 + $0xe8] sm:$0xff] %vm2319, %v5565
  %5632 = vst.msk [vmem:[#allocation2 + $0xf0] sm:$0xff] %vm2319, %v5567
  %5633 = vst.msk [vmem:[#allocation2 + $0xf8] sm:$0xff] %vm2319, %v5569
  %5634 = vrot.lane.b32.xlu0 %v4268, 24
  %v5635 = vpop.permute.xlu0 %5634
  %5636 = vrot.lane.b32.xlu0 %v4270, 24
  %v5637 = vpop.permute.xlu0 %5636
  %5638 = vrot.lane.b32.xlu0 %v4271, 24
  %v5639 = vpop.permute.xlu0 %5638
  %5640 = vrot.lane.b32.xlu0 %v4272, 24
  %v5641 = vpop.permute.xlu0 %5640
  %5642 = vrot.lane.b32.xlu0 %v4273, 24
  %v5643 = vpop.permute.xlu0 %5642
  %5644 = vrot.lane.b32.xlu0 %v4274, 24
  %v5645 = vpop.permute.xlu0 %5644
  %5646 = vrot.lane.b32.xlu0 %v4275, 24
  %v5647 = vpop.permute.xlu0 %5646
  %5648 = vrot.lane.b32.xlu0 %v4276, 24
  %v5649 = vpop.permute.xlu0 %5648
  %5650 = vrot.lane.b32.xlu0 %v4277, 24
  %v5651 = vpop.permute.xlu0 %5650
  %5652 = vrot.lane.b32.xlu0 %v4278, 24
  %v5653 = vpop.permute.xlu0 %5652
  %5654 = vrot.lane.b32.xlu0 %v4279, 24
  %v5655 = vpop.permute.xlu0 %5654
  %5656 = vrot.lane.b32.xlu0 %v4280, 24
  %v5657 = vpop.permute.xlu0 %5656
  %5658 = vrot.lane.b32.xlu0 %v4281, 24
  %v5659 = vpop.permute.xlu0 %5658
  %5660 = vrot.lane.b32.xlu0 %v4282, 24
  %v5661 = vpop.permute.xlu0 %5660
  %5662 = vrot.lane.b32.xlu0 %v5176, 24
  %v5663 = vpop.permute.xlu0 %5662
  %5664 = vrot.lane.b32.xlu0 %v4283, 24
  %v5665 = vpop.permute.xlu0 %5664
  %5666 = vrot.lane.b32.xlu0 %v4285, 24
  %v5667 = vpop.permute.xlu0 %5666
  %5668 = vrot.lane.b32.xlu0 %v4286, 24
  %v5669 = vpop.permute.xlu0 %5668
  %5670 = vrot.lane.b32.xlu0 %v4287, 24
  %v5671 = vpop.permute.xlu0 %5670
  %5672 = vrot.lane.b32.xlu0 %v4288, 24
  %v5673 = vpop.permute.xlu0 %5672
  %5674 = vrot.lane.b32.xlu0 %v4289, 24
  %v5675 = vpop.permute.xlu0 %5674
  %5676 = vrot.lane.b32.xlu0 %v4290, 24
  %v5677 = vpop.permute.xlu0 %5676
  %5678 = vrot.lane.b32.xlu0 %v4291, 24
  %v5679 = vpop.permute.xlu0 %5678
  %5680 = vrot.lane.b32.xlu0 %v4292, 24
  %v5681 = vpop.permute.xlu0 %5680
  %5682 = vrot.lane.b32.xlu0 %v4293, 24
  %v5683 = vpop.permute.xlu0 %5682
  %5684 = vrot.lane.b32.xlu0 %v4294, 24
  %v5685 = vpop.permute.xlu0 %5684
  %5686 = vrot.lane.b32.xlu0 %v4295, 24
  %v5687 = vpop.permute.xlu0 %5686
  %5688 = vrot.lane.b32.xlu0 %v4296, 24
  %v5689 = vpop.permute.xlu0 %5688
  %5690 = vrot.lane.b32.xlu0 %v4297, 24
  %v5691 = vpop.permute.xlu0 %5690
  %5692 = vrot.lane.b32.xlu0 %v5177, 24
  %v5693 = vpop.permute.xlu0 %5692
  %5724 = vst.msk [vmem:[#allocation2] sm:$0xff] %vm2458, %v5635
  %5725 = vst.msk [vmem:[#allocation2 + $0x8] sm:$0xff] %vm2458, %v5637
  %5726 = vst.msk [vmem:[#allocation2 + $0x10] sm:$0xff] %vm2458, %v5639
  %5727 = vst.msk [vmem:[#allocation2 + $0x18] sm:$0xff] %vm2458, %v5641
  %5728 = vst.msk [vmem:[#allocation2 + $0x20] sm:$0xff] %vm2458, %v5643
  %5729 = vst.msk [vmem:[#allocation2 + $0x28] sm:$0xff] %vm2458, %v5645
  %5730 = vst.msk [vmem:[#allocation2 + $0x30] sm:$0xff] %vm2458, %v5647
  %5731 = vst.msk [vmem:[#allocation2 + $0x38] sm:$0xff] %vm2458, %v5649
  %5732 = vst.msk [vmem:[#allocation2 + $0x40] sm:$0xff] %vm2458, %v5651
  %5733 = vst.msk [vmem:[#allocation2 + $0x48] sm:$0xff] %vm2458, %v5653
  %5734 = vst.msk [vmem:[#allocation2 + $0x50] sm:$0xff] %vm2458, %v5655
  %5735 = vst.msk [vmem:[#allocation2 + $0x58] sm:$0xff] %vm2458, %v5657
  %5736 = vst.msk [vmem:[#allocation2 + $0x60] sm:$0xff] %vm2458, %v5659
  %5737 = vst.msk [vmem:[#allocation2 + $0x68] sm:$0xff] %vm2458, %v5661
  %5738 = vst.msk [vmem:[#allocation2 + $0x70] sm:$0xff] %vm2458, %v5663
  %5739 = vst.msk [vmem:[#allocation2 + $0x78] sm:$0xff] %vm2458, %v5661
  %5740 = vst.msk [vmem:[#allocation2 + $0x80] sm:$0xff] %vm2458, %v5665
  %5741 = vst.msk [vmem:[#allocation2 + $0x88] sm:$0xff] %vm2458, %v5667
  %5742 = vst.msk [vmem:[#allocation2 + $0x90] sm:$0xff] %vm2458, %v5669
  %5743 = vst.msk [vmem:[#allocation2 + $0x98] sm:$0xff] %vm2458, %v5671
  %5744 = vst.msk [vmem:[#allocation2 + $0xa0] sm:$0xff] %vm2458, %v5673
  %5745 = vst.msk [vmem:[#allocation2 + $0xa8] sm:$0xff] %vm2458, %v5675
  %5746 = vst.msk [vmem:[#allocation2 + $0xb0] sm:$0xff] %vm2458, %v5677
  %5747 = vst.msk [vmem:[#allocation2 + $0xb8] sm:$0xff] %vm2458, %v5679
  %5748 = vst.msk [vmem:[#allocation2 + $0xc0] sm:$0xff] %vm2458, %v5681
  %5749 = vst.msk [vmem:[#allocation2 + $0xc8] sm:$0xff] %vm2458, %v5683
  %5750 = vst.msk [vmem:[#allocation2 + $0xd0] sm:$0xff] %vm2458, %v5685
  %5751 = vst.msk [vmem:[#allocation2 + $0xd8] sm:$0xff] %vm2458, %v5687
  %5752 = vst.msk [vmem:[#allocation2 + $0xe0] sm:$0xff] %vm2458, %v5689
  %5753 = vst.msk [vmem:[#allocation2 + $0xe8] sm:$0xff] %vm2458, %v5691
  %5754 = vst.msk [vmem:[#allocation2 + $0xf0] sm:$0xff] %vm2458, %v5693
  %5755 = vst.msk [vmem:[#allocation2 + $0xf8] sm:$0xff] %vm2458, %v5691
  %5756 = vrot.lane.b32.xlu0 %v4601, 28
  %v5757 = vpop.permute.xlu0 %5756
  %5758 = vrot.lane.b32.xlu0 %v4603, 28
  %v5759 = vpop.permute.xlu0 %5758
  %5760 = vrot.lane.b32.xlu0 %v4604, 28
  %v5761 = vpop.permute.xlu0 %5760
  %5762 = vrot.lane.b32.xlu0 %v4605, 28
  %v5763 = vpop.permute.xlu0 %5762
  %5764 = vrot.lane.b32.xlu0 %v4606, 28
  %v5765 = vpop.permute.xlu0 %5764
  %5766 = vrot.lane.b32.xlu0 %v4607, 28
  %v5767 = vpop.permute.xlu0 %5766
  %5768 = vrot.lane.b32.xlu0 %v4608, 28
  %v5769 = vpop.permute.xlu0 %5768
  %5770 = vrot.lane.b32.xlu0 %v4609, 28
  %v5771 = vpop.permute.xlu0 %5770
  %5772 = vrot.lane.b32.xlu0 %v4610, 28
  %v5773 = vpop.permute.xlu0 %5772
  %5774 = vrot.lane.b32.xlu0 %v4611, 28
  %v5775 = vpop.permute.xlu0 %5774
  %5776 = vrot.lane.b32.xlu0 %v4612, 28
  %v5777 = vpop.permute.xlu0 %5776
  %5778 = vrot.lane.b32.xlu0 %v4613, 28
  %v5779 = vpop.permute.xlu0 %5778
  %5780 = vrot.lane.b32.xlu0 %v4614, 28
  %v5781 = vpop.permute.xlu0 %5780
  %5782 = vrot.lane.b32.xlu0 %v4615, 28
  %v5783 = vpop.permute.xlu0 %5782
  %5784 = vrot.lane.b32.xlu0 %v5356, 28
  %v5785 = vpop.permute.xlu0 %5784
  %5786 = vrot.lane.b32.xlu0 %v4616, 28
  %v5787 = vpop.permute.xlu0 %5786
  %5788 = vrot.lane.b32.xlu0 %v4618, 28
  %v5789 = vpop.permute.xlu0 %5788
  %5790 = vrot.lane.b32.xlu0 %v4619, 28
  %v5791 = vpop.permute.xlu0 %5790
  %5792 = vrot.lane.b32.xlu0 %v4620, 28
  %v5793 = vpop.permute.xlu0 %5792
  %5794 = vrot.lane.b32.xlu0 %v4621, 28
  %v5795 = vpop.permute.xlu0 %5794
  %5796 = vrot.lane.b32.xlu0 %v4622, 28
  %v5797 = vpop.permute.xlu0 %5796
  %5798 = vrot.lane.b32.xlu0 %v4623, 28
  %v5799 = vpop.permute.xlu0 %5798
  %5800 = vrot.lane.b32.xlu0 %v4624, 28
  %v5801 = vpop.permute.xlu0 %5800
  %5802 = vrot.lane.b32.xlu0 %v4625, 28
  %v5803 = vpop.permute.xlu0 %5802
  %5804 = vrot.lane.b32.xlu0 %v4626, 28
  %v5805 = vpop.permute.xlu0 %5804
  %5806 = vrot.lane.b32.xlu0 %v4627, 28
  %v5807 = vpop.permute.xlu0 %5806
  %5808 = vrot.lane.b32.xlu0 %v4628, 28
  %v5809 = vpop.permute.xlu0 %5808
  %5810 = vrot.lane.b32.xlu0 %v4629, 28
  %v5811 = vpop.permute.xlu0 %5810
  %5812 = vrot.lane.b32.xlu0 %v4630, 28
  %v5813 = vpop.permute.xlu0 %5812
  %5814 = vrot.lane.b32.xlu0 %v5357, 28
  %v5815 = vpop.permute.xlu0 %5814
  %5846 = vst.msk [vmem:[#allocation2] sm:$0xff] %vm2641, %v5757
  %5847 = vst.msk [vmem:[#allocation2 + $0x8] sm:$0xff] %vm2641, %v5759
  %5848 = vst.msk [vmem:[#allocation2 + $0x10] sm:$0xff] %vm2641, %v5761
  %5849 = vst.msk [vmem:[#allocation2 + $0x18] sm:$0xff] %vm2641, %v5763
  %5850 = vst.msk [vmem:[#allocation2 + $0x20] sm:$0xff] %vm2641, %v5765
  %5851 = vst.msk [vmem:[#allocation2 + $0x28] sm:$0xff] %vm2641, %v5767
  %5852 = vst.msk [vmem:[#allocation2 + $0x30] sm:$0xff] %vm2641, %v5769
  %5853 = vst.msk [vmem:[#allocation2 + $0x38] sm:$0xff] %vm2641, %v5771
  %5854 = vst.msk [vmem:[#allocation2 + $0x40] sm:$0xff] %vm2641, %v5773
  %5855 = vst.msk [vmem:[#allocation2 + $0x48] sm:$0xff] %vm2641, %v5775
  %5856 = vst.msk [vmem:[#allocation2 + $0x50] sm:$0xff] %vm2641, %v5777
  %5857 = vst.msk [vmem:[#allocation2 + $0x58] sm:$0xff] %vm2641, %v5779
  %5858 = vst.msk [vmem:[#allocation2 + $0x60] sm:$0xff] %vm2641, %v5781
  %5859 = vst.msk [vmem:[#allocation2 + $0x68] sm:$0xff] %vm2641, %v5783
  %5860 = vst.msk [vmem:[#allocation2 + $0x70] sm:$0xff] %vm2641, %v5785
  %5861 = vst.msk [vmem:[#allocation2 + $0x78] sm:$0xff] %vm2641, %v5783
  %5862 = vst.msk [vmem:[#allocation2 + $0x80] sm:$0xff] %vm2641, %v5787
  %5863 = vst.msk [vmem:[#allocation2 + $0x88] sm:$0xff] %vm2641, %v5789
  %5864 = vst.msk [vmem:[#allocation2 + $0x90] sm:$0xff] %vm2641, %v5791
  %5865 = vst.msk [vmem:[#allocation2 + $0x98] sm:$0xff] %vm2641, %v5793
  %5866 = vst.msk [vmem:[#allocation2 + $0xa0] sm:$0xff] %vm2641, %v5795
  %5867 = vst.msk [vmem:[#allocation2 + $0xa8] sm:$0xff] %vm2641, %v5797
  %5868 = vst.msk [vmem:[#allocation2 + $0xb0] sm:$0xff] %vm2641, %v5799
  %5869 = vst.msk [vmem:[#allocation2 + $0xb8] sm:$0xff] %vm2641, %v5801
  %5870 = vst.msk [vmem:[#allocation2 + $0xc0] sm:$0xff] %vm2641, %v5803
  %5871 = vst.msk [vmem:[#allocation2 + $0xc8] sm:$0xff] %vm2641, %v5805
  %5872 = vst.msk [vmem:[#allocation2 + $0xd0] sm:$0xff] %vm2641, %v5807
  %5873 = vst.msk [vmem:[#allocation2 + $0xd8] sm:$0xff] %vm2641, %v5809
  %5874 = vst.msk [vmem:[#allocation2 + $0xe0] sm:$0xff] %vm2641, %v5811
  %5875 = vst.msk [vmem:[#allocation2 + $0xe8] sm:$0xff] %vm2641, %v5813
  %5876 = vst.msk [vmem:[#allocation2 + $0xf0] sm:$0xff] %vm2641, %v5815
  %5877 = vst.msk [vmem:[#allocation2 + $0xf8] sm:$0xff] %vm2641, %v5813
  %5878 = vrot.lane.b32.xlu0 %v4994, 32
  %v5879 = vpop.permute.xlu0 %5878
  %5880 = vrot.lane.b32.xlu0 %v4996, 32
  %v5881 = vpop.permute.xlu0 %5880
  %5882 = vrot.lane.b32.xlu0 %v4997, 32
  %v5883 = vpop.permute.xlu0 %5882
  %5884 = vrot.lane.b32.xlu0 %v4998, 32
  %v5885 = vpop.permute.xlu0 %5884
  %5886 = vrot.lane.b32.xlu0 %v4999, 32
  %v5887 = vpop.permute.xlu0 %5886
  %5888 = vrot.lane.b32.xlu0 %v5000, 32
  %v5889 = vpop.permute.xlu0 %5888
  %5890 = vrot.lane.b32.xlu0 %v5001, 32
  %v5891 = vpop.permute.xlu0 %5890
  %5892 = vrot.lane.b32.xlu0 %v5002, 32
  %v5893 = vpop.permute.xlu0 %5892
  %5894 = vrot.lane.b32.xlu0 %v5003, 32
  %v5895 = vpop.permute.xlu0 %5894
  %5896 = vrot.lane.b32.xlu0 %v5004, 32
  %v5897 = vpop.permute.xlu0 %5896
  %5898 = vrot.lane.b32.xlu0 %v5005, 32
  %v5899 = vpop.permute.xlu0 %5898
  %5900 = vrot.lane.b32.xlu0 %v5006, 32
  %v5901 = vpop.permute.xlu0 %5900
  %5902 = vrot.lane.b32.xlu0 %v5007, 32
  %v5903 = vpop.permute.xlu0 %5902
  %5904 = vrot.lane.b32.xlu0 %v5008, 32
  %v5905 = vpop.permute.xlu0 %5904
  %5906 = vrot.lane.b32.xlu0 %v5502, 32
  %v5907 = vpop.permute.xlu0 %5906
  %5908 = vrot.lane.b32.xlu0 %v5009, 32
  %v5909 = vpop.permute.xlu0 %5908
  %5910 = vrot.lane.b32.xlu0 %v5011, 32
  %v5911 = vpop.permute.xlu0 %5910
  %5912 = vrot.lane.b32.xlu0 %v5012, 32
  %v5913 = vpop.permute.xlu0 %5912
  %5914 = vrot.lane.b32.xlu0 %v5013, 32
  %v5915 = vpop.permute.xlu0 %5914
  %5916 = vrot.lane.b32.xlu0 %v5014, 32
  %v5917 = vpop.permute.xlu0 %5916
  %5918 = vrot.lane.b32.xlu0 %v5015, 32
  %v5919 = vpop.permute.xlu0 %5918
  %5920 = vrot.lane.b32.xlu0 %v5016, 32
  %v5921 = vpop.permute.xlu0 %5920
  %5922 = vrot.lane.b32.xlu0 %v5017, 32
  %v5923 = vpop.permute.xlu0 %5922
  %5924 = vrot.lane.b32.xlu0 %v5018, 32
  %v5925 = vpop.permute.xlu0 %5924
  %5926 = vrot.lane.b32.xlu0 %v5019, 32
  %v5927 = vpop.permute.xlu0 %5926
  %5928 = vrot.lane.b32.xlu0 %v5020, 32
  %v5929 = vpop.permute.xlu0 %5928
  %5930 = vrot.lane.b32.xlu0 %v5021, 32
  %v5931 = vpop.permute.xlu0 %5930
  %5932 = vrot.lane.b32.xlu0 %v5022, 32
  %v5933 = vpop.permute.xlu0 %5932
  %5934 = vrot.lane.b32.xlu0 %v5023, 32
  %v5935 = vpop.permute.xlu0 %5934
  %5936 = vrot.lane.b32.xlu0 %v5503, 32
  %v5937 = vpop.permute.xlu0 %5936
  %5968 = vst.msk [vmem:[#allocation2] sm:$0xff] %vm2792, %v5879
  %5969 = vst.msk [vmem:[#allocation2 + $0x8] sm:$0xff] %vm2792, %v5881
  %5970 = vst.msk [vmem:[#allocation2 + $0x10] sm:$0xff] %vm2792, %v5883
  %5971 = vst.msk [vmem:[#allocation2 + $0x18] sm:$0xff] %vm2792, %v5885
  %5972 = vst.msk [vmem:[#allocation2 + $0x20] sm:$0xff] %vm2792, %v5887
  %5973 = vst.msk [vmem:[#allocation2 + $0x28] sm:$0xff] %vm2792, %v5889
  %5974 = vst.msk [vmem:[#allocation2 + $0x30] sm:$0xff] %vm2792, %v5891
  %5975 = vst.msk [vmem:[#allocation2 + $0x38] sm:$0xff] %vm2792, %v5893
  %5976 = vst.msk [vmem:[#allocation2 + $0x40] sm:$0xff] %vm2792, %v5895
  %5977 = vst.msk [vmem:[#allocation2 + $0x48] sm:$0xff] %vm2792, %v5897
  %5978 = vst.msk [vmem:[#allocation2 + $0x50] sm:$0xff] %vm2792, %v5899
  %5979 = vst.msk [vmem:[#allocation2 + $0x58] sm:$0xff] %vm2792, %v5901
  %5980 = vst.msk [vmem:[#allocation2 + $0x60] sm:$0xff] %vm2792, %v5903
  %5981 = vst.msk [vmem:[#allocation2 + $0x68] sm:$0xff] %vm2792, %v5905
  %5982 = vst.msk [vmem:[#allocation2 + $0x70] sm:$0xff] %vm2792, %v5907
  %5983 = vst.msk [vmem:[#allocation2 + $0x78] sm:$0xff] %vm2792, %v5905
  %5984 = vst.msk [vmem:[#allocation2 + $0x80] sm:$0xff] %vm2792, %v5909
  %5985 = vst.msk [vmem:[#allocation2 + $0x88] sm:$0xff] %vm2792, %v5911
  %5986 = vst.msk [vmem:[#allocation2 + $0x90] sm:$0xff] %vm2792, %v5913
  %5987 = vst.msk [vmem:[#allocation2 + $0x98] sm:$0xff] %vm2792, %v5915
  %5988 = vst.msk [vmem:[#allocation2 + $0xa0] sm:$0xff] %vm2792, %v5917
  %5989 = vst.msk [vmem:[#allocation2 + $0xa8] sm:$0xff] %vm2792, %v5919
  %5990 = vst.msk [vmem:[#allocation2 + $0xb0] sm:$0xff] %vm2792, %v5921
  %5991 = vst.msk [vmem:[#allocation2 + $0xb8] sm:$0xff] %vm2792, %v5923
  %5992 = vst.msk [vmem:[#allocation2 + $0xc0] sm:$0xff] %vm2792, %v5925
  %5993 = vst.msk [vmem:[#allocation2 + $0xc8] sm:$0xff] %vm2792, %v5927
  %5994 = vst.msk [vmem:[#allocation2 + $0xd0] sm:$0xff] %vm2792, %v5929
  %5995 = vst.msk [vmem:[#allocation2 + $0xd8] sm:$0xff] %vm2792, %v5931
  %5996 = vst.msk [vmem:[#allocation2 + $0xe0] sm:$0xff] %vm2792, %v5933
  %5997 = vst.msk [vmem:[#allocation2 + $0xe8] sm:$0xff] %vm2792, %v5935
  %5998 = vst.msk [vmem:[#allocation2 + $0xf0] sm:$0xff] %vm2792, %v5937
  %5999 = vst.msk [vmem:[#allocation2 + $0xf8] sm:$0xff] %vm2792, %v5935
  %v6000 = vld [vmem:[#allocation2] sm:$0xff]
  %v6001 = vld [vmem:[#allocation2 + $0x8] sm:$0xff]
  %v6002 = vld [vmem:[#allocation2 + $0x10] sm:$0xff]
  %v6003 = vld [vmem:[#allocation2 + $0x18] sm:$0xff]
  %v6004 = vld [vmem:[#allocation2 + $0x20] sm:$0xff]
  %v6005 = vld [vmem:[#allocation2 + $0x28] sm:$0xff]
  %v6006 = vld [vmem:[#allocation2 + $0x30] sm:$0xff]
  %v6007 = vld [vmem:[#allocation2 + $0x38] sm:$0xff]
  %v6008 = vld [vmem:[#allocation2 + $0x40] sm:$0xff]
  %v6009 = vld [vmem:[#allocation2 + $0x48] sm:$0xff]
  %v6010 = vld [vmem:[#allocation2 + $0x50] sm:$0xff]
  %v6011 = vld [vmem:[#allocation2 + $0x58] sm:$0xff]
  %v6012 = vld [vmem:[#allocation2 + $0x60] sm:$0xff]
  %v6013 = vld [vmem:[#allocation2 + $0x68] sm:$0xff]
  %v6014 = vld [vmem:[#allocation2 + $0x70] sm:$0xff]
  %v6015 = vld [vmem:[#allocation2 + $0x78] sm:$0xff]
  %v6016 = vld [vmem:[#allocation2 + $0x80] sm:$0xff]
  %v6017 = vld [vmem:[#allocation2 + $0x88] sm:$0xff]
  %v6018 = vld [vmem:[#allocation2 + $0x90] sm:$0xff]
  %v6019 = vld [vmem:[#allocation2 + $0x98] sm:$0xff]
  %v6020 = vld [vmem:[#allocation2 + $0xa0] sm:$0xff]
  %v6021 = vld [vmem:[#allocation2 + $0xa8] sm:$0xff]
  %v6022 = vld [vmem:[#allocation2 + $0xb0] sm:$0xff]
  %v6023 = vld [vmem:[#allocation2 + $0xb8] sm:$0xff]
  %v6024 = vld [vmem:[#allocation2 + $0xc0] sm:$0xff]
  %v6025 = vld [vmem:[#allocation2 + $0xc8] sm:$0xff]
  %v6026 = vld [vmem:[#allocation2 + $0xd0] sm:$0xff]
  %v6027 = vld [vmem:[#allocation2 + $0xd8] sm:$0xff]
  %v6028 = vld [vmem:[#allocation2 + $0xe0] sm:$0xff]
  %v6029 = vld [vmem:[#allocation2 + $0xe8] sm:$0xff]
  %v6030 = vld [vmem:[#allocation2 + $0xf0] sm:$0xff]
  %v6031 = vld [vmem:[#allocation2 + $0xf8] sm:$0xff]
  %v6032 = vld [vmem:[%s6] sm:$0xf]
  %v6033 = vld [vmem:[%s6 + $0x4] sm:$0xf]
  %v6034 = vld [vmem:[%s6 + $0x8] sm:$0xf]
  %v6035 = vld [vmem:[%s6 + $0xc] sm:$0xf]
  %v6036 = vld [vmem:[%s6 + $0x10] sm:$0xf]
  %v6037 = vld [vmem:[%s6 + $0x14] sm:$0xf]
  %v6038 = vld [vmem:[%s6 + $0x18] sm:$0xf]
  %v6039 = vld [vmem:[%s6 + $0x1c] sm:$0xf]
  %v6040 = vld [vmem:[%s6 + $0x20] sm:$0xf]
  %v6041 = vld [vmem:[%s6 + $0x24] sm:$0xf]
  %v6042 = vld [vmem:[%s6 + $0x28] sm:$0xf]
  %v6043 = vld [vmem:[%s6 + $0x2c] sm:$0xf]
  %v6044 = vld [vmem:[%s6 + $0x30] sm:$0xf]
  %v6045 = vld [vmem:[%s6 + $0x34] sm:$0xf]
  %v6046 = vld [vmem:[%s6 + $0x38] sm:$0xf]
  %v6047 = vld [vmem:[%s6 + $0x3c] sm:$0xf]
  %v6064 = vunpack.c.l.b16 %v6032
  %v6065 = vunpack.c.l.b16 %v6033
  %v6066 = vunpack.c.l.b16 %v6034
  %v6067 = vunpack.c.l.b16 %v6035
  %v6068 = vunpack.c.l.b16 %v6036
  %v6069 = vunpack.c.l.b16 %v6037
  %v6070 = vunpack.c.l.b16 %v6038
  %v6071 = vunpack.c.l.b16 %v6039
  %v6072 = vunpack.c.l.b16 %v6040
  %v6073 = vunpack.c.l.b16 %v6041
  %v6074 = vunpack.c.l.b16 %v6042
  %v6075 = vunpack.c.l.b16 %v6043
  %v6076 = vunpack.c.l.b16 %v6044
  %v6077 = vunpack.c.l.b16 %v6045
  %v6078 = vunpack.c.l.b16 %v6046
  %v6079 = vunpack.c.l.b16 %v6047
  %v6080 = vpack.c.b16 %v6065, %v6064
  %v6081 = vpack.c.b16 %v6067, %v6066
  %v6082 = vpack.c.b16 %v6069, %v6068
  %v6083 = vpack.c.b16 %v6071, %v6070
  %v6084 = vpack.c.b16 %v6073, %v6072
  %v6085 = vpack.c.b16 %v6075, %v6074
  %v6086 = vpack.c.b16 %v6077, %v6076
  %v6087 = vpack.c.b16 %v6079, %v6078
  %6096 = vmatprep.subr.bf16.mxu0 0
  %6097 = vmatpush1.bf16.msra.mxu0 %v6080
  %6098 = vmatprep.subr.bf16.mxu0 0
  %6099 = vmatpush1.bf16.msra.mxu0 %v6081
  %6100 = vmatprep.subr.bf16.mxu0 0
  %6101 = vmatpush1.bf16.msra.mxu0 %v6082
  %6102 = vmatprep.subr.bf16.mxu0 0
  %6103 = vmatpush1.bf16.msra.mxu0 %v6083
  %6104 = vmatprep.subr.bf16.mxu0 0
  %6105 = vmatpush1.bf16.msra.mxu0 %v6084
  %6106 = vmatprep.subr.bf16.mxu0 0
  %6107 = vmatpush1.bf16.msra.mxu0 %v6085
  %6108 = vmatprep.subr.bf16.mxu0 0
  %6109 = vmatpush1.bf16.msra.mxu0 %v6086
  %6110 = vmatprep.subr.bf16.mxu0 0
  %6111 = vmatpush1.bf16.msra.mxu0 %v6087
  %6112 = vmatprep.subr.bf16.mxu0 0
  %6113 = vmatpush1.bf16.msra.mxu0 0
  %6114 = vmatprep.subr.bf16.mxu0 0
  %6115 = vmatpush1.bf16.msra.mxu0 0
  %6116 = vmatprep.subr.bf16.mxu0 0
  %6117 = vmatpush1.bf16.msra.mxu0 0
  %6118 = vmatprep.subr.bf16.mxu0 0
  %6119 = vmatpush1.bf16.msra.mxu0 0
  %6120 = vmatprep.subr.bf16.mxu0 0
  %6121 = vmatpush1.bf16.msra.mxu0 0
  %6122 = vmatprep.subr.bf16.mxu0 0
  %6123 = vmatpush1.bf16.msra.mxu0 0
  %6124 = vmatprep.subr.bf16.mxu0 0
  %6125 = vmatpush1.bf16.msra.mxu0 0
  %6126 = vmatprep.subr.bf16.mxu0 0
  %6127 = vmatpush1.bf16.msra.mxu0 0
  %6128 = vmatprep.mubr.bf16.mxu0 0
  %6129 = vmatmul.mubr.bf16.gmra.mrb[0].mxu0 %v6000
  %v6130 = vpop.f32.mrb[0].mxu0
  %v6131 = vadd.f32 0.0, %v6130
  %v6132 = vpop.f32.mrb[0].mxu0
  %v6133 = vpop.f32.mrb[0].mxu0
  %v6134 = vadd.f32 0.0, %v6133
  %v6135 = vpop.f32.mrb[0].mxu0
  %6136 = vmatprep.mubr.bf16.mxu0 0
  %6137 = vmatmul.mubr.bf16.gmra.mrb[0].mxu0 %v6001
  %v6138 = vpop.f32.mrb[0].mxu0
  %v6139 = vadd.f32 0.0, %v6138
  %v6140 = vpop.f32.mrb[0].mxu0
  %v6141 = vpop.f32.mrb[0].mxu0
  %v6142 = vadd.f32 0.0, %v6141
  %v6143 = vpop.f32.mrb[0].mxu0
  %6144 = vmatprep.mubr.bf16.mxu0 0
  %6145 = vmatmul.mubr.bf16.gmra.mrb[0].mxu0 %v6002
  %v6146 = vpop.f32.mrb[0].mxu0
  %v6147 = vadd.f32 0.0, %v6146
  %v6148 = vpop.f32.mrb[0].mxu0
  %v6149 = vpop.f32.mrb[0].mxu0
  %v6150 = vadd.f32 0.0, %v6149
  %v6151 = vpop.f32.mrb[0].mxu0
  %6152 = vmatprep.mubr.bf16.mxu0 0
  %6153 = vmatmul.mubr.bf16.gmra.mrb[0].mxu0 %v6003
  %v6154 = vpop.f32.mrb[0].mxu0
  %v6155 = vadd.f32 0.0, %v6154
  %v6156 = vpop.f32.mrb[0].mxu0
  %v6157 = vpop.f32.mrb[0].mxu0
  %v6158 = vadd.f32 0.0, %v6157
  %v6159 = vpop.f32.mrb[0].mxu0
  %6160 = vmatprep.mubr.bf16.mxu0 0
  %6161 = vmatmul.mubr.bf16.gmra.mrb[0].mxu0 %v6004
  %v6162 = vpop.f32.mrb[0].mxu0
  %v6163 = vadd.f32 0.0, %v6162
  %v6164 = vpop.f32.mrb[0].mxu0
  %v6165 = vpop.f32.mrb[0].mxu0
  %v6166 = vadd.f32 0.0, %v6165
  %v6167 = vpop.f32.mrb[0].mxu0
  %6168 = vmatprep.mubr.bf16.mxu0 0
  %6169 = vmatmul.mubr.bf16.gmra.mrb[0].mxu0 %v6005
  %v6170 = vpop.f32.mrb[0].mxu0
  %v6171 = vadd.f32 0.0, %v6170
  %v6172 = vpop.f32.mrb[0].mxu0
  %v6173 = vpop.f32.mrb[0].mxu0
  %v6174 = vadd.f32 0.0, %v6173
  %v6175 = vpop.f32.mrb[0].mxu0
  %6176 = vmatprep.mubr.bf16.mxu0 0
  %6177 = vmatmul.mubr.bf16.gmra.mrb[0].mxu0 %v6006
  %v6178 = vpop.f32.mrb[0].mxu0
  %v6179 = vadd.f32 0.0, %v6178
  %v6180 = vpop.f32.mrb[0].mxu0
  %v6181 = vpop.f32.mrb[0].mxu0
  %v6182 = vadd.f32 0.0, %v6181
  %v6183 = vpop.f32.mrb[0].mxu0
  %6184 = vmatprep.mubr.bf16.mxu0 0
  %6185 = vmatmul.mubr.bf16.gmra.mrb[0].mxu0 %v6007
  %v6186 = vpop.f32.mrb[0].mxu0
  %v6187 = vadd.f32 0.0, %v6186
  %v6188 = vpop.f32.mrb[0].mxu0
  %v6189 = vpop.f32.mrb[0].mxu0
  %v6190 = vadd.f32 0.0, %v6189
  %v6191 = vpop.f32.mrb[0].mxu0
  %6192 = vmatprep.mubr.bf16.mxu0 0
  %6193 = vmatmul.mubr.bf16.gmra.mrb[0].mxu0 %v6008
  %v6194 = vpop.f32.mrb[0].mxu0
  %v6195 = vadd.f32 0.0, %v6194
  %v6196 = vpop.f32.mrb[0].mxu0
  %v6197 = vpop.f32.mrb[0].mxu0
  %v6198 = vadd.f32 0.0, %v6197
  %v6199 = vpop.f32.mrb[0].mxu0
  %6200 = vmatprep.mubr.bf16.mxu0 0
  %6201 = vmatmul.mubr.bf16.gmra.mrb[0].mxu0 %v6009
  %v6202 = vpop.f32.mrb[0].mxu0
  %v6203 = vadd.f32 0.0, %v6202
  %v6204 = vpop.f32.mrb[0].mxu0
  %v6205 = vpop.f32.mrb[0].mxu0
  %v6206 = vadd.f32 0.0, %v6205
  %v6207 = vpop.f32.mrb[0].mxu0
  %6208 = vmatprep.mubr.bf16.mxu0 0
  %6209 = vmatmul.mubr.bf16.gmra.mrb[0].mxu0 %v6010
  %v6210 = vpop.f32.mrb[0].mxu0
  %v6211 = vadd.f32 0.0, %v6210
  %v6212 = vpop.f32.mrb[0].mxu0
  %v6213 = vpop.f32.mrb[0].mxu0
  %v6214 = vadd.f32 0.0, %v6213
  %v6215 = vpop.f32.mrb[0].mxu0
  %6216 = vmatprep.mubr.bf16.mxu0 0
  %6217 = vmatmul.mubr.bf16.gmra.mrb[0].mxu0 %v6011
  %v6218 = vpop.f32.mrb[0].mxu0
  %v6219 = vadd.f32 0.0, %v6218
  %v6220 = vpop.f32.mrb[0].mxu0
  %v6221 = vpop.f32.mrb[0].mxu0
  %v6222 = vadd.f32 0.0, %v6221
  %v6223 = vpop.f32.mrb[0].mxu0
  %6224 = vmatprep.mubr.bf16.mxu0 0
  %6225 = vmatmul.mubr.bf16.gmra.mrb[0].mxu0 %v6012
  %v6226 = vpop.f32.mrb[0].mxu0
  %v6227 = vadd.f32 0.0, %v6226
  %v6228 = vpop.f32.mrb[0].mxu0
  %v6229 = vpop.f32.mrb[0].mxu0
  %v6230 = vadd.f32 0.0, %v6229
  %v6231 = vpop.f32.mrb[0].mxu0
  %6232 = vmatprep.mubr.bf16.mxu0 0
  %6233 = vmatmul.mubr.bf16.gmra.mrb[0].mxu0 %v6013
  %v6234 = vpop.f32.mrb[0].mxu0
  %v6235 = vadd.f32 0.0, %v6234
  %v6236 = vpop.f32.mrb[0].mxu0
  %v6237 = vpop.f32.mrb[0].mxu0
  %v6238 = vadd.f32 0.0, %v6237
  %v6239 = vpop.f32.mrb[0].mxu0
  %6240 = vmatprep.mubr.bf16.mxu0 0
  %6241 = vmatmul.mubr.bf16.gmra.mrb[0].mxu0 %v6014
  %v6242 = vpop.f32.mrb[0].mxu0
  %v6243 = vadd.f32 0.0, %v6242
  %v6244 = vpop.f32.mrb[0].mxu0
  %v6245 = vpop.f32.mrb[0].mxu0
  %v6246 = vadd.f32 0.0, %v6245
  %v6247 = vpop.f32.mrb[0].mxu0
  %6248 = vmatprep.mubr.bf16.mxu0 0
  %6249 = vmatmul.mubr.bf16.gmra.mrb[0].mxu0 %v6015
  %v6250 = vpop.f32.mrb[0].mxu0
  %v6251 = vadd.f32 0.0, %v6250
  %v6252 = vpop.f32.mrb[0].mxu0
  %v6253 = vpop.f32.mrb[0].mxu0
  %v6254 = vadd.f32 0.0, %v6253
  %v6255 = vpop.f32.mrb[0].mxu0
  %6256 = vmatprep.mubr.bf16.mxu0 0
  %6257 = vmatmul.mubr.bf16.gmra.mrb[0].mxu0 %v6016
  %v6258 = vpop.f32.mrb[0].mxu0
  %v6259 = vadd.f32 0.0, %v6258
  %v6260 = vpop.f32.mrb[0].mxu0
  %v6261 = vpop.f32.mrb[0].mxu0
  %v6262 = vadd.f32 0.0, %v6261
  %v6263 = vpop.f32.mrb[0].mxu0
  %6264 = vmatprep.mubr.bf16.mxu0 0
  %6265 = vmatmul.mubr.bf16.gmra.mrb[0].mxu0 %v6017
  %v6266 = vpop.f32.mrb[0].mxu0
  %v6267 = vadd.f32 0.0, %v6266
  %v6268 = vpop.f32.mrb[0].mxu0
  %v6269 = vpop.f32.mrb[0].mxu0
  %v6270 = vadd.f32 0.0, %v6269
  %v6271 = vpop.f32.mrb[0].mxu0
  %6272 = vmatprep.mubr.bf16.mxu0 0
  %6273 = vmatmul.mubr.bf16.gmra.mrb[0].mxu0 %v6018
  %v6274 = vpop.f32.mrb[0].mxu0
  %v6275 = vadd.f32 0.0, %v6274
  %v6276 = vpop.f32.mrb[0].mxu0
  %v6277 = vpop.f32.mrb[0].mxu0
  %v6278 = vadd.f32 0.0, %v6277
  %v6279 = vpop.f32.mrb[0].mxu0
  %6280 = vmatprep.mubr.bf16.mxu0 0
  %6281 = vmatmul.mubr.bf16.gmra.mrb[0].mxu0 %v6019
  %v6282 = vpop.f32.mrb[0].mxu0
  %v6283 = vadd.f32 0.0, %v6282
  %v6284 = vpop.f32.mrb[0].mxu0
  %v6285 = vpop.f32.mrb[0].mxu0
  %v6286 = vadd.f32 0.0, %v6285
  %v6287 = vpop.f32.mrb[0].mxu0
  %6288 = vmatprep.mubr.bf16.mxu0 0
  %6289 = vmatmul.mubr.bf16.gmra.mrb[0].mxu0 %v6020
  %v6290 = vpop.f32.mrb[0].mxu0
  %v6291 = vadd.f32 0.0, %v6290
  %v6292 = vpop.f32.mrb[0].mxu0
  %v6293 = vpop.f32.mrb[0].mxu0
  %v6294 = vadd.f32 0.0, %v6293
  %v6295 = vpop.f32.mrb[0].mxu0
  %6296 = vmatprep.mubr.bf16.mxu0 0
  %6297 = vmatmul.mubr.bf16.gmra.mrb[0].mxu0 %v6021
  %v6298 = vpop.f32.mrb[0].mxu0
  %v6299 = vadd.f32 0.0, %v6298
  %v6300 = vpop.f32.mrb[0].mxu0
  %v6301 = vpop.f32.mrb[0].mxu0
  %v6302 = vadd.f32 0.0, %v6301
  %v6303 = vpop.f32.mrb[0].mxu0
  %6304 = vmatprep.mubr.bf16.mxu0 0
  %6305 = vmatmul.mubr.bf16.gmra.mrb[0].mxu0 %v6022
  %v6306 = vpop.f32.mrb[0].mxu0
  %v6307 = vadd.f32 0.0, %v6306
  %v6308 = vpop.f32.mrb[0].mxu0
  %v6309 = vpop.f32.mrb[0].mxu0
  %v6310 = vadd.f32 0.0, %v6309
  %v6311 = vpop.f32.mrb[0].mxu0
  %6312 = vmatprep.mubr.bf16.mxu0 0
  %6313 = vmatmul.mubr.bf16.gmra.mrb[0].mxu0 %v6023
  %v6314 = vpop.f32.mrb[0].mxu0
  %v6315 = vadd.f32 0.0, %v6314
  %v6316 = vpop.f32.mrb[0].mxu0
  %v6317 = vpop.f32.mrb[0].mxu0
  %v6318 = vadd.f32 0.0, %v6317
  %v6319 = vpop.f32.mrb[0].mxu0
  %6320 = vmatprep.mubr.bf16.mxu0 0
  %6321 = vmatmul.mubr.bf16.gmra.mrb[0].mxu0 %v6024
  %v6322 = vpop.f32.mrb[0].mxu0
  %v6323 = vadd.f32 0.0, %v6322
  %v6324 = vpop.f32.mrb[0].mxu0
  %v6325 = vpop.f32.mrb[0].mxu0
  %v6326 = vadd.f32 0.0, %v6325
  %v6327 = vpop.f32.mrb[0].mxu0
  %6328 = vmatprep.mubr.bf16.mxu0 0
  %6329 = vmatmul.mubr.bf16.gmra.mrb[0].mxu0 %v6025
  %v6330 = vpop.f32.mrb[0].mxu0
  %v6331 = vadd.f32 0.0, %v6330
  %v6332 = vpop.f32.mrb[0].mxu0
  %v6333 = vpop.f32.mrb[0].mxu0
  %v6334 = vadd.f32 0.0, %v6333
  %v6335 = vpop.f32.mrb[0].mxu0
  %6336 = vmatprep.mubr.bf16.mxu0 0
  %6337 = vmatmul.mubr.bf16.gmra.mrb[0].mxu0 %v6026
  %v6338 = vpop.f32.mrb[0].mxu0
  %v6339 = vadd.f32 0.0, %v6338
  %v6340 = vpop.f32.mrb[0].mxu0
  %v6341 = vpop.f32.mrb[0].mxu0
  %v6342 = vadd.f32 0.0, %v6341
  %v6343 = vpop.f32.mrb[0].mxu0
  %6344 = vmatprep.mubr.bf16.mxu0 0
  %6345 = vmatmul.mubr.bf16.gmra.mrb[0].mxu0 %v6027
  %v6346 = vpop.f32.mrb[0].mxu0
  %v6347 = vadd.f32 0.0, %v6346
  %v6348 = vpop.f32.mrb[0].mxu0
  %v6349 = vpop.f32.mrb[0].mxu0
  %v6350 = vadd.f32 0.0, %v6349
  %v6351 = vpop.f32.mrb[0].mxu0
  %6352 = vmatprep.mubr.bf16.mxu0 0
  %6353 = vmatmul.mubr.bf16.gmra.mrb[0].mxu0 %v6028
  %v6354 = vpop.f32.mrb[0].mxu0
  %v6355 = vadd.f32 0.0, %v6354
  %v6356 = vpop.f32.mrb[0].mxu0
  %v6357 = vpop.f32.mrb[0].mxu0
  %v6358 = vadd.f32 0.0, %v6357
  %v6359 = vpop.f32.mrb[0].mxu0
  %6360 = vmatprep.mubr.bf16.mxu0 0
  %6361 = vmatmul.mubr.bf16.gmra.mrb[0].mxu0 %v6029
  %v6362 = vpop.f32.mrb[0].mxu0
  %v6363 = vadd.f32 0.0, %v6362
  %v6364 = vpop.f32.mrb[0].mxu0
  %v6365 = vpop.f32.mrb[0].mxu0
  %v6366 = vadd.f32 0.0, %v6365
  %v6367 = vpop.f32.mrb[0].mxu0
  %6368 = vmatprep.mubr.bf16.mxu0 0
  %6369 = vmatmul.mubr.bf16.gmra.mrb[0].mxu0 %v6030
  %v6370 = vpop.f32.mrb[0].mxu0
  %v6371 = vadd.f32 0.0, %v6370
  %v6372 = vpop.f32.mrb[0].mxu0
  %v6373 = vpop.f32.mrb[0].mxu0
  %v6374 = vadd.f32 0.0, %v6373
  %v6375 = vpop.f32.mrb[0].mxu0
  %6376 = vmatprep.mubr.bf16.mxu0 0
  %6377 = vmatmul.mubr.bf16.gmra.mrb[0].mxu0 %v6031
  %v6378 = vpop.f32.mrb[0].mxu0
  %v6379 = vadd.f32 0.0, %v6378
  %v6380 = vpop.f32.mrb[0].mxu0
  %v6381 = vpop.f32.mrb[0].mxu0
  %v6382 = vadd.f32 0.0, %v6381
  %v6383 = vpop.f32.mrb[0].mxu0
  %6384 = vdwg.mxu0
  %v6385 = vadd.f32 %v6131, %v6134
  %v6386 = vadd.f32 %v6385, %v6139
  %v6387 = vadd.f32 %v6386, %v6142
  %v6388 = vadd.f32 %v6387, %v6147
  %v6389 = vadd.f32 %v6388, %v6150
  %v6390 = vadd.f32 %v6389, %v6155
  %v6391 = vadd.f32 %v6390, %v6158
  %v6392 = vadd.f32 %v6391, %v6163
  %v6393 = vadd.f32 %v6392, %v6166
  %v6394 = vadd.f32 %v6393, %v6171
  %v6395 = vadd.f32 %v6394, %v6174
  %v6396 = vadd.f32 %v6395, %v6179
  %v6397 = vadd.f32 %v6396, %v6182
  %v6398 = vadd.f32 %v6397, %v6187
  %v6399 = vadd.f32 %v6398, %v6190
  %v6400 = vadd.f32 %v6399, %v6195
  %v6401 = vadd.f32 %v6400, %v6198
  %v6402 = vadd.f32 %v6401, %v6203
  %v6403 = vadd.f32 %v6402, %v6206
  %v6404 = vadd.f32 %v6403, %v6211
  %v6405 = vadd.f32 %v6404, %v6214
  %v6406 = vadd.f32 %v6405, %v6219
  %v6407 = vadd.f32 %v6406, %v6222
  %v6408 = vadd.f32 %v6407, %v6227
  %v6409 = vadd.f32 %v6408, %v6230
  %v6410 = vadd.f32 %v6409, %v6235
  %v6411 = vadd.f32 %v6410, %v6238
  %v6412 = vadd.f32 %v6411, %v6243
  %v6413 = vadd.f32 %v6412, %v6246
  %v6414 = vadd.f32 %v6413, %v6251
  %v6415 = vadd.f32 %v6414, %v6254
  %v6416 = vadd.f32 %v6415, %v6259
  %v6417 = vadd.f32 %v6416, %v6262
  %v6418 = vadd.f32 %v6417, %v6267
  %v6419 = vadd.f32 %v6418, %v6270
  %v6420 = vadd.f32 %v6419, %v6275
  %v6421 = vadd.f32 %v6420, %v6278
  %v6422 = vadd.f32 %v6421, %v6283
  %v6423 = vadd.f32 %v6422, %v6286
  %v6424 = vadd.f32 %v6423, %v6291
  %v6425 = vadd.f32 %v6424, %v6294
  %v6426 = vadd.f32 %v6425, %v6299
  %v6427 = vadd.f32 %v6426, %v6302
  %v6428 = vadd.f32 %v6427, %v6307
  %v6429 = vadd.f32 %v6428, %v6310
  %v6430 = vadd.f32 %v6429, %v6315
  %v6431 = vadd.f32 %v6430, %v6318
  %v6432 = vadd.f32 %v6431, %v6323
  %v6433 = vadd.f32 %v6432, %v6326
  %v6434 = vadd.f32 %v6433, %v6331
  %v6435 = vadd.f32 %v6434, %v6334
  %v6436 = vadd.f32 %v6435, %v6339
  %v6437 = vadd.f32 %v6436, %v6342
  %v6438 = vadd.f32 %v6437, %v6347
  %v6439 = vadd.f32 %v6438, %v6350
  %v6440 = vadd.f32 %v6439, %v6355
  %v6441 = vadd.f32 %v6440, %v6358
  %v6442 = vadd.f32 %v6441, %v6363
  %v6443 = vadd.f32 %v6442, %v6366
  %v6444 = vadd.f32 %v6443, %v6371
  %v6445 = vadd.f32 %v6444, %v6374
  %v6446 = vadd.f32 %v6445, %v6379
  %v6447 = vadd.f32 %v6446, %v6382
  %v6448 = vrot.slane %v6447, 4
  %v6449 = vadd.f32 %v6447, %v6448
  %v6450 = vrot.slane %v6449, 2
  %v6451 = vadd.f32 %v6449, %v6450
  %v6452 = vrot.slane %v6451, 1
  %v6453 = vadd.f32 %v6451, %v6452
  %v6454 = vmul.f32 %v6453, %v3279
  %v6455 = vmul.f32 %v6131, %v6131
  %v6456 = vmul.f32 %v6134, %v6134
  %v6457 = vmul.f32 %v6139, %v6139
  %v6458 = vmul.f32 %v6142, %v6142
  %v6459 = vmul.f32 %v6147, %v6147
  %v6460 = vmul.f32 %v6150, %v6150
  %v6461 = vmul.f32 %v6155, %v6155
  %v6462 = vmul.f32 %v6158, %v6158
  %v6463 = vmul.f32 %v6163, %v6163
  %v6464 = vmul.f32 %v6166, %v6166
  %v6465 = vmul.f32 %v6171, %v6171
  %v6466 = vmul.f32 %v6174, %v6174
  %v6467 = vmul.f32 %v6179, %v6179
  %v6468 = vmul.f32 %v6182, %v6182
  %v6469 = vmul.f32 %v6187, %v6187
  %v6470 = vmul.f32 %v6190, %v6190
  %v6471 = vmul.f32 %v6195, %v6195
  %v6472 = vmul.f32 %v6198, %v6198
  %v6473 = vmul.f32 %v6203, %v6203
  %v6474 = vmul.f32 %v6206, %v6206
  %v6475 = vmul.f32 %v6211, %v6211
  %v6476 = vmul.f32 %v6214, %v6214
  %v6477 = vmul.f32 %v6219, %v6219
  %v6478 = vmul.f32 %v6222, %v6222
  %v6479 = vmul.f32 %v6227, %v6227
  %v6480 = vmul.f32 %v6230, %v6230
  %v6481 = vmul.f32 %v6235, %v6235
  %v6482 = vmul.f32 %v6238, %v6238
  %v6483 = vmul.f32 %v6243, %v6243
  %v6484 = vmul.f32 %v6246, %v6246
  %v6485 = vmul.f32 %v6251, %v6251
  %v6486 = vmul.f32 %v6254, %v6254
  %v6487 = vmul.f32 %v6259, %v6259
  %v6488 = vmul.f32 %v6262, %v6262
  %v6489 = vmul.f32 %v6267, %v6267
  %v6490 = vmul.f32 %v6270, %v6270
  %v6491 = vmul.f32 %v6275, %v6275
  %v6492 = vmul.f32 %v6278, %v6278
  %v6493 = vmul.f32 %v6283, %v6283
  %v6494 = vmul.f32 %v6286, %v6286
  %v6495 = vmul.f32 %v6291, %v6291
  %v6496 = vmul.f32 %v6294, %v6294
  %v6497 = vmul.f32 %v6299, %v6299
  %v6498 = vmul.f32 %v6302, %v6302
  %v6499 = vmul.f32 %v6307, %v6307
  %v6500 = vmul.f32 %v6310, %v6310
  %v6501 = vmul.f32 %v6315, %v6315
  %v6502 = vmul.f32 %v6318, %v6318
  %v6503 = vmul.f32 %v6323, %v6323
  %v6504 = vmul.f32 %v6326, %v6326
  %v6505 = vmul.f32 %v6331, %v6331
  %v6506 = vmul.f32 %v6334, %v6334
  %v6507 = vmul.f32 %v6339, %v6339
  %v6508 = vmul.f32 %v6342, %v6342
  %v6509 = vmul.f32 %v6347, %v6347
  %v6510 = vmul.f32 %v6350, %v6350
  %v6511 = vmul.f32 %v6355, %v6355
  %v6512 = vmul.f32 %v6358, %v6358
  %v6513 = vmul.f32 %v6363, %v6363
  %v6514 = vmul.f32 %v6366, %v6366
  %v6515 = vmul.f32 %v6371, %v6371
  %v6516 = vmul.f32 %v6374, %v6374
  %v6517 = vmul.f32 %v6379, %v6379
  %v6518 = vmul.f32 %v6382, %v6382
  %v6519 = vadd.f32 %v6455, %v6456
  %v6520 = vadd.f32 %v6519, %v6457
  %v6521 = vadd.f32 %v6520, %v6458
  %v6522 = vadd.f32 %v6521, %v6459
  %v6523 = vadd.f32 %v6522, %v6460
  %v6524 = vadd.f32 %v6523, %v6461
  %v6525 = vadd.f32 %v6524, %v6462
  %v6526 = vadd.f32 %v6525, %v6463
  %v6527 = vadd.f32 %v6526, %v6464
  %v6528 = vadd.f32 %v6527, %v6465
  %v6529 = vadd.f32 %v6528, %v6466
  %v6530 = vadd.f32 %v6529, %v6467
  %v6531 = vadd.f32 %v6530, %v6468
  %v6532 = vadd.f32 %v6531, %v6469
  %v6533 = vadd.f32 %v6532, %v6470
  %v6534 = vadd.f32 %v6533, %v6471
  %v6535 = vadd.f32 %v6534, %v6472
  %v6536 = vadd.f32 %v6535, %v6473
  %v6537 = vadd.f32 %v6536, %v6474
  %v6538 = vadd.f32 %v6537, %v6475
  %v6539 = vadd.f32 %v6538, %v6476
  %v6540 = vadd.f32 %v6539, %v6477
  %v6541 = vadd.f32 %v6540, %v6478
  %v6542 = vadd.f32 %v6541, %v6479
  %v6543 = vadd.f32 %v6542, %v6480
  %v6544 = vadd.f32 %v6543, %v6481
  %v6545 = vadd.f32 %v6544, %v6482
  %v6546 = vadd.f32 %v6545, %v6483
  %v6547 = vadd.f32 %v6546, %v6484
  %v6548 = vadd.f32 %v6547, %v6485
  %v6549 = vadd.f32 %v6548, %v6486
  %v6550 = vadd.f32 %v6549, %v6487
  %v6551 = vadd.f32 %v6550, %v6488
  %v6552 = vadd.f32 %v6551, %v6489
  %v6553 = vadd.f32 %v6552, %v6490
  %v6554 = vadd.f32 %v6553, %v6491
  %v6555 = vadd.f32 %v6554, %v6492
  %v6556 = vadd.f32 %v6555, %v6493
  %v6557 = vadd.f32 %v6556, %v6494
  %v6558 = vadd.f32 %v6557, %v6495
  %v6559 = vadd.f32 %v6558, %v6496
  %v6560 = vadd.f32 %v6559, %v6497
  %v6561 = vadd.f32 %v6560, %v6498
  %v6562 = vadd.f32 %v6561, %v6499
  %v6563 = vadd.f32 %v6562, %v6500
  %v6564 = vadd.f32 %v6563, %v6501
  %v6565 = vadd.f32 %v6564, %v6502
  %v6566 = vadd.f32 %v6565, %v6503
  %v6567 = vadd.f32 %v6566, %v6504
  %v6568 = vadd.f32 %v6567, %v6505
  %v6569 = vadd.f32 %v6568, %v6506
  %v6570 = vadd.f32 %v6569, %v6507
  %v6571 = vadd.f32 %v6570, %v6508
  %v6572 = vadd.f32 %v6571, %v6509
  %v6573 = vadd.f32 %v6572, %v6510
  %v6574 = vadd.f32 %v6573, %v6511
  %v6575 = vadd.f32 %v6574, %v6512
  %v6576 = vadd.f32 %v6575, %v6513
  %v6577 = vadd.f32 %v6576, %v6514
  %v6578 = vadd.f32 %v6577, %v6515
  %v6579 = vadd.f32 %v6578, %v6516
  %v6580 = vadd.f32 %v6579, %v6517
  %v6581 = vadd.f32 %v6580, %v6518
  %v6582 = vrot.slane %v6581, 4
  %v6583 = vadd.f32 %v6581, %v6582
  %v6584 = vrot.slane %v6583, 2
  %v6585 = vadd.f32 %v6583, %v6584
  %v6586 = vrot.slane %v6585, 1
  %v6587 = vadd.f32 %v6585, %v6586
  %v6588 = vmul.f32 %v6587, %v3279
  %v6589 = vmul.f32 %v6454, %v6454
  %v6590 = vsub.f32 %v6588, %v6589
  %v6591 = vmax.f32 %v6590, 0.0
  %v6592 = vadd.f32 %v6591, 1e-05
  %v6593 = vrsqrt.pop %v6592
  %v6594 = vld [vmem:[%s7] sm:$0x1]
  %v6595 = vmul.f32 %v6593, %v6594
  %v6596 = vsub.f32 %v6131, %v6454
  %v6597 = vsub.f32 %v6134, %v6454
  %v6598 = vsub.f32 %v6139, %v6454
  %v6599 = vsub.f32 %v6142, %v6454
  %v6600 = vsub.f32 %v6147, %v6454
  %v6601 = vsub.f32 %v6150, %v6454
  %v6602 = vsub.f32 %v6155, %v6454
  %v6603 = vsub.f32 %v6158, %v6454
  %v6604 = vsub.f32 %v6163, %v6454
  %v6605 = vsub.f32 %v6166, %v6454
  %v6606 = vsub.f32 %v6171, %v6454
  %v6607 = vsub.f32 %v6174, %v6454
  %v6608 = vsub.f32 %v6179, %v6454
  %v6609 = vsub.f32 %v6182, %v6454
  %v6610 = vsub.f32 %v6187, %v6454
  %v6611 = vsub.f32 %v6190, %v6454
  %v6612 = vsub.f32 %v6195, %v6454
  %v6613 = vsub.f32 %v6198, %v6454
  %v6614 = vsub.f32 %v6203, %v6454
  %v6615 = vsub.f32 %v6206, %v6454
  %v6616 = vsub.f32 %v6211, %v6454
  %v6617 = vsub.f32 %v6214, %v6454
  %v6618 = vsub.f32 %v6219, %v6454
  %v6619 = vsub.f32 %v6222, %v6454
  %v6620 = vsub.f32 %v6227, %v6454
  %v6621 = vsub.f32 %v6230, %v6454
  %v6622 = vsub.f32 %v6235, %v6454
  %v6623 = vsub.f32 %v6238, %v6454
  %v6624 = vsub.f32 %v6243, %v6454
  %v6625 = vsub.f32 %v6246, %v6454
  %v6626 = vsub.f32 %v6251, %v6454
  %v6627 = vsub.f32 %v6254, %v6454
  %v6628 = vsub.f32 %v6259, %v6454
  %v6629 = vsub.f32 %v6262, %v6454
  %v6630 = vsub.f32 %v6267, %v6454
  %v6631 = vsub.f32 %v6270, %v6454
  %v6632 = vsub.f32 %v6275, %v6454
  %v6633 = vsub.f32 %v6278, %v6454
  %v6634 = vsub.f32 %v6283, %v6454
  %v6635 = vsub.f32 %v6286, %v6454
  %v6636 = vsub.f32 %v6291, %v6454
  %v6637 = vsub.f32 %v6294, %v6454
  %v6638 = vsub.f32 %v6299, %v6454
  %v6639 = vsub.f32 %v6302, %v6454
  %v6640 = vsub.f32 %v6307, %v6454
  %v6641 = vsub.f32 %v6310, %v6454
  %v6642 = vsub.f32 %v6315, %v6454
  %v6643 = vsub.f32 %v6318, %v6454
  %v6644 = vsub.f32 %v6323, %v6454
  %v6645 = vsub.f32 %v6326, %v6454
  %v6646 = vsub.f32 %v6331, %v6454
  %v6647 = vsub.f32 %v6334, %v6454
  %v6648 = vsub.f32 %v6339, %v6454
  %v6649 = vsub.f32 %v6342, %v6454
  %v6650 = vsub.f32 %v6347, %v6454
  %v6651 = vsub.f32 %v6350, %v6454
  %v6652 = vsub.f32 %v6355, %v6454
  %v6653 = vsub.f32 %v6358, %v6454
  %v6654 = vsub.f32 %v6363, %v6454
  %v6655 = vsub.f32 %v6366, %v6454
  %v6656 = vsub.f32 %v6371, %v6454
  %v6657 = vsub.f32 %v6374, %v6454
  %v6658 = vsub.f32 %v6379, %v6454
  %v6659 = vsub.f32 %v6382, %v6454
  %v6660 = vlaneseq
  %v6661 = vshrl.u32 %v6660, 7
  %v6662 = vsub.s32 0, %v6661
  %v6663 = vrot.slane %v6595, %v6662
  %v6664 = vmul.f32 %v6596, %v6663
  %v6665 = vmul.f32 %v6597, %v6663
  %v6666 = vmul.f32 %v6598, %v6663
  %v6667 = vmul.f32 %v6599, %v6663
  %v6668 = vmul.f32 %v6600, %v6663
  %v6669 = vmul.f32 %v6601, %v6663
  %v6670 = vmul.f32 %v6602, %v6663
  %v6671 = vmul.f32 %v6603, %v6663
  %v6672 = vmul.f32 %v6604, %v6663
  %v6673 = vmul.f32 %v6605, %v6663
  %v6674 = vmul.f32 %v6606, %v6663
  %v6675 = vmul.f32 %v6607, %v6663
  %v6676 = vmul.f32 %v6608, %v6663
  %v6677 = vmul.f32 %v6609, %v6663
  %v6678 = vmul.f32 %v6610, %v6663
  %v6679 = vmul.f32 %v6611, %v6663
  %v6680 = vmul.f32 %v6612, %v6663
  %v6681 = vmul.f32 %v6613, %v6663
  %v6682 = vmul.f32 %v6614, %v6663
  %v6683 = vmul.f32 %v6615, %v6663
  %v6684 = vmul.f32 %v6616, %v6663
  %v6685 = vmul.f32 %v6617, %v6663
  %v6686 = vmul.f32 %v6618, %v6663
  %v6687 = vmul.f32 %v6619, %v6663
  %v6688 = vmul.f32 %v6620, %v6663
  %v6689 = vmul.f32 %v6621, %v6663
  %v6690 = vmul.f32 %v6622, %v6663
  %v6691 = vmul.f32 %v6623, %v6663
  %v6692 = vmul.f32 %v6624, %v6663
  %v6693 = vmul.f32 %v6625, %v6663
  %v6694 = vmul.f32 %v6626, %v6663
  %v6695 = vmul.f32 %v6627, %v6663
  %v6696 = vmul.f32 %v6628, %v6663
  %v6697 = vmul.f32 %v6629, %v6663
  %v6698 = vmul.f32 %v6630, %v6663
  %v6699 = vmul.f32 %v6631, %v6663
  %v6700 = vmul.f32 %v6632, %v6663
  %v6701 = vmul.f32 %v6633, %v6663
  %v6702 = vmul.f32 %v6634, %v6663
  %v6703 = vmul.f32 %v6635, %v6663
  %v6704 = vmul.f32 %v6636, %v6663
  %v6705 = vmul.f32 %v6637, %v6663
  %v6706 = vmul.f32 %v6638, %v6663
  %v6707 = vmul.f32 %v6639, %v6663
  %v6708 = vmul.f32 %v6640, %v6663
  %v6709 = vmul.f32 %v6641, %v6663
  %v6710 = vmul.f32 %v6642, %v6663
  %v6711 = vmul.f32 %v6643, %v6663
  %v6712 = vmul.f32 %v6644, %v6663
  %v6713 = vmul.f32 %v6645, %v6663
  %v6714 = vmul.f32 %v6646, %v6663
  %v6715 = vmul.f32 %v6647, %v6663
  %v6716 = vmul.f32 %v6648, %v6663
  %v6717 = vmul.f32 %v6649, %v6663
  %v6718 = vmul.f32 %v6650, %v6663
  %v6719 = vmul.f32 %v6651, %v6663
  %v6720 = vmul.f32 %v6652, %v6663
  %v6721 = vmul.f32 %v6653, %v6663
  %v6722 = vmul.f32 %v6654, %v6663
  %v6723 = vmul.f32 %v6655, %v6663
  %v6724 = vmul.f32 %v6656, %v6663
  %v6725 = vmul.f32 %v6657, %v6663
  %v6726 = vmul.f32 %v6658, %v6663
  %v6727 = vmul.f32 %v6659, %v6663
  %v6728 = vld [vmem:[%s8] sm:$0x1]
  %v6730 = vlaneseq
  %v6731 = vshrl.u32 %v6730, 7
  %v6732 = vsub.s32 0, %v6731
  %v6733 = vrot.slane %v6728, %v6732
  %v6735 = vadd.f32 %v6664, %v6733
  %v6736 = vadd.f32 %v6665, %v6733
  %v6737 = vadd.f32 %v6666, %v6733
  %v6738 = vadd.f32 %v6667, %v6733
  %v6739 = vadd.f32 %v6668, %v6733
  %v6740 = vadd.f32 %v6669, %v6733
  %v6741 = vadd.f32 %v6670, %v6733
  %v6742 = vadd.f32 %v6671, %v6733
  %v6743 = vadd.f32 %v6672, %v6733
  %v6744 = vadd.f32 %v6673, %v6733
  %v6745 = vadd.f32 %v6674, %v6733
  %v6746 = vadd.f32 %v6675, %v6733
  %v6747 = vadd.f32 %v6676, %v6733
  %v6748 = vadd.f32 %v6677, %v6733
  %v6749 = vadd.f32 %v6678, %v6733
  %v6750 = vadd.f32 %v6679, %v6733
  %v6751 = vadd.f32 %v6680, %v6733
  %v6752 = vadd.f32 %v6681, %v6733
  %v6753 = vadd.f32 %v6682, %v6733
  %v6754 = vadd.f32 %v6683, %v6733
  %v6755 = vadd.f32 %v6684, %v6733
  %v6756 = vadd.f32 %v6685, %v6733
  %v6757 = vadd.f32 %v6686, %v6733
  %v6758 = vadd.f32 %v6687, %v6733
  %v6759 = vadd.f32 %v6688, %v6733
  %v6760 = vadd.f32 %v6689, %v6733
  %v6761 = vadd.f32 %v6690, %v6733
  %v6762 = vadd.f32 %v6691, %v6733
  %v6763 = vadd.f32 %v6692, %v6733
  %v6764 = vadd.f32 %v6693, %v6733
  %v6765 = vadd.f32 %v6694, %v6733
  %v6766 = vadd.f32 %v6695, %v6733
  %v6767 = vadd.f32 %v6696, %v6733
  %v6768 = vadd.f32 %v6697, %v6733
  %v6769 = vadd.f32 %v6698, %v6733
  %v6770 = vadd.f32 %v6699, %v6733
  %v6771 = vadd.f32 %v6700, %v6733
  %v6772 = vadd.f32 %v6701, %v6733
  %v6773 = vadd.f32 %v6702, %v6733
  %v6774 = vadd.f32 %v6703, %v6733
  %v6775 = vadd.f32 %v6704, %v6733
  %v6776 = vadd.f32 %v6705, %v6733
  %v6777 = vadd.f32 %v6706, %v6733
  %v6778 = vadd.f32 %v6707, %v6733
  %v6779 = vadd.f32 %v6708, %v6733
  %v6780 = vadd.f32 %v6709, %v6733
  %v6781 = vadd.f32 %v6710, %v6733
  %v6782 = vadd.f32 %v6711, %v6733
  %v6783 = vadd.f32 %v6712, %v6733
  %v6784 = vadd.f32 %v6713, %v6733
  %v6785 = vadd.f32 %v6714, %v6733
  %v6786 = vadd.f32 %v6715, %v6733
  %v6787 = vadd.f32 %v6716, %v6733
  %v6788 = vadd.f32 %v6717, %v6733
  %v6789 = vadd.f32 %v6718, %v6733
  %v6790 = vadd.f32 %v6719, %v6733
  %v6791 = vadd.f32 %v6720, %v6733
  %v6792 = vadd.f32 %v6721, %v6733
  %v6793 = vadd.f32 %v6722, %v6733
  %v6794 = vadd.f32 %v6723, %v6733
  %v6795 = vadd.f32 %v6724, %v6733
  %v6796 = vadd.f32 %v6725, %v6733
  %v6797 = vadd.f32 %v6726, %v6733
  %v6798 = vadd.f32 %v6727, %v6733
  %v6799 = vld [vmem:[%s0] sm:$0xff]
  %v6800 = vld [vmem:[%s0 + $0x8] sm:$0xff]
  %v6801 = vld [vmem:[%s0 + $0x10] sm:$0xff]
  %v6802 = vld [vmem:[%s0 + $0x18] sm:$0xff]
  %v6803 = vld [vmem:[%s0 + $0x20] sm:$0xff]
  %v6804 = vld [vmem:[%s0 + $0x28] sm:$0xff]
  %v6805 = vld [vmem:[%s0 + $0x30] sm:$0xff]
  %v6806 = vld [vmem:[%s0 + $0x38] sm:$0xff]
  %v6807 = vld [vmem:[%s0 + $0x40] sm:$0xff]
  %v6808 = vld [vmem:[%s0 + $0x48] sm:$0xff]
  %v6809 = vld [vmem:[%s0 + $0x50] sm:$0xff]
  %v6810 = vld [vmem:[%s0 + $0x58] sm:$0xff]
  %v6811 = vld [vmem:[%s0 + $0x60] sm:$0xff]
  %v6812 = vld [vmem:[%s0 + $0x68] sm:$0xff]
  %v6813 = vld [vmem:[%s0 + $0x70] sm:$0xff]
  %v6814 = vld [vmem:[%s0 + $0x78] sm:$0xff]
  %v6815 = vld [vmem:[%s0 + $0x80] sm:$0xff]
  %v6816 = vld [vmem:[%s0 + $0x88] sm:$0xff]
  %v6817 = vld [vmem:[%s0 + $0x90] sm:$0xff]
  %v6818 = vld [vmem:[%s0 + $0x98] sm:$0xff]
  %v6819 = vld [vmem:[%s0 + $0xa0] sm:$0xff]
  %v6820 = vld [vmem:[%s0 + $0xa8] sm:$0xff]
  %v6821 = vld [vmem:[%s0 + $0xb0] sm:$0xff]
  %v6822 = vld [vmem:[%s0 + $0xb8] sm:$0xff]
  %v6823 = vld [vmem:[%s0 + $0xc0] sm:$0xff]
  %v6824 = vld [vmem:[%s0 + $0xc8] sm:$0xff]
  %v6825 = vld [vmem:[%s0 + $0xd0] sm:$0xff]
  %v6826 = vld [vmem:[%s0 + $0xd8] sm:$0xff]
  %v6827 = vld [vmem:[%s0 + $0xe0] sm:$0xff]
  %v6828 = vld [vmem:[%s0 + $0xe8] sm:$0xff]
  %v6829 = vld [vmem:[%s0 + $0xf0] sm:$0xff]
  %v6830 = vld [vmem:[%s0 + $0xf8] sm:$0xff]
  %v6831 = vld [vmem:[%s0 + $0x100] sm:$0xff]
  %v6832 = vld [vmem:[%s0 + $0x108] sm:$0xff]
  %v6833 = vld [vmem:[%s0 + $0x110] sm:$0xff]
  %v6834 = vld [vmem:[%s0 + $0x118] sm:$0xff]
  %v6835 = vld [vmem:[%s0 + $0x120] sm:$0xff]
  %v6836 = vld [vmem:[%s0 + $0x128] sm:$0xff]
  %v6837 = vld [vmem:[%s0 + $0x130] sm:$0xff]
  %v6838 = vld [vmem:[%s0 + $0x138] sm:$0xff]
  %v6839 = vld [vmem:[%s0 + $0x140] sm:$0xff]
  %v6840 = vld [vmem:[%s0 + $0x148] sm:$0xff]
  %v6841 = vld [vmem:[%s0 + $0x150] sm:$0xff]
  %v6842 = vld [vmem:[%s0 + $0x158] sm:$0xff]
  %v6843 = vld [vmem:[%s0 + $0x160] sm:$0xff]
  %v6844 = vld [vmem:[%s0 + $0x168] sm:$0xff]
  %v6845 = vld [vmem:[%s0 + $0x170] sm:$0xff]
  %v6846 = vld [vmem:[%s0 + $0x178] sm:$0xff]
  %v6847 = vld [vmem:[%s0 + $0x180] sm:$0xff]
  %v6848 = vld [vmem:[%s0 + $0x188] sm:$0xff]
  %v6849 = vld [vmem:[%s0 + $0x190] sm:$0xff]
  %v6850 = vld [vmem:[%s0 + $0x198] sm:$0xff]
  %v6851 = vld [vmem:[%s0 + $0x1a0] sm:$0xff]
  %v6852 = vld [vmem:[%s0 + $0x1a8] sm:$0xff]
  %v6853 = vld [vmem:[%s0 + $0x1b0] sm:$0xff]
  %v6854 = vld [vmem:[%s0 + $0x1b8] sm:$0xff]
  %v6855 = vld [vmem:[%s0 + $0x1c0] sm:$0xff]
  %v6856 = vld [vmem:[%s0 + $0x1c8] sm:$0xff]
  %v6857 = vld [vmem:[%s0 + $0x1d0] sm:$0xff]
  %v6858 = vld [vmem:[%s0 + $0x1d8] sm:$0xff]
  %v6859 = vld [vmem:[%s0 + $0x1e0] sm:$0xff]
  %v6860 = vld [vmem:[%s0 + $0x1e8] sm:$0xff]
  %v6861 = vld [vmem:[%s0 + $0x1f0] sm:$0xff]
  %v6862 = vld [vmem:[%s0 + $0x1f8] sm:$0xff]
  %v6863 = vadd.f32 %v6799, %v6735
  %v6864 = vadd.f32 %v6800, %v6736
  %v6865 = vadd.f32 %v6801, %v6737
  %v6866 = vadd.f32 %v6802, %v6738
  %v6867 = vadd.f32 %v6803, %v6739
  %v6868 = vadd.f32 %v6804, %v6740
  %v6869 = vadd.f32 %v6805, %v6741
  %v6870 = vadd.f32 %v6806, %v6742
  %v6871 = vadd.f32 %v6807, %v6743
  %v6872 = vadd.f32 %v6808, %v6744
  %v6873 = vadd.f32 %v6809, %v6745
  %v6874 = vadd.f32 %v6810, %v6746
  %v6875 = vadd.f32 %v6811, %v6747
  %v6876 = vadd.f32 %v6812, %v6748
  %v6877 = vadd.f32 %v6813, %v6749
  %v6878 = vadd.f32 %v6814, %v6750
  %v6879 = vadd.f32 %v6815, %v6751
  %v6880 = vadd.f32 %v6816, %v6752
  %v6881 = vadd.f32 %v6817, %v6753
  %v6882 = vadd.f32 %v6818, %v6754
  %v6883 = vadd.f32 %v6819, %v6755
  %v6884 = vadd.f32 %v6820, %v6756
  %v6885 = vadd.f32 %v6821, %v6757
  %v6886 = vadd.f32 %v6822, %v6758
  %v6887 = vadd.f32 %v6823, %v6759
  %v6888 = vadd.f32 %v6824, %v6760
  %v6889 = vadd.f32 %v6825, %v6761
  %v6890 = vadd.f32 %v6826, %v6762
  %v6891 = vadd.f32 %v6827, %v6763
  %v6892 = vadd.f32 %v6828, %v6764
  %v6893 = vadd.f32 %v6829, %v6765
  %v6894 = vadd.f32 %v6830, %v6766
  %v6895 = vadd.f32 %v6831, %v6767
  %v6896 = vadd.f32 %v6832, %v6768
  %v6897 = vadd.f32 %v6833, %v6769
  %v6898 = vadd.f32 %v6834, %v6770
  %v6899 = vadd.f32 %v6835, %v6771
  %v6900 = vadd.f32 %v6836, %v6772
  %v6901 = vadd.f32 %v6837, %v6773
  %v6902 = vadd.f32 %v6838, %v6774
  %v6903 = vadd.f32 %v6839, %v6775
  %v6904 = vadd.f32 %v6840, %v6776
  %v6905 = vadd.f32 %v6841, %v6777
  %v6906 = vadd.f32 %v6842, %v6778
  %v6907 = vadd.f32 %v6843, %v6779
  %v6908 = vadd.f32 %v6844, %v6780
  %v6909 = vadd.f32 %v6845, %v6781
  %v6910 = vadd.f32 %v6846, %v6782
  %v6911 = vadd.f32 %v6847, %v6783
  %v6912 = vadd.f32 %v6848, %v6784
  %v6913 = vadd.f32 %v6849, %v6785
  %v6914 = vadd.f32 %v6850, %v6786
  %v6915 = vadd.f32 %v6851, %v6787
  %v6916 = vadd.f32 %v6852, %v6788
  %v6917 = vadd.f32 %v6853, %v6789
  %v6918 = vadd.f32 %v6854, %v6790
  %v6919 = vadd.f32 %v6855, %v6791
  %v6920 = vadd.f32 %v6856, %v6792
  %v6921 = vadd.f32 %v6857, %v6793
  %v6922 = vadd.f32 %v6858, %v6794
  %v6923 = vadd.f32 %v6859, %v6795
  %v6924 = vadd.f32 %v6860, %v6796
  %v6925 = vadd.f32 %v6861, %v6797
  %v6926 = vadd.f32 %v6862, %v6798
  %6927 = vst [vmem:[%s9] sm:$0xff] %v6863
  %6928 = vst [vmem:[%s9 + $0x8] sm:$0xff] %v6864
  %6929 = vst [vmem:[%s9 + $0x10] sm:$0xff] %v6865
  %6930 = vst [vmem:[%s9 + $0x18] sm:$0xff] %v6866
  %6931 = vst [vmem:[%s9 + $0x20] sm:$0xff] %v6867
  %6932 = vst [vmem:[%s9 + $0x28] sm:$0xff] %v6868
  %6933 = vst [vmem:[%s9 + $0x30] sm:$0xff] %v6869
  %6934 = vst [vmem:[%s9 + $0x38] sm:$0xff] %v6870
  %6935 = vst [vmem:[%s9 + $0x40] sm:$0xff] %v6871
  %6936 = vst [vmem:[%s9 + $0x48] sm:$0xff] %v6872
  %6937 = vst [vmem:[%s9 + $0x50] sm:$0xff] %v6873
  %6938 = vst [vmem:[%s9 + $0x58] sm:$0xff] %v6874
  %6939 = vst [vmem:[%s9 + $0x60] sm:$0xff] %v6875
  %6940 = vst [vmem:[%s9 + $0x68] sm:$0xff] %v6876
  %6941 = vst [vmem:[%s9 + $0x70] sm:$0xff] %v6877
  %6942 = vst [vmem:[%s9 + $0x78] sm:$0xff] %v6878
  %6943 = vst [vmem:[%s9 + $0x80] sm:$0xff] %v6879
  %6944 = vst [vmem:[%s9 + $0x88] sm:$0xff] %v6880
  %6945 = vst [vmem:[%s9 + $0x90] sm:$0xff] %v6881
  %6946 = vst [vmem:[%s9 + $0x98] sm:$0xff] %v6882
  %6947 = vst [vmem:[%s9 + $0xa0] sm:$0xff] %v6883
  %6948 = vst [vmem:[%s9 + $0xa8] sm:$0xff] %v6884
  %6949 = vst [vmem:[%s9 + $0xb0] sm:$0xff] %v6885
  %6950 = vst [vmem:[%s9 + $0xb8] sm:$0xff] %v6886
  %6951 = vst [vmem:[%s9 + $0xc0] sm:$0xff] %v6887
  %6952 = vst [vmem:[%s9 + $0xc8] sm:$0xff] %v6888
  %6953 = vst [vmem:[%s9 + $0xd0] sm:$0xff] %v6889
  %6954 = vst [vmem:[%s9 + $0xd8] sm:$0xff] %v6890
  %6955 = vst [vmem:[%s9 + $0xe0] sm:$0xff] %v6891
  %6956 = vst [vmem:[%s9 + $0xe8] sm:$0xff] %v6892
  %6957 = vst [vmem:[%s9 + $0xf0] sm:$0xff] %v6893
  %6958 = vst [vmem:[%s9 + $0xf8] sm:$0xff] %v6894
  %6959 = vst [vmem:[%s9 + $0x100] sm:$0xff] %v6895
  %6960 = vst [vmem:[%s9 + $0x108] sm:$0xff] %v6896
  %6961 = vst [vmem:[%s9 + $0x110] sm:$0xff] %v6897
  %6962 = vst [vmem:[%s9 + $0x118] sm:$0xff] %v6898
  %6963 = vst [vmem:[%s9 + $0x120] sm:$0xff] %v6899
  %6964 = vst [vmem:[%s9 + $0x128] sm:$0xff] %v6900
  %6965 = vst [vmem:[%s9 + $0x130] sm:$0xff] %v6901
  %6966 = vst [vmem:[%s9 + $0x138] sm:$0xff] %v6902
  %6967 = vst [vmem:[%s9 + $0x140] sm:$0xff] %v6903
  %6968 = vst [vmem:[%s9 + $0x148] sm:$0xff] %v6904
  %6969 = vst [vmem:[%s9 + $0x150] sm:$0xff] %v6905
  %6970 = vst [vmem:[%s9 + $0x158] sm:$0xff] %v6906
  %6971 = vst [vmem:[%s9 + $0x160] sm:$0xff] %v6907
  %6972 = vst [vmem:[%s9 + $0x168] sm:$0xff] %v6908
  %6973 = vst [vmem:[%s9 + $0x170] sm:$0xff] %v6909
  %6974 = vst [vmem:[%s9 + $0x178] sm:$0xff] %v6910
  %6975 = vst [vmem:[%s9 + $0x180] sm:$0xff] %v6911
  %6976 = vst [vmem:[%s9 + $0x188] sm:$0xff] %v6912
  %6977 = vst [vmem:[%s9 + $0x190] sm:$0xff] %v6913
  %6978 = vst [vmem:[%s9 + $0x198] sm:$0xff] %v6914
  %6979 = vst [vmem:[%s9 + $0x1a0] sm:$0xff] %v6915
  %6980 = vst [vmem:[%s9 + $0x1a8] sm:$0xff] %v6916
  %6981 = vst [vmem:[%s9 + $0x1b0] sm:$0xff] %v6917
  %6982 = vst [vmem:[%s9 + $0x1b8] sm:$0xff] %v6918
  %6983 = vst [vmem:[%s9 + $0x1c0] sm:$0xff] %v6919
  %6984 = vst [vmem:[%s9 + $0x1c8] sm:$0xff] %v6920
  %6985 = vst [vmem:[%s9 + $0x1d0] sm:$0xff] %v6921
  %6986 = vst [vmem:[%s9 + $0x1d8] sm:$0xff] %v6922
  %6987 = vst [vmem:[%s9 + $0x1e0] sm:$0xff] %v6923
  %6988 = vst [vmem:[%s9 + $0x1e8] sm:$0xff] %v6924
  %6989 = vst [vmem:[%s9 + $0x1f0] sm:$0xff] %v6925
  %6990 = vst [vmem:[%s9 + $0x1f8] sm:$0xff] %v6926
  // Predicated region
  $region38: #{srgan_block.1} parent=0 // pred_check
    _
  $region39: #{srgan_block.1} parent=0 // pred_check_branch
    %6992 = sbr.rel (0) target = $region41
  $region40: #{srgan_block.1} parent=0 // pred_region
    _
  $region41: #{srgan_block.1} parent=0 // pred_fallthru
    _
  // Predicated region
  $region42: #{srgan_block.1} parent=0 // pred_check
    _
  $region43: #{srgan_block.1} parent=0 // pred_check_branch
    %6994 = sbr.rel (0) target = $region45
  $region44: #{srgan_block.1} parent=0 // pred_region
    _
  $region45: #{srgan_block.1} parent=0 // pred_fallthru
    _

</llo_original>
